<compile_context>
chip_gen: v5e
topology: v5e:2x2
jax: 0.10.0
libtpu: 0.0.40
codegen_flags: <defaults>
</compile_context>

<pallas_src>
import math

import jax
import jax.numpy as jnp
import numpy as np
from jax.experimental import pallas as pl
from jax.experimental.pallas import tpu as pltpu

_COMPUTE_DTYPE = jnp.bfloat16
_LANE = 128


# ----------------------------------------------------------------------------
# Host-side, one-time weight preparation (layout plumbing only).
# ----------------------------------------------------------------------------
def prepare_decoder(params, n_head):
    cdt = _COMPUTE_DTYPE
    p = params
    w = []
    for pre, ln in (("sa", "n1"), ("ca", "n2")):
        w += [
            p[f"{pre}_wq"].astype(cdt), p[f"{pre}_bq"],
            p[f"{pre}_wk"].astype(cdt), p[f"{pre}_bk"],
            p[f"{pre}_wv"].astype(cdt), p[f"{pre}_bv"],
            p[f"{pre}_wo"].astype(cdt), p[f"{pre}_bo"],
            p[f"{ln}_g"], p[f"{ln}_b"],
        ]
    w += [p["ff_w1"].astype(cdt), p["ff_b1"],
          p["ff_w2"].astype(cdt), p["ff_b2"],
          p["n3_g"], p["n3_b"]]
    # Final projection padded to a lane-dense vocab (multiple of 128); sliced back in the wrapper.
    D, V = p["lin_wT"].shape
    Vp = ((V + _LANE - 1) // _LANE) * _LANE
    lin_w = jnp.zeros((D, Vp), cdt).at[:, :V].set(p["lin_wT"].astype(cdt))
    lin_b = jnp.zeros((1, Vp), jnp.float32).at[:, :V].set(p["lin_b"])
    w += [lin_w, lin_b]
    return {"weights": tuple(w), "Vp": Vp, "V": V,
            "emb": p["emb"], "pos": p["pos"], "n_head": n_head}


def _pick_vocab_tile(Vp):
    return next(t for t in (1024, 512, 256, 128) if Vp % t == 0)


# ----------------------------------------------------------------------------
# Pallas kernel 1: fused DecoderLayer (run once, under pl.when(j==0), into a VMEM scratch)
# + vocab-tiled final Linear, grid=(batch, vocab_tiles).
# ----------------------------------------------------------------------------
def make_layer_proj_kernel(Lt, Ls, D, H):
    assert D % H == 0
    dh = D // H
    scale = 1.0 / math.sqrt(dh)
    cdt = _COMPUTE_DTYPE

    def dot_nt(a, b):
        # a (M, K) contracted with b (N, K) on the last dim -> (M, N); no explicit transpose.
        return jax.lax.dot_general(a, b, (((1,), (1,)), ((), ())),
                                   preferred_element_type=jnp.float32)

    def layer_norm(x, g, b, eps=1e-12):
        mean = jnp.mean(x, axis=-1, keepdims=True)
        var = jnp.mean(jnp.square(x - mean), axis=-1, keepdims=True)
        return g * ((x - mean) * jax.lax.rsqrt(var + eps)) + b

    def mha(x_q, x_kv, bias, wq, bq, wk, bk, wv, bv, wo, bo):
        # Full-width projections (K = N = D) on the MXU, bf16 operands / f32 accumulation.
        xq = x_q.astype(cdt)
        xk = x_kv.astype(cdt)
        q = (jnp.dot(xq, wq, preferred_element_type=jnp.float32) + bq).astype(cdt)  # (Lq, D)
        k = (jnp.dot(xk, wk, preferred_element_type=jnp.float32) + bk).astype(cdt)  # (Lk, D)
        v = (jnp.dot(xk, wv, preferred_element_type=jnp.float32) + bv).astype(cdt)  # (Lk, D)
        # Heads split only for the score/context matmuls (static lane slices); the live score
        # slab is per-head (Lq, Lk), not (H, Lq, Lk).
        ctx_heads = []
        for h in range(H):
            lo = h * dh
            qh = q[:, lo:lo + dh]
            kh = k[:, lo:lo + dh]
            vh = v[:, lo:lo + dh]
            s = dot_nt(qh, kh) * scale + bias                      # additive mask bias
            m = jnp.max(s, axis=-1, keepdims=True)
            e = jnp.exp(s - m)
            p = e * pl.reciprocal(jnp.sum(e, axis=-1, keepdims=True), approx=True)
            ctx_heads.append(jnp.dot(p.astype(cdt), vh, preferred_element_type=jnp.float32))
        ctx = jnp.concatenate(ctx_heads, axis=-1).astype(cdt)       # (Lq, D) == concat(heads)
        return jnp.dot(ctx, wo, preferred_element_type=jnp.float32) + bo

    def kernel(dec_ref, enc_ref, tbias_ref, sbias_ref,
               sa_wq, sa_bq, sa_wk, sa_bk, sa_wv, sa_bv, sa_wo, sa_bo, n1_g, n1_b,
               ca_wq, ca_bq, ca_wk, ca_bk, ca_wv, ca_bv, ca_wo, ca_bo, n2_g, n2_b,
               ff_w1, ff_b1, ff_w2, ff_b2, n3_g, n3_b,
               lin_w, lin_b,
               out_ref, x_scratch):
        # The DecoderLayer runs once per batch row (first vocab tile) and is kept resident in VMEM.
        @pl.when(pl.program_id(1) == 0)
        def _compute_layer():
            x = dec_ref[0]                                          # (Lt, D)
            enc = enc_ref[0]                                        # (Ls, D)
            tbias = tbias_ref[0, 0]                                 # (Lt, Lt) additive bias
            sbias = sbias_ref[0, 0]                                 # (1, Ls)  additive bias

            # 1) masked self-attention + residual + LayerNorm (dropout = identity)
            sa = mha(x, x, tbias,
                     sa_wq[...], sa_bq[...], sa_wk[...], sa_bk[...],
                     sa_wv[...], sa_bv[...], sa_wo[...], sa_bo[...])
            x = layer_norm(sa + x, n1_g[...], n1_b[...])

            # 2) encoder-decoder attention + residual + LayerNorm
            ca = mha(x, enc, sbias,
                     ca_wq[...], ca_bq[...], ca_wk[...], ca_bk[...],
                     ca_wv[...], ca_bv[...], ca_wo[...], ca_bo[...])
            x = layer_norm(ca + x, n2_g[...], n2_b[...])

            # 3) position-wise FFN (ReLU) + residual + LayerNorm
            h1 = jnp.maximum(
                jnp.dot(x.astype(cdt), ff_w1[...], preferred_element_type=jnp.float32)
                + ff_b1[...], 0.0)
            ff = jnp.dot(h1.astype(cdt), ff_w2[...], preferred_element_type=jnp.float32) + ff_b2[...]
            x_scratch[...] = layer_norm(ff + x, n3_g[...], n3_b[...])

        # 4) vocab-tiled final Linear (lane-dense padded vocab); activation stays in VMEM.
        xr = x_scratch[...].astype(cdt)                              # (Lt, D)
        out_ref[0] = jnp.dot(xr, lin_w[...], preferred_element_type=jnp.float32) + lin_b[...]

    return kernel


def decoder_layer_proj(dec, enc, trg_bias, src_bias, weights, Vp, n_head):
    B, Lt, D = dec.shape
    Ls = enc.shape[1]
    TV = _pick_vocab_tile(Vp)
    NV = Vp // TV
    layer_w = weights[:-2]

    def _const_spec(a):
        # Same block every grid step -> single-buffer it (no wasted double-buffer VMEM).
        nd = a.ndim
        return pl.BlockSpec(a.shape, lambda b, j, _nd=nd: (0,) * _nd,
                            pipeline_mode=pl.Buffered(1))

    in_specs = [
        pl.BlockSpec((1, Lt, D), lambda b, j: (b, 0, 0)),
        pl.BlockSpec((1, Ls, D), lambda b, j: (b, 0, 0)),
        pl.BlockSpec((1, 1, Lt, Lt), lambda b, j: (b, 0, 0, 0)),
        pl.BlockSpec((1, 1, 1, Ls), lambda b, j: (b, 0, 0, 0)),
    ] + [_const_spec(w) for w in layer_w] + [
        pl.BlockSpec((D, TV), lambda b, j: (0, j)),     # lin_w: pipelined over vocab tiles
        pl.BlockSpec((1, TV), lambda b, j: (0, j)),     # lin_b
    ]

    return pl.pallas_call(
        make_layer_proj_kernel(Lt, Ls, D, n_head),
        out_shape=jax.ShapeDtypeStruct((B, Lt, Vp), jnp.float32),
        grid=(B, NV),
        in_specs=in_specs,
        out_specs=pl.BlockSpec((1, Lt, TV), lambda b, j: (b, 0, j)),
        scratch_shapes=[pltpu.VMEM((Lt, D), jnp.float32)],
        compiler_params=pltpu.CompilerParams(
            dimension_semantics=("parallel", "arbitrary"),
            vmem_limit_bytes=48 * 1024 * 1024),
    )(dec, enc, trg_bias, src_bias, *weights)


# ----------------------------------------------------------------------------
# Pallas kernel 2: nn.Softmax() legacy implicit dim -> dim 0 (softmax over batch).
# Couples batch elements only, so (Lt, vocab) tiles are independent -> vocab-tiled grid.
# Exact division so the returned probabilities sum to 1.
# ----------------------------------------------------------------------------
def batch_softmax_kernel(x_ref, o_ref):
    x = x_ref[...]                                                   # (B, Lt, TV)
    m = jnp.max(x, axis=0, keepdims=True)
    e = jnp.exp(x - m)
    o_ref[...] = e / jnp.sum(e, axis=0, keepdims=True)


def batch_softmax(x):
    B, Lt, Vp = x.shape
    TV = _pick_vocab_tile(Vp)
    return pl.pallas_call(
        batch_softmax_kernel,
        out_shape=jax.ShapeDtypeStruct(x.shape, jnp.float32),
        grid=(Vp // TV,),
        in_specs=[pl.BlockSpec((B, Lt, TV), lambda j: (0, 0, j))],
        out_specs=pl.BlockSpec((B, Lt, TV), lambda j: (0, 0, j)),
        compiler_params=pltpu.CompilerParams(dimension_semantics=("parallel",)),
    )(x)


# ----------------------------------------------------------------------------
# Glue: embedding gather + positional encoding (lookup only, no hot compute).
# ----------------------------------------------------------------------------
def decoder_forward(prep, trg, enc_src, trg_mask, src_mask, n_layers):
    assert n_layers >= 1
    dec = prep["emb"][trg] + prep["pos"][: trg.shape[1]][None, :, :]
    # Additive mask bias precomputed once: (mask-1)*10000 == 0 where kept, -10000 where masked.
    trg_bias = (trg_mask - 1.0) * 10000.0
    src_bias = (src_mask - 1.0) * 10000.0
    # Reference bug mirrored exactly: each loop iteration re-feeds `dec` to the single shared
    # layer, so all n_layers outputs are identical and only the last is consumed -> run once.
    logits_pad = decoder_layer_proj(dec, enc_src, trg_bias, src_bias,
                                    prep["weights"], prep["Vp"], prep["n_head"])
    probs_pad = batch_softmax(logits_pad)
    return probs_pad[:, :, : prep["V"]]


# ----------------------------------------------------------------------------
# Deterministic parameter init (synthetic; no checkpoint load).
# ----------------------------------------------------------------------------
def init_params(key, V, D, H, FF, max_len):
    keys = iter(jax.random.split(key, 64))

    def dense_w(fan_in, fan_out):
        return (jax.random.normal(next(keys), (fan_in, fan_out), jnp.float32)
                / math.sqrt(fan_in))

    def dense_b(fan_out):
        return 0.01 * jax.random.normal(next(keys), (1, fan_out), jnp.float32)

    p = {}
    emb = 0.02 * jax.random.normal(next(keys), (V, D), jnp.float32)
    p["emb"] = emb.at[1].set(0.0)               # nn.Embedding(padding_idx=1)

    pos = np.arange(max_len, dtype=np.float32)[:, None]
    two_i = np.arange(0, D, 2, dtype=np.float32)
    enc = np.zeros((max_len, D), dtype=np.float32)
    enc[:, 0::2] = np.sin(pos / (10000.0 ** (two_i / D)))
    enc[:, 1::2] = np.cos(pos / (10000.0 ** (two_i / D)))
    p["pos"] = jnp.asarray(enc)

    for prefix in ("sa", "ca"):
        for name in ("q", "k", "v", "o"):
            p[f"{prefix}_w{name}"] = dense_w(D, D)
            p[f"{prefix}_b{name}"] = dense_b(D)
    for i in (1, 2, 3):
        p[f"n{i}_g"] = jnp.ones((1, D), jnp.float32)
        p[f"n{i}_b"] = jnp.zeros((1, D), jnp.float32)
    p["ff_w1"] = dense_w(D, FF)
    p["ff_b1"] = dense_b(FF)
    p["ff_w2"] = dense_w(FF, D)
    p["ff_b2"] = dense_b(D)
    p["lin_wT"] = dense_w(D, V)                 # stored transposed: (D, V)
    p["lin_b"] = dense_b(V)
    return p


# ----------------------------------------------------------------------------
# Pure-JAX reference (f32, HIGHEST precision; mirrors the PyTorch module) for sanity checking.
# ----------------------------------------------------------------------------
def _ref_ln(x, g, b, eps=1e-12):
    mean = jnp.mean(x, axis=-1, keepdims=True)
    var = jnp.mean(jnp.square(x - mean), axis=-1, keepdims=True)
    return g * ((x - mean) / jnp.sqrt(var + eps)) + b


def _ref_mha(xq, xkv, mask, wq, bq, wk, bk, wv, bv, wo, bo, H):
    hp = dict(precision=jax.lax.Precision.HIGHEST)
    B, Lq, D = xq.shape
    Lk = xkv.shape[1]
    dh = D // H
    q = (jnp.einsum("bld,de->ble", xq, wq, **hp) + bq).reshape(B, Lq, H, dh).transpose(0, 2, 1, 3)
    k = (jnp.einsum("bld,de->ble", xkv, wk, **hp) + bk).reshape(B, Lk, H, dh).transpose(0, 2, 1, 3)
    v = (jnp.einsum("bld,de->ble", xkv, wv, **hp) + bv).reshape(B, Lk, H, dh).transpose(0, 2, 1, 3)
    s = jnp.einsum("bhqd,bhkd->bhqk", q, k, **hp) / math.sqrt(dh)
    s = jnp.where(mask == 0, -10000.0, s)
    p = jax.nn.softmax(s, axis=-1)
    o = jnp.einsum("bhqk,bhkd->bhqd", p, v, **hp).transpose(0, 2, 1, 3).reshape(B, Lq, D)
    return jnp.einsum("bld,de->ble", o, wo, **hp) + bo


def reference_forward(p, trg, enc_src, trg_mask, src_mask, n_layers, H):
    hp = dict(precision=jax.lax.Precision.HIGHEST)
    dec = p["emb"][trg] + p["pos"][: trg.shape[1]][None]
    output = dec
    for _ in range(n_layers):
        x = dec
        sa = _ref_mha(x, x, trg_mask, p["sa_wq"], p["sa_bq"], p["sa_wk"], p["sa_bk"],
                      p["sa_wv"], p["sa_bv"], p["sa_wo"], p["sa_bo"], H)
        x = _ref_ln(sa + x, p["n1_g"], p["n1_b"])
        ca = _ref_mha(x, enc_src, src_mask, p["ca_wq"], p["ca_bq"], p["ca_wk"], p["ca_bk"],
                      p["ca_wv"], p["ca_bv"], p["ca_wo"], p["ca_bo"], H)
        x = _ref_ln(ca + x, p["n2_g"], p["n2_b"])
        h = jax.nn.relu(jnp.einsum("bld,df->blf", x, p["ff_w1"], **hp) + p["ff_b1"])
        ff = jnp.einsum("blf,fd->bld", h, p["ff_w2"], **hp) + p["ff_b2"]
        output = _ref_ln(ff + x, p["n3_g"], p["n3_b"])
    logits = jnp.einsum("bld,dv->blv", output, p["lin_wT"], **hp) + p["lin_b"]
    return jax.nn.softmax(logits, axis=0)       # nn.Softmax() legacy implicit dim=0 for 3-D


# ----------------------------------------------------------------------------
if __name__ == "__main__":
    B, Lt, Ls = 2, 8, 8
    D, H, FF = 32, 4, 64
    V, MAX_LEN, N_LAYERS = 48, 16, 2

    root = jax.random.PRNGKey(0)
    k_param, k_trg, k_enc = jax.random.split(root, 3)
    params = init_params(k_param, V, D, H, FF, MAX_LEN)

    trg = jax.random.randint(k_trg, (B, Lt), 0, V)
    enc_src = jax.random.normal(k_enc, (B, Ls, D), jnp.float32)
    causal = jnp.tril(jnp.ones((Lt, Lt), jnp.float32))
    trg_mask = jnp.broadcast_to(causal, (B, 1, Lt, Lt)).astype(jnp.float32)
    src_mask = jnp.ones((B, 1, 1, Ls), jnp.float32).at[1, 0, 0, Ls - 1].set(0.0)

    # One-time weight prep (bf16 cast + lane-dense vocab pad) hoisted out of the forward pass.
    prep = prepare_decoder(params, H)

    out = decoder_forward(prep, trg, enc_src, trg_mask, src_mask, N_LAYERS)
    out = jax.block_until_ready(out)

    ref = reference_forward(params, trg, enc_src, trg_mask, src_mask, N_LAYERS, H)
    # bf16 MXU operands (f32 accumulation) vs f32-HIGHEST reference -> slightly looser tolerance.
    np.testing.assert_allclose(np.asarray(out), np.asarray(ref), rtol=3e-2, atol=2e-2)
    # Final softmax is exact (no approx reciprocal): probabilities sum to 1 over the softmax dim.
    np.testing.assert_allclose(np.asarray(out).sum(axis=0), 1.0, atol=1e-3)
    assert out.shape == (B, Lt, V)
    print("KERNEL_OK")
</pallas_src>

<mosaic_0001>
module attributes {stable_mosaic.version = 11 : i64} {
  func.func @kernel(%arg0: i32, %arg1: i32, %arg2: memref<1x8x32xf32, #tpu.memory_space<vmem>>, %arg3: memref<1x8x32xf32, #tpu.memory_space<vmem>>, %arg4: memref<1x1x8x8xf32, #tpu.memory_space<vmem>>, %arg5: memref<1x1x1x8xf32, #tpu.memory_space<vmem>>, %arg6: memref<32x32xbf16, #tpu.memory_space<vmem>>, %arg7: memref<1x32xf32, #tpu.memory_space<vmem>>, %arg8: memref<32x32xbf16, #tpu.memory_space<vmem>>, %arg9: memref<1x32xf32, #tpu.memory_space<vmem>>, %arg10: memref<32x32xbf16, #tpu.memory_space<vmem>>, %arg11: memref<1x32xf32, #tpu.memory_space<vmem>>, %arg12: memref<32x32xbf16, #tpu.memory_space<vmem>>, %arg13: memref<1x32xf32, #tpu.memory_space<vmem>>, %arg14: memref<1x32xf32, #tpu.memory_space<vmem>>, %arg15: memref<1x32xf32, #tpu.memory_space<vmem>>, %arg16: memref<32x32xbf16, #tpu.memory_space<vmem>>, %arg17: memref<1x32xf32, #tpu.memory_space<vmem>>, %arg18: memref<32x32xbf16, #tpu.memory_space<vmem>>, %arg19: memref<1x32xf32, #tpu.memory_space<vmem>>, %arg20: memref<32x32xbf16, #tpu.memory_space<vmem>>, %arg21: memref<1x32xf32, #tpu.memory_space<vmem>>, %arg22: memref<32x32xbf16, #tpu.memory_space<vmem>>, %arg23: memref<1x32xf32, #tpu.memory_space<vmem>>, %arg24: memref<1x32xf32, #tpu.memory_space<vmem>>, %arg25: memref<1x32xf32, #tpu.memory_space<vmem>>, %arg26: memref<32x64xbf16, #tpu.memory_space<vmem>>, %arg27: memref<1x64xf32, #tpu.memory_space<vmem>>, %arg28: memref<64x32xbf16, #tpu.memory_space<vmem>>, %arg29: memref<1x32xf32, #tpu.memory_space<vmem>>, %arg30: memref<1x32xf32, #tpu.memory_space<vmem>>, %arg31: memref<1x32xf32, #tpu.memory_space<vmem>>, %arg32: memref<32x128xbf16, #tpu.memory_space<vmem>>, %arg33: memref<1x128xf32, #tpu.memory_space<vmem>>, %arg34: memref<1x8x128xf32, #tpu.memory_space<vmem>>, %arg35: memref<8x32xf32, #tpu.memory_space<vmem>>) attributes {dimension_semantics = [#tpu.dimension_semantics<parallel>, #tpu.dimension_semantics<arbitrary>], iteration_bounds = array<i64: 2, 1>, scalar_prefetch = 0 : i64, scratch_operands = 1 : i64, tpu.core_type = #tpu.core_type<tc>, window_params = [{transform_indices = @transform_0, window_bounds = array<i64: 1, 8, 32>}, {transform_indices = @transform_1, window_bounds = array<i64: 1, 8, 32>}, {transform_indices = @transform_2, window_bounds = array<i64: 1, 1, 8, 8>}, {transform_indices = @transform_3, window_bounds = array<i64: 1, 1, 1, 8>}, {pipeline_mode = #tpu.pipeline_mode<synchronous>, transform_indices = @transform_4, window_bounds = array<i64: 32, 32>}, {pipeline_mode = #tpu.pipeline_mode<synchronous>, transform_indices = @transform_5, window_bounds = array<i64: 1, 32>}, {pipeline_mode = #tpu.pipeline_mode<synchronous>, transform_indices = @transform_6, window_bounds = array<i64: 32, 32>}, {pipeline_mode = #tpu.pipeline_mode<synchronous>, transform_indices = @transform_7, window_bounds = array<i64: 1, 32>}, {pipeline_mode = #tpu.pipeline_mode<synchronous>, transform_indices = @transform_8, window_bounds = array<i64: 32, 32>}, {pipeline_mode = #tpu.pipeline_mode<synchronous>, transform_indices = @transform_9, window_bounds = array<i64: 1, 32>}, {pipeline_mode = #tpu.pipeline_mode<synchronous>, transform_indices = @transform_10, window_bounds = array<i64: 32, 32>}, {pipeline_mode = #tpu.pipeline_mode<synchronous>, transform_indices = @transform_11, window_bounds = array<i64: 1, 32>}, {pipeline_mode = #tpu.pipeline_mode<synchronous>, transform_indices = @transform_12, window_bounds = array<i64: 1, 32>}, {pipeline_mode = #tpu.pipeline_mode<synchronous>, transform_indices = @transform_13, window_bounds = array<i64: 1, 32>}, {pipeline_mode = #tpu.pipeline_mode<synchronous>, transform_indices = @transform_14, window_bounds = array<i64: 32, 32>}, {pipeline_mode = #tpu.pipeline_mode<synchronous>, transform_indices = @transform_15, window_bounds = array<i64: 1, 32>}, {pipeline_mode = #tpu.pipeline_mode<synchronous>, transform_indices = @transform_16, window_bounds = array<i64: 32, 32>}, {pipeline_mode = #tpu.pipeline_mode<synchronous>, transform_indices = @transform_17, window_bounds = array<i64: 1, 32>}, {pipeline_mode = #tpu.pipeline_mode<synchronous>, transform_indices = @transform_18, window_bounds = array<i64: 32, 32>}, {pipeline_mode = #tpu.pipeline_mode<synchronous>, transform_indices = @transform_19, window_bounds = array<i64: 1, 32>}, {pipeline_mode = #tpu.pipeline_mode<synchronous>, transform_indices = @transform_20, window_bounds = array<i64: 32, 32>}, {pipeline_mode = #tpu.pipeline_mode<synchronous>, transform_indices = @transform_21, window_bounds = array<i64: 1, 32>}, {pipeline_mode = #tpu.pipeline_mode<synchronous>, transform_indices = @transform_22, window_bounds = array<i64: 1, 32>}, {pipeline_mode = #tpu.pipeline_mode<synchronous>, transform_indices = @transform_23, window_bounds = array<i64: 1, 32>}, {pipeline_mode = #tpu.pipeline_mode<synchronous>, transform_indices = @transform_24, window_bounds = array<i64: 32, 64>}, {pipeline_mode = #tpu.pipeline_mode<synchronous>, transform_indices = @transform_25, window_bounds = array<i64: 1, 64>}, {pipeline_mode = #tpu.pipeline_mode<synchronous>, transform_indices = @transform_26, window_bounds = array<i64: 64, 32>}, {pipeline_mode = #tpu.pipeline_mode<synchronous>, transform_indices = @transform_27, window_bounds = array<i64: 1, 32>}, {pipeline_mode = #tpu.pipeline_mode<synchronous>, transform_indices = @transform_28, window_bounds = array<i64: 1, 32>}, {pipeline_mode = #tpu.pipeline_mode<synchronous>, transform_indices = @transform_29, window_bounds = array<i64: 1, 32>}, {transform_indices = @transform_30, window_bounds = array<i64: 32, 128>}, {transform_indices = @transform_31, window_bounds = array<i64: 1, 128>}, {transform_indices = @transform_32, window_bounds = array<i64: 1, 8, 128>}]} {
    %c0_i32 = arith.constant 0 : i32
    %0 = arith.cmpi eq, %arg1, %c0_i32 : i32
    %1 = arith.extui %0 : i1 to i32
    %c0_i32_0 = arith.constant 0 : i32
    %2 = arith.cmpi ne, %1, %c0_i32_0 : i32
    scf.if %2 {
      %c0_9 = arith.constant 0 : index
      %c0_10 = arith.constant 0 : index
      %c0_11 = arith.constant 0 : index
      %13 = vector.load %arg2[%c0_9, %c0_10, %c0_11] : memref<1x8x32xf32, #tpu.memory_space<vmem>>, vector<1x8x32xf32>
      %14 = vector.shape_cast %13 : vector<1x8x32xf32> to vector<8x32xf32>
      %c0_12 = arith.constant 0 : index
      %c0_13 = arith.constant 0 : index
      %c0_14 = arith.constant 0 : index
      %15 = vector.load %arg3[%c0_12, %c0_13, %c0_14] : memref<1x8x32xf32, #tpu.memory_space<vmem>>, vector<1x8x32xf32>
      %16 = vector.shape_cast %15 : vector<1x8x32xf32> to vector<8x32xf32>
      %c0_15 = arith.constant 0 : index
      %c0_16 = arith.constant 0 : index
      %c0_17 = arith.constant 0 : index
      %c0_18 = arith.constant 0 : index
      %17 = vector.load %arg4[%c0_15, %c0_16, %c0_17, %c0_18] : memref<1x1x8x8xf32, #tpu.memory_space<vmem>>, vector<1x1x8x8xf32>
      %18 = vector.shape_cast %17 : vector<1x1x8x8xf32> to vector<8x8xf32>
      %c0_19 = arith.constant 0 : index
      %c0_20 = arith.constant 0 : index
      %c0_21 = arith.constant 0 : index
      %c0_22 = arith.constant 0 : index
      %19 = vector.load %arg5[%c0_19, %c0_20, %c0_21, %c0_22] : memref<1x1x1x8xf32, #tpu.memory_space<vmem>>, vector<1x1x1x8xf32>
      %20 = vector.shape_cast %19 : vector<1x1x1x8xf32> to vector<1x8xf32>
      %c0_23 = arith.constant 0 : index
      %c0_24 = arith.constant 0 : index
      %21 = vector.load %arg6[%c0_23, %c0_24] : memref<32x32xbf16, #tpu.memory_space<vmem>>, vector<32x32xbf16>
      %c0_25 = arith.constant 0 : index
      %c0_26 = arith.constant 0 : index
      %22 = vector.load %arg7[%c0_25, %c0_26] : memref<1x32xf32, #tpu.memory_space<vmem>>, vector<1x32xf32>
      %c0_27 = arith.constant 0 : index
      %c0_28 = arith.constant 0 : index
      %23 = vector.load %arg8[%c0_27, %c0_28] : memref<32x32xbf16, #tpu.memory_space<vmem>>, vector<32x32xbf16>
      %c0_29 = arith.constant 0 : index
      %c0_30 = arith.constant 0 : index
      %24 = vector.load %arg9[%c0_29, %c0_30] : memref<1x32xf32, #tpu.memory_space<vmem>>, vector<1x32xf32>
      %c0_31 = arith.constant 0 : index
      %c0_32 = arith.constant 0 : index
      %25 = vector.load %arg10[%c0_31, %c0_32] : memref<32x32xbf16, #tpu.memory_space<vmem>>, vector<32x32xbf16>
      %c0_33 = arith.constant 0 : index
      %c0_34 = arith.constant 0 : index
      %26 = vector.load %arg11[%c0_33, %c0_34] : memref<1x32xf32, #tpu.memory_space<vmem>>, vector<1x32xf32>
      %c0_35 = arith.constant 0 : index
      %c0_36 = arith.constant 0 : index
      %27 = vector.load %arg12[%c0_35, %c0_36] : memref<32x32xbf16, #tpu.memory_space<vmem>>, vector<32x32xbf16>
      %c0_37 = arith.constant 0 : index
      %c0_38 = arith.constant 0 : index
      %28 = vector.load %arg13[%c0_37, %c0_38] : memref<1x32xf32, #tpu.memory_space<vmem>>, vector<1x32xf32>
      %29 = arith.truncf %14 : vector<8x32xf32> to vector<8x32xbf16>
      %30 = arith.truncf %14 : vector<8x32xf32> to vector<8x32xbf16>
      %cst_39 = arith.constant dense<0.000000e+00> : vector<8x32xf32>
      %31 = tpu.matmul %29, %21, %cst_39 {dimension_numbers = #tpu.dot_dimension_numbers<[1], [0], [0], [1], [0, 0, 1, 1], [], []>} : vector<8x32xbf16>, vector<32x32xbf16>, vector<8x32xf32> -> vector<8x32xf32>
      %32 = vector.broadcast %22 : vector<1x32xf32> to vector<8x32xf32>
      %33 = arith.addf %31, %32 : vector<8x32xf32>
      %34 = arith.truncf %33 : vector<8x32xf32> to vector<8x32xbf16>
      %cst_40 = arith.constant dense<0.000000e+00> : vector<8x32xf32>
      %35 = tpu.matmul %30, %23, %cst_40 {dimension_numbers = #tpu.dot_dimension_numbers<[1], [0], [0], [1], [0, 0, 1, 1], [], []>} : vector<8x32xbf16>, vector<32x32xbf16>, vector<8x32xf32> -> vector<8x32xf32>
      %36 = vector.broadcast %24 : vector<1x32xf32> to vector<8x32xf32>
      %37 = arith.addf %35, %36 : vector<8x32xf32>
      %38 = arith.truncf %37 : vector<8x32xf32> to vector<8x32xbf16>
      %cst_41 = arith.constant dense<0.000000e+00> : vector<8x32xf32>
      %39 = tpu.matmul %30, %25, %cst_41 {dimension_numbers = #tpu.dot_dimension_numbers<[1], [0], [0], [1], [0, 0, 1, 1], [], []>} : vector<8x32xbf16>, vector<32x32xbf16>, vector<8x32xf32> -> vector<8x32xf32>
      %40 = vector.broadcast %26 : vector<1x32xf32> to vector<8x32xf32>
      %41 = arith.addf %39, %40 : vector<8x32xf32>
      %42 = arith.truncf %41 : vector<8x32xf32> to vector<8x32xbf16>
      %43 = vector.extract_strided_slice %34 {offsets = [0, 0], sizes = [8, 8], strides = [1, 1]} : vector<8x32xbf16> to vector<8x8xbf16>
      %44 = vector.extract_strided_slice %38 {offsets = [0, 0], sizes = [8, 8], strides = [1, 1]} : vector<8x32xbf16> to vector<8x8xbf16>
      %45 = vector.extract_strided_slice %42 {offsets = [0, 0], sizes = [8, 8], strides = [1, 1]} : vector<8x32xbf16> to vector<8x8xbf16>
      %cst_42 = arith.constant dense<0.000000e+00> : vector<8x8xf32>
      %46 = tpu.matmul %43, %44, %cst_42 {dimension_numbers = #tpu.dot_dimension_numbers<[1], [1], [0], [0], [0, 0, 1, 0], [], []>} : vector<8x8xbf16>, vector<8x8xbf16>, vector<8x8xf32> -> vector<8x8xf32>
      %cst_43 = arith.constant 0.353553385 : f32
      %47 = vector.broadcast %cst_43 : f32 to vector<8x8xf32>
      %48 = arith.mulf %46, %47 : vector<8x8xf32>
      %49 = arith.addf %48, %18 : vector<8x8xf32>
      %cst_44 = arith.constant dense<0xFF800000> : vector<8xf32>
      %50 = vector.multi_reduction <maximumf>, %49, %cst_44 [1] : vector<8x8xf32> to vector<8xf32>
      %51 = vector.shape_cast %50 : vector<8xf32> to vector<8x1xf32>
      %52 = vector.broadcast %51 : vector<8x1xf32> to vector<8x8xf32>
      %53 = arith.subf %49, %52 : vector<8x8xf32>
      %54 = math.exp %53 : vector<8x8xf32>
      %cst_45 = arith.constant dense<0.000000e+00> : vector<8xf32>
      %55 = vector.multi_reduction <add>, %54, %cst_45 [1] : vector<8x8xf32> to vector<8xf32>
      %56 = vector.shape_cast %55 : vector<8xf32> to vector<8x1xf32>
      %57 = tpu.reciprocal %56 {approx = true} : vector<8x1xf32> -> vector<8x1xf32>
      %58 = vector.broadcast %57 : vector<8x1xf32> to vector<8x8xf32>
      %59 = arith.mulf %54, %58 : vector<8x8xf32>
      %60 = arith.truncf %59 : vector<8x8xf32> to vector<8x8xbf16>
      %cst_46 = arith.constant dense<0.000000e+00> : vector<8x8xf32>
      %61 = tpu.matmul %60, %45, %cst_46 {dimension_numbers = #tpu.dot_dimension_numbers<[1], [0], [0], [1], [0, 0, 1, 1], [], []>} : vector<8x8xbf16>, vector<8x8xbf16>, vector<8x8xf32> -> vector<8x8xf32>
      %62 = vector.extract_strided_slice %34 {offsets = [0, 8], sizes = [8, 8], strides = [1, 1]} : vector<8x32xbf16> to vector<8x8xbf16>
      %63 = vector.extract_strided_slice %38 {offsets = [0, 8], sizes = [8, 8], strides = [1, 1]} : vector<8x32xbf16> to vector<8x8xbf16>
      %64 = vector.extract_strided_slice %42 {offsets = [0, 8], sizes = [8, 8], strides = [1, 1]} : vector<8x32xbf16> to vector<8x8xbf16>
      %cst_47 = arith.constant dense<0.000000e+00> : vector<8x8xf32>
      %65 = tpu.matmul %62, %63, %cst_47 {dimension_numbers = #tpu.dot_dimension_numbers<[1], [1], [0], [0], [0, 0, 1, 0], [], []>} : vector<8x8xbf16>, vector<8x8xbf16>, vector<8x8xf32> -> vector<8x8xf32>
      %cst_48 = arith.constant 0.353553385 : f32
      %66 = vector.broadcast %cst_48 : f32 to vector<8x8xf32>
      %67 = arith.mulf %65, %66 : vector<8x8xf32>
      %68 = arith.addf %67, %18 : vector<8x8xf32>
      %cst_49 = arith.constant dense<0xFF800000> : vector<8xf32>
      %69 = vector.multi_reduction <maximumf>, %68, %cst_49 [1] : vector<8x8xf32> to vector<8xf32>
      %70 = vector.shape_cast %69 : vector<8xf32> to vector<8x1xf32>
      %71 = vector.broadcast %70 : vector<8x1xf32> to vector<8x8xf32>
      %72 = arith.subf %68, %71 : vector<8x8xf32>
      %73 = math.exp %72 : vector<8x8xf32>
      %cst_50 = arith.constant dense<0.000000e+00> : vector<8xf32>
      %74 = vector.multi_reduction <add>, %73, %cst_50 [1] : vector<8x8xf32> to vector<8xf32>
      %75 = vector.shape_cast %74 : vector<8xf32> to vector<8x1xf32>
      %76 = tpu.reciprocal %75 {approx = true} : vector<8x1xf32> -> vector<8x1xf32>
      %77 = vector.broadcast %76 : vector<8x1xf32> to vector<8x8xf32>
      %78 = arith.mulf %73, %77 : vector<8x8xf32>
      %79 = arith.truncf %78 : vector<8x8xf32> to vector<8x8xbf16>
      %cst_51 = arith.constant dense<0.000000e+00> : vector<8x8xf32>
      %80 = tpu.matmul %79, %64, %cst_51 {dimension_numbers = #tpu.dot_dimension_numbers<[1], [0], [0], [1], [0, 0, 1, 1], [], []>} : vector<8x8xbf16>, vector<8x8xbf16>, vector<8x8xf32> -> vector<8x8xf32>
      %81 = vector.extract_strided_slice %34 {offsets = [0, 16], sizes = [8, 8], strides = [1, 1]} : vector<8x32xbf16> to vector<8x8xbf16>
      %82 = vector.extract_strided_slice %38 {offsets = [0, 16], sizes = [8, 8], strides = [1, 1]} : vector<8x32xbf16> to vector<8x8xbf16>
      %83 = vector.extract_strided_slice %42 {offsets = [0, 16], sizes = [8, 8], strides = [1, 1]} : vector<8x32xbf16> to vector<8x8xbf16>
      %cst_52 = arith.constant dense<0.000000e+00> : vector<8x8xf32>
      %84 = tpu.matmul %81, %82, %cst_52 {dimension_numbers = #tpu.dot_dimension_numbers<[1], [1], [0], [0], [0, 0, 1, 0], [], []>} : vector<8x8xbf16>, vector<8x8xbf16>, vector<8x8xf32> -> vector<8x8xf32>
      %cst_53 = arith.constant 0.353553385 : f32
      %85 = vector.broadcast %cst_53 : f32 to vector<8x8xf32>
      %86 = arith.mulf %84, %85 : vector<8x8xf32>
      %87 = arith.addf %86, %18 : vector<8x8xf32>
      %cst_54 = arith.constant dense<0xFF800000> : vector<8xf32>
      %88 = vector.multi_reduction <maximumf>, %87, %cst_54 [1] : vector<8x8xf32> to vector<8xf32>
      %89 = vector.shape_cast %88 : vector<8xf32> to vector<8x1xf32>
      %90 = vector.broadcast %89 : vector<8x1xf32> to vector<8x8xf32>
      %91 = arith.subf %87, %90 : vector<8x8xf32>
      %92 = math.exp %91 : vector<8x8xf32>
      %cst_55 = arith.constant dense<0.000000e+00> : vector<8xf32>
      %93 = vector.multi_reduction <add>, %92, %cst_55 [1] : vector<8x8xf32> to vector<8xf32>
      %94 = vector.shape_cast %93 : vector<8xf32> to vector<8x1xf32>
      %95 = tpu.reciprocal %94 {approx = true} : vector<8x1xf32> -> vector<8x1xf32>
      %96 = vector.broadcast %95 : vector<8x1xf32> to vector<8x8xf32>
      %97 = arith.mulf %92, %96 : vector<8x8xf32>
      %98 = arith.truncf %97 : vector<8x8xf32> to vector<8x8xbf16>
      %cst_56 = arith.constant dense<0.000000e+00> : vector<8x8xf32>
      %99 = tpu.matmul %98, %83, %cst_56 {dimension_numbers = #tpu.dot_dimension_numbers<[1], [0], [0], [1], [0, 0, 1, 1], [], []>} : vector<8x8xbf16>, vector<8x8xbf16>, vector<8x8xf32> -> vector<8x8xf32>
      %100 = vector.extract_strided_slice %34 {offsets = [0, 24], sizes = [8, 8], strides = [1, 1]} : vector<8x32xbf16> to vector<8x8xbf16>
      %101 = vector.extract_strided_slice %38 {offsets = [0, 24], sizes = [8, 8], strides = [1, 1]} : vector<8x32xbf16> to vector<8x8xbf16>
      %102 = vector.extract_strided_slice %42 {offsets = [0, 24], sizes = [8, 8], strides = [1, 1]} : vector<8x32xbf16> to vector<8x8xbf16>
      %cst_57 = arith.constant dense<0.000000e+00> : vector<8x8xf32>
      %103 = tpu.matmul %100, %101, %cst_57 {dimension_numbers = #tpu.dot_dimension_numbers<[1], [1], [0], [0], [0, 0, 1, 0], [], []>} : vector<8x8xbf16>, vector<8x8xbf16>, vector<8x8xf32> -> vector<8x8xf32>
      %cst_58 = arith.constant 0.353553385 : f32
      %104 = vector.broadcast %cst_58 : f32 to vector<8x8xf32>
      %105 = arith.mulf %103, %104 : vector<8x8xf32>
      %106 = arith.addf %105, %18 : vector<8x8xf32>
      %cst_59 = arith.constant dense<0xFF800000> : vector<8xf32>
      %107 = vector.multi_reduction <maximumf>, %106, %cst_59 [1] : vector<8x8xf32> to vector<8xf32>
      %108 = vector.shape_cast %107 : vector<8xf32> to vector<8x1xf32>
      %109 = vector.broadcast %108 : vector<8x1xf32> to vector<8x8xf32>
      %110 = arith.subf %106, %109 : vector<8x8xf32>
      %111 = math.exp %110 : vector<8x8xf32>
      %cst_60 = arith.constant dense<0.000000e+00> : vector<8xf32>
      %112 = vector.multi_reduction <add>, %111, %cst_60 [1] : vector<8x8xf32> to vector<8xf32>
      %113 = vector.shape_cast %112 : vector<8xf32> to vector<8x1xf32>
      %114 = tpu.reciprocal %113 {approx = true} : vector<8x1xf32> -> vector<8x1xf32>
      %115 = vector.broadcast %114 : vector<8x1xf32> to vector<8x8xf32>
      %116 = arith.mulf %111, %115 : vector<8x8xf32>
      %117 = arith.truncf %116 : vector<8x8xf32> to vector<8x8xbf16>
      %cst_61 = arith.constant dense<0.000000e+00> : vector<8x8xf32>
      %118 = tpu.matmul %117, %102, %cst_61 {dimension_numbers = #tpu.dot_dimension_numbers<[1], [0], [0], [1], [0, 0, 1, 1], [], []>} : vector<8x8xbf16>, vector<8x8xbf16>, vector<8x8xf32> -> vector<8x8xf32>
      %119 = tpu.concatenate %61, %80, %99, %118 in 1 : vector<8x8xf32>, vector<8x8xf32>, vector<8x8xf32>, vector<8x8xf32> -> vector<8x32xf32>
      %120 = arith.truncf %119 : vector<8x32xf32> to vector<8x32xbf16>
      %cst_62 = arith.constant dense<0.000000e+00> : vector<8x32xf32>
      %121 = tpu.matmul %120, %27, %cst_62 {dimension_numbers = #tpu.dot_dimension_numbers<[1], [0], [0], [1], [0, 0, 1, 1], [], []>} : vector<8x32xbf16>, vector<32x32xbf16>, vector<8x32xf32> -> vector<8x32xf32>
      %122 = vector.broadcast %28 : vector<1x32xf32> to vector<8x32xf32>
      %123 = arith.addf %121, %122 : vector<8x32xf32>
      %124 = arith.addf %123, %14 : vector<8x32xf32>
      %c0_63 = arith.constant 0 : index
      %c0_64 = arith.constant 0 : index
      %125 = vector.load %arg14[%c0_63, %c0_64] : memref<1x32xf32, #tpu.memory_space<vmem>>, vector<1x32xf32>
      %c0_65 = arith.constant 0 : index
      %c0_66 = arith.constant 0 : index
      %126 = vector.load %arg15[%c0_65, %c0_66] : memref<1x32xf32, #tpu.memory_space<vmem>>, vector<1x32xf32>
      %cst_67 = arith.constant dense<0.000000e+00> : vector<8xf32>
      %127 = vector.multi_reduction <add>, %124, %cst_67 [1] : vector<8x32xf32> to vector<8xf32>
      %128 = vector.shape_cast %127 : vector<8xf32> to vector<8x1xf32>
      %cst_68 = arith.constant 3.200000e+01 : f32
      %129 = vector.broadcast %cst_68 : f32 to vector<8x1xf32>
      %130 = arith.divf %128, %129 : vector<8x1xf32>
      %131 = vector.broadcast %130 : vector<8x1xf32> to vector<8x32xf32>
      %132 = arith.subf %124, %131 : vector<8x32xf32>
      %133 = arith.mulf %132, %132 : vector<8x32xf32>
      %cst_69 = arith.constant dense<0.000000e+00> : vector<8xf32>
      %134 = vector.multi_reduction <add>, %133, %cst_69 [1] : vector<8x32xf32> to vector<8xf32>
      %135 = vector.shape_cast %134 : vector<8xf32> to vector<8x1xf32>
      %cst_70 = arith.constant 3.200000e+01 : f32
      %136 = vector.broadcast %cst_70 : f32 to vector<8x1xf32>
      %137 = arith.divf %135, %136 : vector<8x1xf32>
      %138 = vector.broadcast %130 : vector<8x1xf32> to vector<8x32xf32>
      %139 = arith.subf %124, %138 : vector<8x32xf32>
      %cst_71 = arith.constant 9.99999996E-13 : f32
      %140 = vector.broadcast %cst_71 : f32 to vector<8x1xf32>
      %141 = arith.addf %137, %140 : vector<8x1xf32>
      %142 = math.rsqrt %141 : vector<8x1xf32>
      %143 = vector.broadcast %142 : vector<8x1xf32> to vector<8x32xf32>
      %144 = arith.mulf %139, %143 : vector<8x32xf32>
      %145 = vector.broadcast %125 : vector<1x32xf32> to vector<8x32xf32>
      %146 = arith.mulf %145, %144 : vector<8x32xf32>
      %147 = vector.broadcast %126 : vector<1x32xf32> to vector<8x32xf32>
      %148 = arith.addf %146, %147 : vector<8x32xf32>
      %c0_72 = arith.constant 0 : index
      %c0_73 = arith.constant 0 : index
      %149 = vector.load %arg16[%c0_72, %c0_73] : memref<32x32xbf16, #tpu.memory_space<vmem>>, vector<32x32xbf16>
      %c0_74 = arith.constant 0 : index
      %c0_75 = arith.constant 0 : index
      %150 = vector.load %arg17[%c0_74, %c0_75] : memref<1x32xf32, #tpu.memory_space<vmem>>, vector<1x32xf32>
      %c0_76 = arith.constant 0 : index
      %c0_77 = arith.constant 0 : index
      %151 = vector.load %arg18[%c0_76, %c0_77] : memref<32x32xbf16, #tpu.memory_space<vmem>>, vector<32x32xbf16>
      %c0_78 = arith.constant 0 : index
      %c0_79 = arith.constant 0 : index
      %152 = vector.load %arg19[%c0_78, %c0_79] : memref<1x32xf32, #tpu.memory_space<vmem>>, vector<1x32xf32>
      %c0_80 = arith.constant 0 : index
      %c0_81 = arith.constant 0 : index
      %153 = vector.load %arg20[%c0_80, %c0_81] : memref<32x32xbf16, #tpu.memory_space<vmem>>, vector<32x32xbf16>
      %c0_82 = arith.constant 0 : index
      %c0_83 = arith.constant 0 : index
      %154 = vector.load %arg21[%c0_82, %c0_83] : memref<1x32xf32, #tpu.memory_space<vmem>>, vector<1x32xf32>
      %c0_84 = arith.constant 0 : index
      %c0_85 = arith.constant 0 : index
      %155 = vector.load %arg22[%c0_84, %c0_85] : memref<32x32xbf16, #tpu.memory_space<vmem>>, vector<32x32xbf16>
      %c0_86 = arith.constant 0 : index
      %c0_87 = arith.constant 0 : index
      %156 = vector.load %arg23[%c0_86, %c0_87] : memref<1x32xf32, #tpu.memory_space<vmem>>, vector<1x32xf32>
      %157 = arith.truncf %148 : vector<8x32xf32> to vector<8x32xbf16>
      %158 = arith.truncf %16 : vector<8x32xf32> to vector<8x32xbf16>
      %cst_88 = arith.constant dense<0.000000e+00> : vector<8x32xf32>
      %159 = tpu.matmul %157, %149, %cst_88 {dimension_numbers = #tpu.dot_dimension_numbers<[1], [0], [0], [1], [0, 0, 1, 1], [], []>} : vector<8x32xbf16>, vector<32x32xbf16>, vector<8x32xf32> -> vector<8x32xf32>
      %160 = vector.broadcast %150 : vector<1x32xf32> to vector<8x32xf32>
      %161 = arith.addf %159, %160 : vector<8x32xf32>
      %162 = arith.truncf %161 : vector<8x32xf32> to vector<8x32xbf16>
      %cst_89 = arith.constant dense<0.000000e+00> : vector<8x32xf32>
      %163 = tpu.matmul %158, %151, %cst_89 {dimension_numbers = #tpu.dot_dimension_numbers<[1], [0], [0], [1], [0, 0, 1, 1], [], []>} : vector<8x32xbf16>, vector<32x32xbf16>, vector<8x32xf32> -> vector<8x32xf32>
      %164 = vector.broadcast %152 : vector<1x32xf32> to vector<8x32xf32>
      %165 = arith.addf %163, %164 : vector<8x32xf32>
      %166 = arith.truncf %165 : vector<8x32xf32> to vector<8x32xbf16>
      %cst_90 = arith.constant dense<0.000000e+00> : vector<8x32xf32>
      %167 = tpu.matmul %158, %153, %cst_90 {dimension_numbers = #tpu.dot_dimension_numbers<[1], [0], [0], [1], [0, 0, 1, 1], [], []>} : vector<8x32xbf16>, vector<32x32xbf16>, vector<8x32xf32> -> vector<8x32xf32>
      %168 = vector.broadcast %154 : vector<1x32xf32> to vector<8x32xf32>
      %169 = arith.addf %167, %168 : vector<8x32xf32>
      %170 = arith.truncf %169 : vector<8x32xf32> to vector<8x32xbf16>
      %171 = vector.extract_strided_slice %162 {offsets = [0, 0], sizes = [8, 8], strides = [1, 1]} : vector<8x32xbf16> to vector<8x8xbf16>
      %172 = vector.extract_strided_slice %166 {offsets = [0, 0], sizes = [8, 8], strides = [1, 1]} : vector<8x32xbf16> to vector<8x8xbf16>
      %173 = vector.extract_strided_slice %170 {offsets = [0, 0], sizes = [8, 8], strides = [1, 1]} : vector<8x32xbf16> to vector<8x8xbf16>
      %cst_91 = arith.constant dense<0.000000e+00> : vector<8x8xf32>
      %174 = tpu.matmul %171, %172, %cst_91 {dimension_numbers = #tpu.dot_dimension_numbers<[1], [1], [0], [0], [0, 0, 1, 0], [], []>} : vector<8x8xbf16>, vector<8x8xbf16>, vector<8x8xf32> -> vector<8x8xf32>
      %cst_92 = arith.constant 0.353553385 : f32
      %175 = vector.broadcast %cst_92 : f32 to vector<8x8xf32>
      %176 = arith.mulf %174, %175 : vector<8x8xf32>
      %177 = vector.broadcast %20 : vector<1x8xf32> to vector<8x8xf32>
      %178 = arith.addf %176, %177 : vector<8x8xf32>
      %cst_93 = arith.constant dense<0xFF800000> : vector<8xf32>
      %179 = vector.multi_reduction <maximumf>, %178, %cst_93 [1] : vector<8x8xf32> to vector<8xf32>
      %180 = vector.shape_cast %179 : vector<8xf32> to vector<8x1xf32>
      %181 = vector.broadcast %180 : vector<8x1xf32> to vector<8x8xf32>
      %182 = arith.subf %178, %181 : vector<8x8xf32>
      %183 = math.exp %182 : vector<8x8xf32>
      %cst_94 = arith.constant dense<0.000000e+00> : vector<8xf32>
      %184 = vector.multi_reduction <add>, %183, %cst_94 [1] : vector<8x8xf32> to vector<8xf32>
      %185 = vector.shape_cast %184 : vector<8xf32> to vector<8x1xf32>
      %186 = tpu.reciprocal %185 {approx = true} : vector<8x1xf32> -> vector<8x1xf32>
      %187 = vector.broadcast %186 : vector<8x1xf32> to vector<8x8xf32>
      %188 = arith.mulf %183, %187 : vector<8x8xf32>
      %189 = arith.truncf %188 : vector<8x8xf32> to vector<8x8xbf16>
      %cst_95 = arith.constant dense<0.000000e+00> : vector<8x8xf32>
      %190 = tpu.matmul %189, %173, %cst_95 {dimension_numbers = #tpu.dot_dimension_numbers<[1], [0], [0], [1], [0, 0, 1, 1], [], []>} : vector<8x8xbf16>, vector<8x8xbf16>, vector<8x8xf32> -> vector<8x8xf32>
      %191 = vector.extract_strided_slice %162 {offsets = [0, 8], sizes = [8, 8], strides = [1, 1]} : vector<8x32xbf16> to vector<8x8xbf16>
      %192 = vector.extract_strided_slice %166 {offsets = [0, 8], sizes = [8, 8], strides = [1, 1]} : vector<8x32xbf16> to vector<8x8xbf16>
      %193 = vector.extract_strided_slice %170 {offsets = [0, 8], sizes = [8, 8], strides = [1, 1]} : vector<8x32xbf16> to vector<8x8xbf16>
      %cst_96 = arith.constant dense<0.000000e+00> : vector<8x8xf32>
      %194 = tpu.matmul %191, %192, %cst_96 {dimension_numbers = #tpu.dot_dimension_numbers<[1], [1], [0], [0], [0, 0, 1, 0], [], []>} : vector<8x8xbf16>, vector<8x8xbf16>, vector<8x8xf32> -> vector<8x8xf32>
      %cst_97 = arith.constant 0.353553385 : f32
      %195 = vector.broadcast %cst_97 : f32 to vector<8x8xf32>
      %196 = arith.mulf %194, %195 : vector<8x8xf32>
      %197 = vector.broadcast %20 : vector<1x8xf32> to vector<8x8xf32>
      %198 = arith.addf %196, %197 : vector<8x8xf32>
      %cst_98 = arith.constant dense<0xFF800000> : vector<8xf32>
      %199 = vector.multi_reduction <maximumf>, %198, %cst_98 [1] : vector<8x8xf32> to vector<8xf32>
      %200 = vector.shape_cast %199 : vector<8xf32> to vector<8x1xf32>
      %201 = vector.broadcast %200 : vector<8x1xf32> to vector<8x8xf32>
      %202 = arith.subf %198, %201 : vector<8x8xf32>
      %203 = math.exp %202 : vector<8x8xf32>
      %cst_99 = arith.constant dense<0.000000e+00> : vector<8xf32>
      %204 = vector.multi_reduction <add>, %203, %cst_99 [1] : vector<8x8xf32> to vector<8xf32>
      %205 = vector.shape_cast %204 : vector<8xf32> to vector<8x1xf32>
      %206 = tpu.reciprocal %205 {approx = true} : vector<8x1xf32> -> vector<8x1xf32>
      %207 = vector.broadcast %206 : vector<8x1xf32> to vector<8x8xf32>
      %208 = arith.mulf %203, %207 : vector<8x8xf32>
      %209 = arith.truncf %208 : vector<8x8xf32> to vector<8x8xbf16>
      %cst_100 = arith.constant dense<0.000000e+00> : vector<8x8xf32>
      %210 = tpu.matmul %209, %193, %cst_100 {dimension_numbers = #tpu.dot_dimension_numbers<[1], [0], [0], [1], [0, 0, 1, 1], [], []>} : vector<8x8xbf16>, vector<8x8xbf16>, vector<8x8xf32> -> vector<8x8xf32>
      %211 = vector.extract_strided_slice %162 {offsets = [0, 16], sizes = [8, 8], strides = [1, 1]} : vector<8x32xbf16> to vector<8x8xbf16>
      %212 = vector.extract_strided_slice %166 {offsets = [0, 16], sizes = [8, 8], strides = [1, 1]} : vector<8x32xbf16> to vector<8x8xbf16>
      %213 = vector.extract_strided_slice %170 {offsets = [0, 16], sizes = [8, 8], strides = [1, 1]} : vector<8x32xbf16> to vector<8x8xbf16>
      %cst_101 = arith.constant dense<0.000000e+00> : vector<8x8xf32>
      %214 = tpu.matmul %211, %212, %cst_101 {dimension_numbers = #tpu.dot_dimension_numbers<[1], [1], [0], [0], [0, 0, 1, 0], [], []>} : vector<8x8xbf16>, vector<8x8xbf16>, vector<8x8xf32> -> vector<8x8xf32>
      %cst_102 = arith.constant 0.353553385 : f32
      %215 = vector.broadcast %cst_102 : f32 to vector<8x8xf32>
      %216 = arith.mulf %214, %215 : vector<8x8xf32>
      %217 = vector.broadcast %20 : vector<1x8xf32> to vector<8x8xf32>
      %218 = arith.addf %216, %217 : vector<8x8xf32>
      %cst_103 = arith.constant dense<0xFF800000> : vector<8xf32>
      %219 = vector.multi_reduction <maximumf>, %218, %cst_103 [1] : vector<8x8xf32> to vector<8xf32>
      %220 = vector.shape_cast %219 : vector<8xf32> to vector<8x1xf32>
      %221 = vector.broadcast %220 : vector<8x1xf32> to vector<8x8xf32>
      %222 = arith.subf %218, %221 : vector<8x8xf32>
      %223 = math.exp %222 : vector<8x8xf32>
      %cst_104 = arith.constant dense<0.000000e+00> : vector<8xf32>
      %224 = vector.multi_reduction <add>, %223, %cst_104 [1] : vector<8x8xf32> to vector<8xf32>
      %225 = vector.shape_cast %224 : vector<8xf32> to vector<8x1xf32>
      %226 = tpu.reciprocal %225 {approx = true} : vector<8x1xf32> -> vector<8x1xf32>
      %227 = vector.broadcast %226 : vector<8x1xf32> to vector<8x8xf32>
      %228 = arith.mulf %223, %227 : vector<8x8xf32>
      %229 = arith.truncf %228 : vector<8x8xf32> to vector<8x8xbf16>
      %cst_105 = arith.constant dense<0.000000e+00> : vector<8x8xf32>
      %230 = tpu.matmul %229, %213, %cst_105 {dimension_numbers = #tpu.dot_dimension_numbers<[1], [0], [0], [1], [0, 0, 1, 1], [], []>} : vector<8x8xbf16>, vector<8x8xbf16>, vector<8x8xf32> -> vector<8x8xf32>
      %231 = vector.extract_strided_slice %162 {offsets = [0, 24], sizes = [8, 8], strides = [1, 1]} : vector<8x32xbf16> to vector<8x8xbf16>
      %232 = vector.extract_strided_slice %166 {offsets = [0, 24], sizes = [8, 8], strides = [1, 1]} : vector<8x32xbf16> to vector<8x8xbf16>
      %233 = vector.extract_strided_slice %170 {offsets = [0, 24], sizes = [8, 8], strides = [1, 1]} : vector<8x32xbf16> to vector<8x8xbf16>
      %cst_106 = arith.constant dense<0.000000e+00> : vector<8x8xf32>
      %234 = tpu.matmul %231, %232, %cst_106 {dimension_numbers = #tpu.dot_dimension_numbers<[1], [1], [0], [0], [0, 0, 1, 0], [], []>} : vector<8x8xbf16>, vector<8x8xbf16>, vector<8x8xf32> -> vector<8x8xf32>
      %cst_107 = arith.constant 0.353553385 : f32
      %235 = vector.broadcast %cst_107 : f32 to vector<8x8xf32>
      %236 = arith.mulf %234, %235 : vector<8x8xf32>
      %237 = vector.broadcast %20 : vector<1x8xf32> to vector<8x8xf32>
      %238 = arith.addf %236, %237 : vector<8x8xf32>
      %cst_108 = arith.constant dense<0xFF800000> : vector<8xf32>
      %239 = vector.multi_reduction <maximumf>, %238, %cst_108 [1] : vector<8x8xf32> to vector<8xf32>
      %240 = vector.shape_cast %239 : vector<8xf32> to vector<8x1xf32>
      %241 = vector.broadcast %240 : vector<8x1xf32> to vector<8x8xf32>
      %242 = arith.subf %238, %241 : vector<8x8xf32>
      %243 = math.exp %242 : vector<8x8xf32>
      %cst_109 = arith.constant dense<0.000000e+00> : vector<8xf32>
      %244 = vector.multi_reduction <add>, %243, %cst_109 [1] : vector<8x8xf32> to vector<8xf32>
      %245 = vector.shape_cast %244 : vector<8xf32> to vector<8x1xf32>
      %246 = tpu.reciprocal %245 {approx = true} : vector<8x1xf32> -> vector<8x1xf32>
      %247 = vector.broadcast %246 : vector<8x1xf32> to vector<8x8xf32>
      %248 = arith.mulf %243, %247 : vector<8x8xf32>
      %249 = arith.truncf %248 : vector<8x8xf32> to vector<8x8xbf16>
      %cst_110 = arith.constant dense<0.000000e+00> : vector<8x8xf32>
      %250 = tpu.matmul %249, %233, %cst_110 {dimension_numbers = #tpu.dot_dimension_numbers<[1], [0], [0], [1], [0, 0, 1, 1], [], []>} : vector<8x8xbf16>, vector<8x8xbf16>, vector<8x8xf32> -> vector<8x8xf32>
      %251 = tpu.concatenate %190, %210, %230, %250 in 1 : vector<8x8xf32>, vector<8x8xf32>, vector<8x8xf32>, vector<8x8xf32> -> vector<8x32xf32>
      %252 = arith.truncf %251 : vector<8x32xf32> to vector<8x32xbf16>
      %cst_111 = arith.constant dense<0.000000e+00> : vector<8x32xf32>
      %253 = tpu.matmul %252, %155, %cst_111 {dimension_numbers = #tpu.dot_dimension_numbers<[1], [0], [0], [1], [0, 0, 1, 1], [], []>} : vector<8x32xbf16>, vector<32x32xbf16>, vector<8x32xf32> -> vector<8x32xf32>
      %254 = vector.broadcast %156 : vector<1x32xf32> to vector<8x32xf32>
      %255 = arith.addf %253, %254 : vector<8x32xf32>
      %256 = arith.addf %255, %148 : vector<8x32xf32>
      %c0_112 = arith.constant 0 : index
      %c0_113 = arith.constant 0 : index
      %257 = vector.load %arg24[%c0_112, %c0_113] : memref<1x32xf32, #tpu.memory_space<vmem>>, vector<1x32xf32>
      %c0_114 = arith.constant 0 : index
      %c0_115 = arith.constant 0 : index
      %258 = vector.load %arg25[%c0_114, %c0_115] : memref<1x32xf32, #tpu.memory_space<vmem>>, vector<1x32xf32>
      %cst_116 = arith.constant dense<0.000000e+00> : vector<8xf32>
      %259 = vector.multi_reduction <add>, %256, %cst_116 [1] : vector<8x32xf32> to vector<8xf32>
      %260 = vector.shape_cast %259 : vector<8xf32> to vector<8x1xf32>
      %cst_117 = arith.constant 3.200000e+01 : f32
      %261 = vector.broadcast %cst_117 : f32 to vector<8x1xf32>
      %262 = arith.divf %260, %261 : vector<8x1xf32>
      %263 = vector.broadcast %262 : vector<8x1xf32> to vector<8x32xf32>
      %264 = arith.subf %256, %263 : vector<8x32xf32>
      %265 = arith.mulf %264, %264 : vector<8x32xf32>
      %cst_118 = arith.constant dense<0.000000e+00> : vector<8xf32>
      %266 = vector.multi_reduction <add>, %265, %cst_118 [1] : vector<8x32xf32> to vector<8xf32>
      %267 = vector.shape_cast %266 : vector<8xf32> to vector<8x1xf32>
      %cst_119 = arith.constant 3.200000e+01 : f32
      %268 = vector.broadcast %cst_119 : f32 to vector<8x1xf32>
      %269 = arith.divf %267, %268 : vector<8x1xf32>
      %270 = vector.broadcast %262 : vector<8x1xf32> to vector<8x32xf32>
      %271 = arith.subf %256, %270 : vector<8x32xf32>
      %cst_120 = arith.constant 9.99999996E-13 : f32
      %272 = vector.broadcast %cst_120 : f32 to vector<8x1xf32>
      %273 = arith.addf %269, %272 : vector<8x1xf32>
      %274 = math.rsqrt %273 : vector<8x1xf32>
      %275 = vector.broadcast %274 : vector<8x1xf32> to vector<8x32xf32>
      %276 = arith.mulf %271, %275 : vector<8x32xf32>
      %277 = vector.broadcast %257 : vector<1x32xf32> to vector<8x32xf32>
      %278 = arith.mulf %277, %276 : vector<8x32xf32>
      %279 = vector.broadcast %258 : vector<1x32xf32> to vector<8x32xf32>
      %280 = arith.addf %278, %279 : vector<8x32xf32>
      %281 = arith.truncf %280 : vector<8x32xf32> to vector<8x32xbf16>
      %c0_121 = arith.constant 0 : index
      %c0_122 = arith.constant 0 : index
      %282 = vector.load %arg26[%c0_121, %c0_122] : memref<32x64xbf16, #tpu.memory_space<vmem>>, vector<32x64xbf16>
      %cst_123 = arith.constant dense<0.000000e+00> : vector<8x64xf32>
      %283 = tpu.matmul %281, %282, %cst_123 {dimension_numbers = #tpu.dot_dimension_numbers<[1], [0], [0], [1], [0, 0, 1, 1], [], []>} : vector<8x32xbf16>, vector<32x64xbf16>, vector<8x64xf32> -> vector<8x64xf32>
      %c0_124 = arith.constant 0 : index
      %c0_125 = arith.constant 0 : index
      %284 = vector.load %arg27[%c0_124, %c0_125] : memref<1x64xf32, #tpu.memory_space<vmem>>, vector<1x64xf32>
      %285 = vector.broadcast %284 : vector<1x64xf32> to vector<8x64xf32>
      %286 = arith.addf %283, %285 : vector<8x64xf32>
      %cst_126 = arith.constant 0.000000e+00 : f32
      %287 = vector.broadcast %cst_126 : f32 to vector<8x64xf32>
      %288 = arith.maximumf %286, %287 : vector<8x64xf32>
      %289 = arith.truncf %288 : vector<8x64xf32> to vector<8x64xbf16>
      %c0_127 = arith.constant 0 : index
      %c0_128 = arith.constant 0 : index
      %290 = vector.load %arg28[%c0_127, %c0_128] : memref<64x32xbf16, #tpu.memory_space<vmem>>, vector<64x32xbf16>
      %cst_129 = arith.constant dense<0.000000e+00> : vector<8x32xf32>
      %291 = tpu.matmul %289, %290, %cst_129 {dimension_numbers = #tpu.dot_dimension_numbers<[1], [0], [0], [1], [0, 0, 1, 1], [], []>} : vector<8x64xbf16>, vector<64x32xbf16>, vector<8x32xf32> -> vector<8x32xf32>
      %c0_130 = arith.constant 0 : index
      %c0_131 = arith.constant 0 : index
      %292 = vector.load %arg29[%c0_130, %c0_131] : memref<1x32xf32, #tpu.memory_space<vmem>>, vector<1x32xf32>
      %293 = vector.broadcast %292 : vector<1x32xf32> to vector<8x32xf32>
      %294 = arith.addf %291, %293 : vector<8x32xf32>
      %295 = arith.addf %294, %280 : vector<8x32xf32>
      %c0_132 = arith.constant 0 : index
      %c0_133 = arith.constant 0 : index
      %296 = vector.load %arg30[%c0_132, %c0_133] : memref<1x32xf32, #tpu.memory_space<vmem>>, vector<1x32xf32>
      %c0_134 = arith.constant 0 : index
      %c0_135 = arith.constant 0 : index
      %297 = vector.load %arg31[%c0_134, %c0_135] : memref<1x32xf32, #tpu.memory_space<vmem>>, vector<1x32xf32>
      %cst_136 = arith.constant dense<0.000000e+00> : vector<8xf32>
      %298 = vector.multi_reduction <add>, %295, %cst_136 [1] : vector<8x32xf32> to vector<8xf32>
      %299 = vector.shape_cast %298 : vector<8xf32> to vector<8x1xf32>
      %cst_137 = arith.constant 3.200000e+01 : f32
      %300 = vector.broadcast %cst_137 : f32 to vector<8x1xf32>
      %301 = arith.divf %299, %300 : vector<8x1xf32>
      %302 = vector.broadcast %301 : vector<8x1xf32> to vector<8x32xf32>
      %303 = arith.subf %295, %302 : vector<8x32xf32>
      %304 = arith.mulf %303, %303 : vector<8x32xf32>
      %cst_138 = arith.constant dense<0.000000e+00> : vector<8xf32>
      %305 = vector.multi_reduction <add>, %304, %cst_138 [1] : vector<8x32xf32> to vector<8xf32>
      %306 = vector.shape_cast %305 : vector<8xf32> to vector<8x1xf32>
      %cst_139 = arith.constant 3.200000e+01 : f32
      %307 = vector.broadcast %cst_139 : f32 to vector<8x1xf32>
      %308 = arith.divf %306, %307 : vector<8x1xf32>
      %309 = vector.broadcast %301 : vector<8x1xf32> to vector<8x32xf32>
      %310 = arith.subf %295, %309 : vector<8x32xf32>
      %cst_140 = arith.constant 9.99999996E-13 : f32
      %311 = vector.broadcast %cst_140 : f32 to vector<8x1xf32>
      %312 = arith.addf %308, %311 : vector<8x1xf32>
      %313 = math.rsqrt %312 : vector<8x1xf32>
      %314 = vector.broadcast %313 : vector<8x1xf32> to vector<8x32xf32>
      %315 = arith.mulf %310, %314 : vector<8x32xf32>
      %316 = vector.broadcast %296 : vector<1x32xf32> to vector<8x32xf32>
      %317 = arith.mulf %316, %315 : vector<8x32xf32>
      %318 = vector.broadcast %297 : vector<1x32xf32> to vector<8x32xf32>
      %319 = arith.addf %317, %318 : vector<8x32xf32>
      %c0_141 = arith.constant 0 : index
      %c0_142 = arith.constant 0 : index
      %320 = vector.load %arg35[%c0_141, %c0_142] : memref<8x32xf32, #tpu.memory_space<vmem>>, vector<8x32xf32>
      tpu.vector_store %arg35[%c0_141, %c0_142], %319 {strides = array<i32>} : memref<8x32xf32, #tpu.memory_space<vmem>>, vector<8x32xf32>,
    } else {
    }
    %c0 = arith.constant 0 : index
    %c0_1 = arith.constant 0 : index
    %3 = vector.load %arg35[%c0, %c0_1] : memref<8x32xf32, #tpu.memory_space<vmem>>, vector<8x32xf32>
    %4 = arith.truncf %3 : vector<8x32xf32> to vector<8x32xbf16>
    %c0_2 = arith.constant 0 : index
    %c0_3 = arith.constant 0 : index
    %5 = vector.load %arg32[%c0_2, %c0_3] : memref<32x128xbf16, #tpu.memory_space<vmem>>, vector<32x128xbf16>
    %cst = arith.constant dense<0.000000e+00> : vector<8x128xf32>
    %6 = tpu.matmul %4, %5, %cst {dimension_numbers = #tpu.dot_dimension_numbers<[1], [0], [0], [1], [0, 0, 1, 1], [], []>} : vector<8x32xbf16>, vector<32x128xbf16>, vector<8x128xf32> -> vector<8x128xf32>
    %c0_4 = arith.constant 0 : index
    %c0_5 = arith.constant 0 : index
    %7 = vector.load %arg33[%c0_4, %c0_5] : memref<1x128xf32, #tpu.memory_space<vmem>>, vector<1x128xf32>
    %8 = vector.broadcast %7 : vector<1x128xf32> to vector<8x128xf32>
    %9 = arith.addf %6, %8 : vector<8x128xf32>
    %c0_6 = arith.constant 0 : index
    %c0_7 = arith.constant 0 : index
    %c0_8 = arith.constant 0 : index
    %10 = vector.load %arg34[%c0_6, %c0_7, %c0_8] : memref<1x8x128xf32, #tpu.memory_space<vmem>>, vector<1x8x128xf32>
    %11 = vector.shape_cast %10 : vector<1x8x128xf32> to vector<8x128xf32>
    %12 = vector.shape_cast %9 : vector<8x128xf32> to vector<1x8x128xf32>
    tpu.vector_store %arg34[%c0_6, %c0_7, %c0_8], %12 {strides = array<i32>} : memref<1x8x128xf32, #tpu.memory_space<vmem>>, vector<1x8x128xf32>,
    return
  }
  func.func @transform_0(%arg0: i32, %arg1: i32) -> (i32, i32, i32) {
    %c0_i32 = arith.constant 0 : i32
    %c0_i32_0 = arith.constant 0 : i32
    %c0_i32_1 = arith.constant 0 : i32
    return %arg0, %c0_i32, %c0_i32_0 : i32, i32, i32
  }
  func.func @transform_1(%arg0: i32, %arg1: i32) -> (i32, i32, i32) {
    %c0_i32 = arith.constant 0 : i32
    %c0_i32_0 = arith.constant 0 : i32
    %c0_i32_1 = arith.constant 0 : i32
    return %arg0, %c0_i32, %c0_i32_0 : i32, i32, i32
  }
  func.func @transform_2(%arg0: i32, %arg1: i32) -> (i32, i32, i32, i32) {
    %c0_i32 = arith.constant 0 : i32
    %c0_i32_0 = arith.constant 0 : i32
    %c0_i32_1 = arith.constant 0 : i32
    %c0_i32_2 = arith.constant 0 : i32
    return %arg0, %c0_i32, %c0_i32_0, %c0_i32_1 : i32, i32, i32, i32
  }
  func.func @transform_3(%arg0: i32, %arg1: i32) -> (i32, i32, i32, i32) {
    %c0_i32 = arith.constant 0 : i32
    %c0_i32_0 = arith.constant 0 : i32
    %c0_i32_1 = arith.constant 0 : i32
    %c0_i32_2 = arith.constant 0 : i32
    return %arg0, %c0_i32, %c0_i32_0, %c0_i32_1 : i32, i32, i32, i32
  }
  func.func @transform_4(%arg0: i32, %arg1: i32) -> (i32, i32) {
    %c0_i32 = arith.constant 0 : i32
    %c0_i32_0 = arith.constant 0 : i32
    %c0_i32_1 = arith.constant 0 : i32
    return %c0_i32, %c0_i32_0 : i32, i32
  }
  func.func @transform_5(%arg0: i32, %arg1: i32) -> (i32, i32) {
    %c0_i32 = arith.constant 0 : i32
    %c0_i32_0 = arith.constant 0 : i32
    %c0_i32_1 = arith.constant 0 : i32
    return %c0_i32, %c0_i32_0 : i32, i32
  }
  func.func @transform_6(%arg0: i32, %arg1: i32) -> (i32, i32) {
    %c0_i32 = arith.constant 0 : i32
    %c0_i32_0 = arith.constant 0 : i32
    %c0_i32_1 = arith.constant 0 : i32
    return %c0_i32, %c0_i32_0 : i32, i32
  }
  func.func @transform_7(%arg0: i32, %arg1: i32) -> (i32, i32) {
    %c0_i32 = arith.constant 0 : i32
    %c0_i32_0 = arith.constant 0 : i32
    %c0_i32_1 = arith.constant 0 : i32
    return %c0_i32, %c0_i32_0 : i32, i32
  }
  func.func @transform_8(%arg0: i32, %arg1: i32) -> (i32, i32) {
    %c0_i32 = arith.constant 0 : i32
    %c0_i32_0 = arith.constant 0 : i32
    %c0_i32_1 = arith.constant 0 : i32
    return %c0_i32, %c0_i32_0 : i32, i32
  }
  func.func @transform_9(%arg0: i32, %arg1: i32) -> (i32, i32) {
    %c0_i32 = arith.constant 0 : i32
    %c0_i32_0 = arith.constant 0 : i32
    %c0_i32_1 = arith.constant 0 : i32
    return %c0_i32, %c0_i32_0 : i32, i32
  }
  func.func @transform_10(%arg0: i32, %arg1: i32) -> (i32, i32) {
    %c0_i32 = arith.constant 0 : i32
    %c0_i32_0 = arith.constant 0 : i32
    %c0_i32_1 = arith.constant 0 : i32
    return %c0_i32, %c0_i32_0 : i32, i32
  }
  func.func @transform_11(%arg0: i32, %arg1: i32) -> (i32, i32) {
    %c0_i32 = arith.constant 0 : i32
    %c0_i32_0 = arith.constant 0 : i32
    %c0_i32_1 = arith.constant 0 : i32
    return %c0_i32, %c0_i32_0 : i32, i32
  }
  func.func @transform_12(%arg0: i32, %arg1: i32) -> (i32, i32) {
    %c0_i32 = arith.constant 0 : i32
    %c0_i32_0 = arith.constant 0 : i32
    %c0_i32_1 = arith.constant 0 : i32
    return %c0_i32, %c0_i32_0 : i32, i32
  }
  func.func @transform_13(%arg0: i32, %arg1: i32) -> (i32, i32) {
    %c0_i32 = arith.constant 0 : i32
    %c0_i32_0 = arith.constant 0 : i32
    %c0_i32_1 = arith.constant 0 : i32
    return %c0_i32, %c0_i32_0 : i32, i32
  }
  func.func @transform_14(%arg0: i32, %arg1: i32) -> (i32, i32) {
    %c0_i32 = arith.constant 0 : i32
    %c0_i32_0 = arith.constant 0 : i32
    %c0_i32_1 = arith.constant 0 : i32
    return %c0_i32, %c0_i32_0 : i32, i32
  }
  func.func @transform_15(%arg0: i32, %arg1: i32) -> (i32, i32) {
    %c0_i32 = arith.constant 0 : i32
    %c0_i32_0 = arith.constant 0 : i32
    %c0_i32_1 = arith.constant 0 : i32
    return %c0_i32, %c0_i32_0 : i32, i32
  }
  func.func @transform_16(%arg0: i32, %arg1: i32) -> (i32, i32) {
    %c0_i32 = arith.constant 0 : i32
    %c0_i32_0 = arith.constant 0 : i32
    %c0_i32_1 = arith.constant 0 : i32
    return %c0_i32, %c0_i32_0 : i32, i32
  }
  func.func @transform_17(%arg0: i32, %arg1: i32) -> (i32, i32) {
    %c0_i32 = arith.constant 0 : i32
    %c0_i32_0 = arith.constant 0 : i32
    %c0_i32_1 = arith.constant 0 : i32
    return %c0_i32, %c0_i32_0 : i32, i32
  }
  func.func @transform_18(%arg0: i32, %arg1: i32) -> (i32, i32) {
    %c0_i32 = arith.constant 0 : i32
    %c0_i32_0 = arith.constant 0 : i32
    %c0_i32_1 = arith.constant 0 : i32
    return %c0_i32, %c0_i32_0 : i32, i32
  }
  func.func @transform_19(%arg0: i32, %arg1: i32) -> (i32, i32) {
    %c0_i32 = arith.constant 0 : i32
    %c0_i32_0 = arith.constant 0 : i32
    %c0_i32_1 = arith.constant 0 : i32
    return %c0_i32, %c0_i32_0 : i32, i32
  }
  func.func @transform_20(%arg0: i32, %arg1: i32) -> (i32, i32) {
    %c0_i32 = arith.constant 0 : i32
    %c0_i32_0 = arith.constant 0 : i32
    %c0_i32_1 = arith.constant 0 : i32
    return %c0_i32, %c0_i32_0 : i32, i32
  }
  func.func @transform_21(%arg0: i32, %arg1: i32) -> (i32, i32) {
    %c0_i32 = arith.constant 0 : i32
    %c0_i32_0 = arith.constant 0 : i32
    %c0_i32_1 = arith.constant 0 : i32
    return %c0_i32, %c0_i32_0 : i32, i32
  }
  func.func @transform_22(%arg0: i32, %arg1: i32) -> (i32, i32) {
    %c0_i32 = arith.constant 0 : i32
    %c0_i32_0 = arith.constant 0 : i32
    %c0_i32_1 = arith.constant 0 : i32
    return %c0_i32, %c0_i32_0 : i32, i32
  }
  func.func @transform_23(%arg0: i32, %arg1: i32) -> (i32, i32) {
    %c0_i32 = arith.constant 0 : i32
    %c0_i32_0 = arith.constant 0 : i32
    %c0_i32_1 = arith.constant 0 : i32
    return %c0_i32, %c0_i32_0 : i32, i32
  }
  func.func @transform_24(%arg0: i32, %arg1: i32) -> (i32, i32) {
    %c0_i32 = arith.constant 0 : i32
    %c0_i32_0 = arith.constant 0 : i32
    %c0_i32_1 = arith.constant 0 : i32
    return %c0_i32, %c0_i32_0 : i32, i32
  }
  func.func @transform_25(%arg0: i32, %arg1: i32) -> (i32, i32) {
    %c0_i32 = arith.constant 0 : i32
    %c0_i32_0 = arith.constant 0 : i32
    %c0_i32_1 = arith.constant 0 : i32
    return %c0_i32, %c0_i32_0 : i32, i32
  }
  func.func @transform_26(%arg0: i32, %arg1: i32) -> (i32, i32) {
    %c0_i32 = arith.constant 0 : i32
    %c0_i32_0 = arith.constant 0 : i32
    %c0_i32_1 = arith.constant 0 : i32
    return %c0_i32, %c0_i32_0 : i32, i32
  }
  func.func @transform_27(%arg0: i32, %arg1: i32) -> (i32, i32) {
    %c0_i32 = arith.constant 0 : i32
    %c0_i32_0 = arith.constant 0 : i32
    %c0_i32_1 = arith.constant 0 : i32
    return %c0_i32, %c0_i32_0 : i32, i32
  }
  func.func @transform_28(%arg0: i32, %arg1: i32) -> (i32, i32) {
    %c0_i32 = arith.constant 0 : i32
    %c0_i32_0 = arith.constant 0 : i32
    %c0_i32_1 = arith.constant 0 : i32
    return %c0_i32, %c0_i32_0 : i32, i32
  }
  func.func @transform_29(%arg0: i32, %arg1: i32) -> (i32, i32) {
    %c0_i32 = arith.constant 0 : i32
    %c0_i32_0 = arith.constant 0 : i32
    %c0_i32_1 = arith.constant 0 : i32
    return %c0_i32, %c0_i32_0 : i32, i32
  }
  func.func @transform_30(%arg0: i32, %arg1: i32) -> (i32, i32) {
    %c0_i32 = arith.constant 0 : i32
    %c0_i32_0 = arith.constant 0 : i32
    return %c0_i32, %arg1 : i32, i32
  }
  func.func @transform_31(%arg0: i32, %arg1: i32) -> (i32, i32) {
    %c0_i32 = arith.constant 0 : i32
    %c0_i32_0 = arith.constant 0 : i32
    return %c0_i32, %arg1 : i32, i32
  }
  func.func @transform_32(%arg0: i32, %arg1: i32) -> (i32, i32, i32) {
    %c0_i32 = arith.constant 0 : i32
    %c0_i32_0 = arith.constant 0 : i32
    return %arg0, %c0_i32, %arg1 : i32, i32, i32
  }
}

</mosaic_0001>

<llo_original>
// kernel: tpu_custom_call.1
$region0: #{tpu_custom_call.1}
  #allocation0 [shape = 'u32[]', space=smem, size = 0x4, offset = 0x4, fixed_abs, tag = 'smem constant byte address 0x4 - core index']
  #allocation1 [shape = 'u32[72,128]{1,0:T(1,128)}', space=vmem, size = 0x9000, scoped, tag = 'internal scratch']
  #allocation2 [shape = 'f32[8,32]{1,0:T(8,128)}', space=vmem, size = 0x1000, scoped, tag = 'scratch operand']
  %s0 = inlined_call_operand.smem [shape: u32[33], index: -1, kind: input, shape index: {}]
  %s1 = sld [smem:[%s0]]
  %s2 = scalar_lea.smem %s0, 1
  %s3 = sld [smem:[%s2]]
  %s4 = scalar_lea.smem %s0, 2
  %s5 = sld [smem:[%s4]]
  %s6 = scalar_lea.smem %s0, 3
  %s7 = sld [smem:[%s6]]
  %s8 = scalar_lea.smem %s0, 4
  %s9 = sld [smem:[%s8]]
  %s10 = scalar_lea.smem %s0, 5
  %s11 = sld [smem:[%s10]]
  %s12 = scalar_lea.smem %s0, 6
  %s13 = sld [smem:[%s12]]
  %s14 = scalar_lea.smem %s0, 7
  %s15 = sld [smem:[%s14]]
  %s16 = scalar_lea.smem %s0, 8
  %s17 = sld [smem:[%s16]]
  %s18 = scalar_lea.smem %s0, 9
  %s19 = sld [smem:[%s18]]
  %s20 = scalar_lea.smem %s0, 10
  %s21 = sld [smem:[%s20]]
  %s22 = scalar_lea.smem %s0, 11
  %s23 = sld [smem:[%s22]]
  %s24 = scalar_lea.smem %s0, 12
  %s25 = sld [smem:[%s24]]
  %s26 = scalar_lea.smem %s0, 13
  %s27 = sld [smem:[%s26]]
  %s28 = scalar_lea.smem %s0, 14
  %s29 = sld [smem:[%s28]]
  %s30 = scalar_lea.smem %s0, 15
  %s31 = sld [smem:[%s30]]
  %s32 = scalar_lea.smem %s0, 16
  %s33 = sld [smem:[%s32]]
  %s34 = scalar_lea.smem %s0, 17
  %s35 = sld [smem:[%s34]]
  %s36 = scalar_lea.smem %s0, 18
  %s37 = sld [smem:[%s36]]
  %s38 = scalar_lea.smem %s0, 19
  %s39 = sld [smem:[%s38]]
  %s40 = scalar_lea.smem %s0, 20
  %s41 = sld [smem:[%s40]]
  %s42 = scalar_lea.smem %s0, 21
  %s43 = sld [smem:[%s42]]
  %s44 = scalar_lea.smem %s0, 22
  %s45 = sld [smem:[%s44]]
  %s46 = scalar_lea.smem %s0, 23
  %s47 = sld [smem:[%s46]]
  %s48 = scalar_lea.smem %s0, 24
  %s49 = sld [smem:[%s48]]
  %s50 = scalar_lea.smem %s0, 25
  %s51 = sld [smem:[%s50]]
  %s52 = scalar_lea.smem %s0, 26
  %s53 = sld [smem:[%s52]]
  %s54 = scalar_lea.smem %s0, 27
  %s55 = sld [smem:[%s54]]
  %s56 = scalar_lea.smem %s0, 28
  %s57 = sld [smem:[%s56]]
  %s58 = scalar_lea.smem %s0, 29
  %s59 = sld [smem:[%s58]]
  %s60 = scalar_lea.smem %s0, 30
  %s61 = sld [smem:[%s60]]
  %s62 = scalar_lea.smem %s0, 31
  %s63 = sld [smem:[%s62]]
  %s64 = scalar_lea.smem %s0, 32
  %s65 = sld [smem:[%s64]]
  %s66 = sld [smem:[#allocation0]]
  $region233: #{tpu_custom_call.1} parent=0
    _
  %s68 = ssub.s32 1, %s66
  %s69 = scalar_select 0, %s68, %s66
  $region1: #{tpu_custom_call.1} parent=0
    #allocation3 [shape = 'u8[8192]{0}', space=vmem, size = 0x2000, scoped, tag = 'input window, operand 4, single buffered']
    #allocation4 [shape = 's32[2]{0}', space=sflag, size = 0x8, scoped, tag = 'scoped memory for tpu_custom_call.1']
    #allocation5 [shape = 's32[2]{0}', space=sflag, size = 0x8, scoped, tag = 'scoped memory for tpu_custom_call.1']
    #allocation6 [shape = 'u8[8192]{0}', space=vmem, size = 0x2000, scoped, tag = 'input window, operand 6, single buffered']
    #allocation7 [shape = 's32[1]{0}', space=sflag, size = 0x4, scoped, tag = 'scoped memory for tpu_custom_call.1']
    #allocation8 [shape = 'u8[8192]{0}', space=vmem, size = 0x2000, scoped, tag = 'input window, operand 8, single buffered']
    #allocation9 [shape = 'u8[8192]{0}', space=vmem, size = 0x2000, scoped, tag = 'input window, operand 10, single buffered']
    #allocation10 [shape = 's32[1]{0}', space=sflag, size = 0x4, scoped, tag = 'scoped memory for tpu_custom_call.1']
    #allocation11 [shape = 'u8[8192]{0}', space=vmem, size = 0x2000, scoped, tag = 'input window, operand 14, single buffered']
    #allocation12 [shape = 'u8[512]{0}', space=vmem, size = 0x400, scoped, tag = 'input window, operand 15, single buffered']
    #allocation13 [shape = 's32[1]{0}', space=sflag, size = 0x4, scoped, tag = 'scoped memory for tpu_custom_call.1']
    #allocation14 [shape = 'u8[8192]{0}', space=vmem, size = 0x2000, scoped, tag = 'input window, operand 16, single buffered']
    #allocation15 [shape = 'u8[512]{0}', space=vmem, size = 0x400, scoped, tag = 'input window, operand 17, single buffered']
    #allocation16 [shape = 's32[1]{0}', space=sflag, size = 0x4, scoped, tag = 'scoped memory for tpu_custom_call.1']
    #allocation17 [shape = 'u8[8192]{0}', space=vmem, size = 0x2000, scoped, tag = 'input window, operand 18, single buffered']
    #allocation18 [shape = 'u8[512]{0}', space=vmem, size = 0x400, scoped, tag = 'input window, operand 19, single buffered']
    #allocation19 [shape = 's32[1]{0}', space=sflag, size = 0x4, scoped, tag = 'scoped memory for tpu_custom_call.1']
    #allocation20 [shape = 'u8[8192]{0}', space=vmem, size = 0x2000, scoped, tag = 'input window, operand 20, single buffered']
    #allocation21 [shape = 'u8[512]{0}', space=vmem, size = 0x400, scoped, tag = 'input window, operand 21, single buffered']
    #allocation22 [shape = 's32[1]{0}', space=sflag, size = 0x4, scoped, tag = 'scoped memory for tpu_custom_call.1']
    #allocation23 [shape = 'u8[512]{0}', space=vmem, size = 0x400, scoped, tag = 'input window, operand 22, single buffered']
    #allocation24 [shape = 'u8[512]{0}', space=vmem, size = 0x400, scoped, tag = 'input window, operand 23, single buffered']
    #allocation25 [shape = 's32[1]{0}', space=sflag, size = 0x4, scoped, tag = 'scoped memory for tpu_custom_call.1']
    #allocation26 [shape = 'u8[8192]{0}', space=vmem, size = 0x2000, scoped, tag = 'input window, operand 24, single buffered']
    #allocation27 [shape = 'u8[512]{0}', space=vmem, size = 0x400, scoped, tag = 'input window, operand 25, single buffered']
    #allocation28 [shape = 's32[1]{0}', space=sflag, size = 0x4, scoped, tag = 'scoped memory for tpu_custom_call.1']
    #allocation29 [shape = 'u8[8192]{0}', space=vmem, size = 0x2000, scoped, tag = 'input window, operand 30, single buffered']
    #allocation30 [shape = 'u8[8192]{0}', space=vmem, size = 0x2000, scoped, tag = 'output window, operand 0']
    %70 = vsyncpa [#allocation4], 0
    %71 = vsyncpa [#allocation7], 0
    %72 = vsyncpa [#allocation10], 0
    %73 = vsyncpa [#allocation13], 0
    %74 = vsyncpa [#allocation16], 0
    %75 = vsyncpa [#allocation19], 0
    %76 = vsyncpa [#allocation22], 0
    %77 = vsyncpa [#allocation25], 0
    %78 = vsyncpa [#allocation28], 0
    %79 = vsyncpa [#allocation5], 0
    %s80 = scalar_lea.sflag [#allocation5], 1
    %81 = vsyncpa %s80, 0
    loop: start=0, step=1, limit=4
    $region2: #{tpu_custom_call.1} parent=1 // loop_pre_header
      _
    $region3: #{tpu_custom_call.1} parent=1 // loop_header
      %s83 = sphi 0, %s87
      %p84 = scmp.ge.s32.totalorder %s83, 4
      %s90 = sphi 0, %s102
      %s91 = sphi 0, %s98
      %s92 = sphi 0, %s90
      %s93 = sphi 0, %s91
      %s94 = sphi 0, %s92
      %s95 = sphi 0, %s93
      %s105 = sphi 0, %s107
      %s108 = sphi 0, %s105
      %s109 = sphi 0, %s108
      %s125 = sphi 0, %s109
      %s131 = sphi 0, %s133
      %s134 = sphi 0, %s131
      %s135 = sphi 0, %s134
      %s151 = sphi 0, %s135
      %s157 = sphi 0, %s159
      %s160 = sphi 0, %s157
      %s161 = sphi 0, %s160
      %s177 = sphi 0, %s161
      %s183 = sphi 0, %s185
      %s186 = sphi 0, %s183
      %s187 = sphi 0, %s186
      %s203 = sphi 0, %s187
      %s207 = sphi 0, %s207
      %s209 = sphi 0, %s207
      %s210 = sphi 0, %s209
      %s224 = sphi 0, %s210
      %s228 = sphi 0, %s228
      %s230 = sphi 0, %s228
      %s231 = sphi 0, %s230
      %s245 = sphi 0, %s231
      %s249 = sphi 0, %s249
      %s251 = sphi 0, %s249
      %s252 = sphi 0, %s251
      %s266 = sphi 0, %s252
      %s270 = sphi 0, %s270
      %s272 = sphi 0, %s270
      %s273 = sphi 0, %s272
      %s287 = sphi 0, %s273
      %s291 = sphi 0, %s291
      %s293 = sphi 0, %s291
      %s294 = sphi 0, %s293
      %s308 = sphi 0, %s294
      %s312 = sphi 0, %s312
      %s314 = sphi 0, %s312
      %s315 = sphi 0, %s314
      %s329 = sphi 0, %s315
      %s333 = sphi 0, %s333
      %s335 = sphi 0, %s333
      %s336 = sphi 0, %s335
      %s350 = sphi 0, %s336
      %s354 = sphi 0, %s354
      %s356 = sphi 0, %s354
      %s357 = sphi 0, %s356
      %s371 = sphi 0, %s357
      %s375 = sphi 0, %s375
      %s377 = sphi 0, %s375
      %s378 = sphi 0, %s377
      %s392 = sphi 0, %s378
      %s396 = sphi 0, %s396
      %s398 = sphi 0, %s396
      %s399 = sphi 0, %s398
      %s413 = sphi 0, %s399
      %s417 = sphi 0, %s417
      %s419 = sphi 0, %s417
      %s420 = sphi 0, %s419
      %s434 = sphi 0, %s420
      %s438 = sphi 0, %s438
      %s440 = sphi 0, %s438
      %s441 = sphi 0, %s440
      %s455 = sphi 0, %s441
      %s459 = sphi 0, %s459
      %s461 = sphi 0, %s459
      %s462 = sphi 0, %s461
      %s476 = sphi 0, %s462
      %s480 = sphi 0, %s480
      %s482 = sphi 0, %s480
      %s483 = sphi 0, %s482
      %s497 = sphi 0, %s483
      %s501 = sphi 0, %s501
      %s503 = sphi 0, %s501
      %s504 = sphi 0, %s503
      %s518 = sphi 0, %s504
      %s522 = sphi 0, %s522
      %s524 = sphi 0, %s522
      %s525 = sphi 0, %s524
      %s539 = sphi 0, %s525
      %s543 = sphi 0, %s543
      %s545 = sphi 0, %s543
      %s546 = sphi 0, %s545
      %s560 = sphi 0, %s546
      %s564 = sphi 0, %s564
      %s566 = sphi 0, %s564
      %s567 = sphi 0, %s566
      %s581 = sphi 0, %s567
      %s585 = sphi 0, %s585
      %s587 = sphi 0, %s585
      %s588 = sphi 0, %s587
      %s602 = sphi 0, %s588
      %s606 = sphi 0, %s606
      %s608 = sphi 0, %s606
      %s609 = sphi 0, %s608
      %s623 = sphi 0, %s609
      %s627 = sphi 0, %s627
      %s629 = sphi 0, %s627
      %s630 = sphi 0, %s629
      %s644 = sphi 0, %s630
      %s648 = sphi 0, %s648
      %s650 = sphi 0, %s648
      %s651 = sphi 0, %s650
      %s665 = sphi 0, %s651
      %s669 = sphi 0, %s669
      %s671 = sphi 0, %s669
      %s672 = sphi 0, %s671
      %s686 = sphi 0, %s672
      %s690 = sphi 0, %s690
      %s692 = sphi 0, %s690
      %s693 = sphi 0, %s692
      %s707 = sphi 0, %s693
      %s711 = sphi 0, %s711
      %s713 = sphi 0, %s711
      %s714 = sphi 0, %s713
      %s728 = sphi 0, %s714
      %s732 = sphi 0, %s732
      %s734 = sphi 0, %s732
      %s735 = sphi 0, %s734
      %s749 = sphi 0, %s735
      %s755 = sphi 0, %s757
      %s758 = sphi 0, %s755
      %s759 = sphi 0, %s758
      %s775 = sphi 0, %s759
      %s781 = sphi 0, %s783
      %s784 = sphi 0, %s781
      %s785 = sphi 0, %s784
      %s801 = sphi 0, %s785
      %s809 = sphi 0, %s811
      %s812 = sphi 0, %s809
      %s813 = sphi 0, %s812
      %s829 = sphi 0, %s813
    $region4: #{tpu_custom_call.1} parent=1 // loop_header_branch
      %86 = sbr.rel (%p84) target = $region8
    $region5: #{tpu_custom_call.1} parent=1 // loop_body
      %s88 = ssub.s32 %s83, 1
      %s89 = ssub.s32 %s83, 2
      %s96 = sadd.s32 1, %s91
      %p97 = scmp.ge.s32.totalorder %s96, 1
      %s98 = scalar_select %p97, 0, %s96
      %s99 = sadd.s32 1, %s90
      %s100 = scalar_select %p97, %s99, %s90
      %p101 = scmp.ge.s32.totalorder %s100, 2
      %s102 = scalar_select %p101, 0, %s100
      %s103 = ssub.s32 %s90, %s102
      %p104 = scmp.eq.s32.totalorder %s103, 0
      %s106 = sadd.s32 %s105, 1
      %s107 = scalar_select %p104, %s105, %s106
      %p110 = pneg %p104
      %p111 = scmp.eq.s32.totalorder %s83, 1
      %p112 = por %p110, %p111
      %p113 = scmp.ne.s32.totalorder %s105, %s108
      %p114 = scmp.eq.s32.totalorder %s83, 0
      %p115 = por %p113, %p114
      %p116 = scmp.ne.s32.totalorder %s105, %s108
      %p117 = scmp.eq.s32.totalorder %s88, 1
      %p118 = por %p116, %p117
      %p119 = scmp.ne.s32.totalorder %s108, %s109
      %p120 = scmp.eq.s32.totalorder %s88, 0
      %p121 = por %p119, %p120
      %p122 = scmp.ne.s32.totalorder %s108, %s109
      %p123 = scmp.eq.s32.totalorder %s89, 1
      %p124 = por %p122, %p123
      %p126 = scmp.ne.s32.totalorder %s109, %s125
      %p127 = scmp.eq.s32.totalorder %s89, 0
      %p128 = por %p126, %p127
      %s129 = ssub.s32 %s90, %s102
      %p130 = scmp.eq.s32.totalorder %s129, 0
      %s132 = sadd.s32 %s131, 1
      %s133 = scalar_select %p130, %s131, %s132
      %p136 = pneg %p130
      %p137 = scmp.eq.s32.totalorder %s83, 1
      %p138 = por %p136, %p137
      %p139 = scmp.ne.s32.totalorder %s131, %s134
      %p140 = scmp.eq.s32.totalorder %s83, 0
      %p141 = por %p139, %p140
      %p142 = scmp.ne.s32.totalorder %s131, %s134
      %p143 = scmp.eq.s32.totalorder %s88, 1
      %p144 = por %p142, %p143
      %p145 = scmp.ne.s32.totalorder %s134, %s135
      %p146 = scmp.eq.s32.totalorder %s88, 0
      %p147 = por %p145, %p146
      %p148 = scmp.ne.s32.totalorder %s134, %s135
      %p149 = scmp.eq.s32.totalorder %s89, 1
      %p150 = por %p148, %p149
      %p152 = scmp.ne.s32.totalorder %s135, %s151
      %p153 = scmp.eq.s32.totalorder %s89, 0
      %p154 = por %p152, %p153
      %s155 = ssub.s32 %s90, %s102
      %p156 = scmp.eq.s32.totalorder %s155, 0
      %s158 = sadd.s32 %s157, 1
      %s159 = scalar_select %p156, %s157, %s158
      %p162 = pneg %p156
      %p163 = scmp.eq.s32.totalorder %s83, 1
      %p164 = por %p162, %p163
      %p165 = scmp.ne.s32.totalorder %s157, %s160
      %p166 = scmp.eq.s32.totalorder %s83, 0
      %p167 = por %p165, %p166
      %p168 = scmp.ne.s32.totalorder %s157, %s160
      %p169 = scmp.eq.s32.totalorder %s88, 1
      %p170 = por %p168, %p169
      %p171 = scmp.ne.s32.totalorder %s160, %s161
      %p172 = scmp.eq.s32.totalorder %s88, 0
      %p173 = por %p171, %p172
      %p174 = scmp.ne.s32.totalorder %s160, %s161
      %p175 = scmp.eq.s32.totalorder %s89, 1
      %p176 = por %p174, %p175
      %p178 = scmp.ne.s32.totalorder %s161, %s177
      %p179 = scmp.eq.s32.totalorder %s89, 0
      %p180 = por %p178, %p179
      %s181 = ssub.s32 %s90, %s102
      %p182 = scmp.eq.s32.totalorder %s181, 0
      %s184 = sadd.s32 %s183, 1
      %s185 = scalar_select %p182, %s183, %s184
      %p188 = pneg %p182
      %p189 = scmp.eq.s32.totalorder %s83, 1
      %p190 = por %p188, %p189
      %p191 = scmp.ne.s32.totalorder %s183, %s186
      %p192 = scmp.eq.s32.totalorder %s83, 0
      %p193 = por %p191, %p192
      %p194 = scmp.ne.s32.totalorder %s183, %s186
      %p195 = scmp.eq.s32.totalorder %s88, 1
      %p196 = por %p194, %p195
      %p197 = scmp.ne.s32.totalorder %s186, %s187
      %p198 = scmp.eq.s32.totalorder %s88, 0
      %p199 = por %p197, %p198
      %p200 = scmp.ne.s32.totalorder %s186, %s187
      %p201 = scmp.eq.s32.totalorder %s89, 1
      %p202 = por %p200, %p201
      %p204 = scmp.ne.s32.totalorder %s187, %s203
      %p205 = scmp.eq.s32.totalorder %s89, 0
      %p206 = por %p204, %p205
      %s208 = sadd.s32 %s207, 1
      %p211 = scmp.eq.s32.totalorder %s83, 1
      %p212 = scmp.ne.s32.totalorder %s207, %s209
      %p213 = scmp.eq.s32.totalorder %s83, 0
      %p214 = por %p212, %p213
      %p215 = scmp.ne.s32.totalorder %s207, %s209
      %p216 = scmp.eq.s32.totalorder %s88, 1
      %p217 = por %p215, %p216
      %p218 = scmp.ne.s32.totalorder %s209, %s210
      %p219 = scmp.eq.s32.totalorder %s88, 0
      %p220 = por %p218, %p219
      %p221 = scmp.ne.s32.totalorder %s209, %s210
      %p222 = scmp.eq.s32.totalorder %s89, 1
      %p223 = por %p221, %p222
      %p225 = scmp.ne.s32.totalorder %s210, %s224
      %p226 = scmp.eq.s32.totalorder %s89, 0
      %p227 = por %p225, %p226
      %s229 = sadd.s32 %s228, 1
      %p232 = scmp.eq.s32.totalorder %s83, 1
      %p233 = scmp.ne.s32.totalorder %s228, %s230
      %p234 = scmp.eq.s32.totalorder %s83, 0
      %p235 = por %p233, %p234
      %p236 = scmp.ne.s32.totalorder %s228, %s230
      %p237 = scmp.eq.s32.totalorder %s88, 1
      %p238 = por %p236, %p237
      %p239 = scmp.ne.s32.totalorder %s230, %s231
      %p240 = scmp.eq.s32.totalorder %s88, 0
      %p241 = por %p239, %p240
      %p242 = scmp.ne.s32.totalorder %s230, %s231
      %p243 = scmp.eq.s32.totalorder %s89, 1
      %p244 = por %p242, %p243
      %p246 = scmp.ne.s32.totalorder %s231, %s245
      %p247 = scmp.eq.s32.totalorder %s89, 0
      %p248 = por %p246, %p247
      %s250 = sadd.s32 %s249, 1
      %p253 = scmp.eq.s32.totalorder %s83, 1
      %p254 = scmp.ne.s32.totalorder %s249, %s251
      %p255 = scmp.eq.s32.totalorder %s83, 0
      %p256 = por %p254, %p255
      %p257 = scmp.ne.s32.totalorder %s249, %s251
      %p258 = scmp.eq.s32.totalorder %s88, 1
      %p259 = por %p257, %p258
      %p260 = scmp.ne.s32.totalorder %s251, %s252
      %p261 = scmp.eq.s32.totalorder %s88, 0
      %p262 = por %p260, %p261
      %p263 = scmp.ne.s32.totalorder %s251, %s252
      %p264 = scmp.eq.s32.totalorder %s89, 1
      %p265 = por %p263, %p264
      %p267 = scmp.ne.s32.totalorder %s252, %s266
      %p268 = scmp.eq.s32.totalorder %s89, 0
      %p269 = por %p267, %p268
      %s271 = sadd.s32 %s270, 1
      %p274 = scmp.eq.s32.totalorder %s83, 1
      %p275 = scmp.ne.s32.totalorder %s270, %s272
      %p276 = scmp.eq.s32.totalorder %s83, 0
      %p277 = por %p275, %p276
      %p278 = scmp.ne.s32.totalorder %s270, %s272
      %p279 = scmp.eq.s32.totalorder %s88, 1
      %p280 = por %p278, %p279
      %p281 = scmp.ne.s32.totalorder %s272, %s273
      %p282 = scmp.eq.s32.totalorder %s88, 0
      %p283 = por %p281, %p282
      %p284 = scmp.ne.s32.totalorder %s272, %s273
      %p285 = scmp.eq.s32.totalorder %s89, 1
      %p286 = por %p284, %p285
      %p288 = scmp.ne.s32.totalorder %s273, %s287
      %p289 = scmp.eq.s32.totalorder %s89, 0
      %p290 = por %p288, %p289
      %s292 = sadd.s32 %s291, 1
      %p295 = scmp.eq.s32.totalorder %s83, 1
      %p296 = scmp.ne.s32.totalorder %s291, %s293
      %p297 = scmp.eq.s32.totalorder %s83, 0
      %p298 = por %p296, %p297
      %p299 = scmp.ne.s32.totalorder %s291, %s293
      %p300 = scmp.eq.s32.totalorder %s88, 1
      %p301 = por %p299, %p300
      %p302 = scmp.ne.s32.totalorder %s293, %s294
      %p303 = scmp.eq.s32.totalorder %s88, 0
      %p304 = por %p302, %p303
      %p305 = scmp.ne.s32.totalorder %s293, %s294
      %p306 = scmp.eq.s32.totalorder %s89, 1
      %p307 = por %p305, %p306
      %p309 = scmp.ne.s32.totalorder %s294, %s308
      %p310 = scmp.eq.s32.totalorder %s89, 0
      %p311 = por %p309, %p310
      %s313 = sadd.s32 %s312, 1
      %p316 = scmp.eq.s32.totalorder %s83, 1
      %p317 = scmp.ne.s32.totalorder %s312, %s314
      %p318 = scmp.eq.s32.totalorder %s83, 0
      %p319 = por %p317, %p318
      %p320 = scmp.ne.s32.totalorder %s312, %s314
      %p321 = scmp.eq.s32.totalorder %s88, 1
      %p322 = por %p320, %p321
      %p323 = scmp.ne.s32.totalorder %s314, %s315
      %p324 = scmp.eq.s32.totalorder %s88, 0
      %p325 = por %p323, %p324
      %p326 = scmp.ne.s32.totalorder %s314, %s315
      %p327 = scmp.eq.s32.totalorder %s89, 1
      %p328 = por %p326, %p327
      %p330 = scmp.ne.s32.totalorder %s315, %s329
      %p331 = scmp.eq.s32.totalorder %s89, 0
      %p332 = por %p330, %p331
      %s334 = sadd.s32 %s333, 1
      %p337 = scmp.eq.s32.totalorder %s83, 1
      %p338 = scmp.ne.s32.totalorder %s333, %s335
      %p339 = scmp.eq.s32.totalorder %s83, 0
      %p340 = por %p338, %p339
      %p341 = scmp.ne.s32.totalorder %s333, %s335
      %p342 = scmp.eq.s32.totalorder %s88, 1
      %p343 = por %p341, %p342
      %p344 = scmp.ne.s32.totalorder %s335, %s336
      %p345 = scmp.eq.s32.totalorder %s88, 0
      %p346 = por %p344, %p345
      %p347 = scmp.ne.s32.totalorder %s335, %s336
      %p348 = scmp.eq.s32.totalorder %s89, 1
      %p349 = por %p347, %p348
      %p351 = scmp.ne.s32.totalorder %s336, %s350
      %p352 = scmp.eq.s32.totalorder %s89, 0
      %p353 = por %p351, %p352
      %s355 = sadd.s32 %s354, 1
      %p358 = scmp.eq.s32.totalorder %s83, 1
      %p359 = scmp.ne.s32.totalorder %s354, %s356
      %p360 = scmp.eq.s32.totalorder %s83, 0
      %p361 = por %p359, %p360
      %p362 = scmp.ne.s32.totalorder %s354, %s356
      %p363 = scmp.eq.s32.totalorder %s88, 1
      %p364 = por %p362, %p363
      %p365 = scmp.ne.s32.totalorder %s356, %s357
      %p366 = scmp.eq.s32.totalorder %s88, 0
      %p367 = por %p365, %p366
      %p368 = scmp.ne.s32.totalorder %s356, %s357
      %p369 = scmp.eq.s32.totalorder %s89, 1
      %p370 = por %p368, %p369
      %p372 = scmp.ne.s32.totalorder %s357, %s371
      %p373 = scmp.eq.s32.totalorder %s89, 0
      %p374 = por %p372, %p373
      %s376 = sadd.s32 %s375, 1
      %p379 = scmp.eq.s32.totalorder %s83, 1
      %p380 = scmp.ne.s32.totalorder %s375, %s377
      %p381 = scmp.eq.s32.totalorder %s83, 0
      %p382 = por %p380, %p381
      %p383 = scmp.ne.s32.totalorder %s375, %s377
      %p384 = scmp.eq.s32.totalorder %s88, 1
      %p385 = por %p383, %p384
      %p386 = scmp.ne.s32.totalorder %s377, %s378
      %p387 = scmp.eq.s32.totalorder %s88, 0
      %p388 = por %p386, %p387
      %p389 = scmp.ne.s32.totalorder %s377, %s378
      %p390 = scmp.eq.s32.totalorder %s89, 1
      %p391 = por %p389, %p390
      %p393 = scmp.ne.s32.totalorder %s378, %s392
      %p394 = scmp.eq.s32.totalorder %s89, 0
      %p395 = por %p393, %p394
      %s397 = sadd.s32 %s396, 1
      %p400 = scmp.eq.s32.totalorder %s83, 1
      %p401 = scmp.ne.s32.totalorder %s396, %s398
      %p402 = scmp.eq.s32.totalorder %s83, 0
      %p403 = por %p401, %p402
      %p404 = scmp.ne.s32.totalorder %s396, %s398
      %p405 = scmp.eq.s32.totalorder %s88, 1
      %p406 = por %p404, %p405
      %p407 = scmp.ne.s32.totalorder %s398, %s399
      %p408 = scmp.eq.s32.totalorder %s88, 0
      %p409 = por %p407, %p408
      %p410 = scmp.ne.s32.totalorder %s398, %s399
      %p411 = scmp.eq.s32.totalorder %s89, 1
      %p412 = por %p410, %p411
      %p414 = scmp.ne.s32.totalorder %s399, %s413
      %p415 = scmp.eq.s32.totalorder %s89, 0
      %p416 = por %p414, %p415
      %s418 = sadd.s32 %s417, 1
      %p421 = scmp.eq.s32.totalorder %s83, 1
      %p422 = scmp.ne.s32.totalorder %s417, %s419
      %p423 = scmp.eq.s32.totalorder %s83, 0
      %p424 = por %p422, %p423
      %p425 = scmp.ne.s32.totalorder %s417, %s419
      %p426 = scmp.eq.s32.totalorder %s88, 1
      %p427 = por %p425, %p426
      %p428 = scmp.ne.s32.totalorder %s419, %s420
      %p429 = scmp.eq.s32.totalorder %s88, 0
      %p430 = por %p428, %p429
      %p431 = scmp.ne.s32.totalorder %s419, %s420
      %p432 = scmp.eq.s32.totalorder %s89, 1
      %p433 = por %p431, %p432
      %p435 = scmp.ne.s32.totalorder %s420, %s434
      %p436 = scmp.eq.s32.totalorder %s89, 0
      %p437 = por %p435, %p436
      %s439 = sadd.s32 %s438, 1
      %p442 = scmp.eq.s32.totalorder %s83, 1
      %p443 = scmp.ne.s32.totalorder %s438, %s440
      %p444 = scmp.eq.s32.totalorder %s83, 0
      %p445 = por %p443, %p444
      %p446 = scmp.ne.s32.totalorder %s438, %s440
      %p447 = scmp.eq.s32.totalorder %s88, 1
      %p448 = por %p446, %p447
      %p449 = scmp.ne.s32.totalorder %s440, %s441
      %p450 = scmp.eq.s32.totalorder %s88, 0
      %p451 = por %p449, %p450
      %p452 = scmp.ne.s32.totalorder %s440, %s441
      %p453 = scmp.eq.s32.totalorder %s89, 1
      %p454 = por %p452, %p453
      %p456 = scmp.ne.s32.totalorder %s441, %s455
      %p457 = scmp.eq.s32.totalorder %s89, 0
      %p458 = por %p456, %p457
      %s460 = sadd.s32 %s459, 1
      %p463 = scmp.eq.s32.totalorder %s83, 1
      %p464 = scmp.ne.s32.totalorder %s459, %s461
      %p465 = scmp.eq.s32.totalorder %s83, 0
      %p466 = por %p464, %p465
      %p467 = scmp.ne.s32.totalorder %s459, %s461
      %p468 = scmp.eq.s32.totalorder %s88, 1
      %p469 = por %p467, %p468
      %p470 = scmp.ne.s32.totalorder %s461, %s462
      %p471 = scmp.eq.s32.totalorder %s88, 0
      %p472 = por %p470, %p471
      %p473 = scmp.ne.s32.totalorder %s461, %s462
      %p474 = scmp.eq.s32.totalorder %s89, 1
      %p475 = por %p473, %p474
      %p477 = scmp.ne.s32.totalorder %s462, %s476
      %p478 = scmp.eq.s32.totalorder %s89, 0
      %p479 = por %p477, %p478
      %s481 = sadd.s32 %s480, 1
      %p484 = scmp.eq.s32.totalorder %s83, 1
      %p485 = scmp.ne.s32.totalorder %s480, %s482
      %p486 = scmp.eq.s32.totalorder %s83, 0
      %p487 = por %p485, %p486
      %p488 = scmp.ne.s32.totalorder %s480, %s482
      %p489 = scmp.eq.s32.totalorder %s88, 1
      %p490 = por %p488, %p489
      %p491 = scmp.ne.s32.totalorder %s482, %s483
      %p492 = scmp.eq.s32.totalorder %s88, 0
      %p493 = por %p491, %p492
      %p494 = scmp.ne.s32.totalorder %s482, %s483
      %p495 = scmp.eq.s32.totalorder %s89, 1
      %p496 = por %p494, %p495
      %p498 = scmp.ne.s32.totalorder %s483, %s497
      %p499 = scmp.eq.s32.totalorder %s89, 0
      %p500 = por %p498, %p499
      %s502 = sadd.s32 %s501, 1
      %p505 = scmp.eq.s32.totalorder %s83, 1
      %p506 = scmp.ne.s32.totalorder %s501, %s503
      %p507 = scmp.eq.s32.totalorder %s83, 0
      %p508 = por %p506, %p507
      %p509 = scmp.ne.s32.totalorder %s501, %s503
      %p510 = scmp.eq.s32.totalorder %s88, 1
      %p511 = por %p509, %p510
      %p512 = scmp.ne.s32.totalorder %s503, %s504
      %p513 = scmp.eq.s32.totalorder %s88, 0
      %p514 = por %p512, %p513
      %p515 = scmp.ne.s32.totalorder %s503, %s504
      %p516 = scmp.eq.s32.totalorder %s89, 1
      %p517 = por %p515, %p516
      %p519 = scmp.ne.s32.totalorder %s504, %s518
      %p520 = scmp.eq.s32.totalorder %s89, 0
      %p521 = por %p519, %p520
      %s523 = sadd.s32 %s522, 1
      %p526 = scmp.eq.s32.totalorder %s83, 1
      %p527 = scmp.ne.s32.totalorder %s522, %s524
      %p528 = scmp.eq.s32.totalorder %s83, 0
      %p529 = por %p527, %p528
      %p530 = scmp.ne.s32.totalorder %s522, %s524
      %p531 = scmp.eq.s32.totalorder %s88, 1
      %p532 = por %p530, %p531
      %p533 = scmp.ne.s32.totalorder %s524, %s525
      %p534 = scmp.eq.s32.totalorder %s88, 0
      %p535 = por %p533, %p534
      %p536 = scmp.ne.s32.totalorder %s524, %s525
      %p537 = scmp.eq.s32.totalorder %s89, 1
      %p538 = por %p536, %p537
      %p540 = scmp.ne.s32.totalorder %s525, %s539
      %p541 = scmp.eq.s32.totalorder %s89, 0
      %p542 = por %p540, %p541
      %s544 = sadd.s32 %s543, 1
      %p547 = scmp.eq.s32.totalorder %s83, 1
      %p548 = scmp.ne.s32.totalorder %s543, %s545
      %p549 = scmp.eq.s32.totalorder %s83, 0
      %p550 = por %p548, %p549
      %p551 = scmp.ne.s32.totalorder %s543, %s545
      %p552 = scmp.eq.s32.totalorder %s88, 1
      %p553 = por %p551, %p552
      %p554 = scmp.ne.s32.totalorder %s545, %s546
      %p555 = scmp.eq.s32.totalorder %s88, 0
      %p556 = por %p554, %p555
      %p557 = scmp.ne.s32.totalorder %s545, %s546
      %p558 = scmp.eq.s32.totalorder %s89, 1
      %p559 = por %p557, %p558
      %p561 = scmp.ne.s32.totalorder %s546, %s560
      %p562 = scmp.eq.s32.totalorder %s89, 0
      %p563 = por %p561, %p562
      %s565 = sadd.s32 %s564, 1
      %p568 = scmp.eq.s32.totalorder %s83, 1
      %p569 = scmp.ne.s32.totalorder %s564, %s566
      %p570 = scmp.eq.s32.totalorder %s83, 0
      %p571 = por %p569, %p570
      %p572 = scmp.ne.s32.totalorder %s564, %s566
      %p573 = scmp.eq.s32.totalorder %s88, 1
      %p574 = por %p572, %p573
      %p575 = scmp.ne.s32.totalorder %s566, %s567
      %p576 = scmp.eq.s32.totalorder %s88, 0
      %p577 = por %p575, %p576
      %p578 = scmp.ne.s32.totalorder %s566, %s567
      %p579 = scmp.eq.s32.totalorder %s89, 1
      %p580 = por %p578, %p579
      %p582 = scmp.ne.s32.totalorder %s567, %s581
      %p583 = scmp.eq.s32.totalorder %s89, 0
      %p584 = por %p582, %p583
      %s586 = sadd.s32 %s585, 1
      %p589 = scmp.eq.s32.totalorder %s83, 1
      %p590 = scmp.ne.s32.totalorder %s585, %s587
      %p591 = scmp.eq.s32.totalorder %s83, 0
      %p592 = por %p590, %p591
      %p593 = scmp.ne.s32.totalorder %s585, %s587
      %p594 = scmp.eq.s32.totalorder %s88, 1
      %p595 = por %p593, %p594
      %p596 = scmp.ne.s32.totalorder %s587, %s588
      %p597 = scmp.eq.s32.totalorder %s88, 0
      %p598 = por %p596, %p597
      %p599 = scmp.ne.s32.totalorder %s587, %s588
      %p600 = scmp.eq.s32.totalorder %s89, 1
      %p601 = por %p599, %p600
      %p603 = scmp.ne.s32.totalorder %s588, %s602
      %p604 = scmp.eq.s32.totalorder %s89, 0
      %p605 = por %p603, %p604
      %s607 = sadd.s32 %s606, 1
      %p610 = scmp.eq.s32.totalorder %s83, 1
      %p611 = scmp.ne.s32.totalorder %s606, %s608
      %p612 = scmp.eq.s32.totalorder %s83, 0
      %p613 = por %p611, %p612
      %p614 = scmp.ne.s32.totalorder %s606, %s608
      %p615 = scmp.eq.s32.totalorder %s88, 1
      %p616 = por %p614, %p615
      %p617 = scmp.ne.s32.totalorder %s608, %s609
      %p618 = scmp.eq.s32.totalorder %s88, 0
      %p619 = por %p617, %p618
      %p620 = scmp.ne.s32.totalorder %s608, %s609
      %p621 = scmp.eq.s32.totalorder %s89, 1
      %p622 = por %p620, %p621
      %p624 = scmp.ne.s32.totalorder %s609, %s623
      %p625 = scmp.eq.s32.totalorder %s89, 0
      %p626 = por %p624, %p625
      %s628 = sadd.s32 %s627, 1
      %p631 = scmp.eq.s32.totalorder %s83, 1
      %p632 = scmp.ne.s32.totalorder %s627, %s629
      %p633 = scmp.eq.s32.totalorder %s83, 0
      %p634 = por %p632, %p633
      %p635 = scmp.ne.s32.totalorder %s627, %s629
      %p636 = scmp.eq.s32.totalorder %s88, 1
      %p637 = por %p635, %p636
      %p638 = scmp.ne.s32.totalorder %s629, %s630
      %p639 = scmp.eq.s32.totalorder %s88, 0
      %p640 = por %p638, %p639
      %p641 = scmp.ne.s32.totalorder %s629, %s630
      %p642 = scmp.eq.s32.totalorder %s89, 1
      %p643 = por %p641, %p642
      %p645 = scmp.ne.s32.totalorder %s630, %s644
      %p646 = scmp.eq.s32.totalorder %s89, 0
      %p647 = por %p645, %p646
      %s649 = sadd.s32 %s648, 1
      %p652 = scmp.eq.s32.totalorder %s83, 1
      %p653 = scmp.ne.s32.totalorder %s648, %s650
      %p654 = scmp.eq.s32.totalorder %s83, 0
      %p655 = por %p653, %p654
      %p656 = scmp.ne.s32.totalorder %s648, %s650
      %p657 = scmp.eq.s32.totalorder %s88, 1
      %p658 = por %p656, %p657
      %p659 = scmp.ne.s32.totalorder %s650, %s651
      %p660 = scmp.eq.s32.totalorder %s88, 0
      %p661 = por %p659, %p660
      %p662 = scmp.ne.s32.totalorder %s650, %s651
      %p663 = scmp.eq.s32.totalorder %s89, 1
      %p664 = por %p662, %p663
      %p666 = scmp.ne.s32.totalorder %s651, %s665
      %p667 = scmp.eq.s32.totalorder %s89, 0
      %p668 = por %p666, %p667
      %s670 = sadd.s32 %s669, 1
      %p673 = scmp.eq.s32.totalorder %s83, 1
      %p674 = scmp.ne.s32.totalorder %s669, %s671
      %p675 = scmp.eq.s32.totalorder %s83, 0
      %p676 = por %p674, %p675
      %p677 = scmp.ne.s32.totalorder %s669, %s671
      %p678 = scmp.eq.s32.totalorder %s88, 1
      %p679 = por %p677, %p678
      %p680 = scmp.ne.s32.totalorder %s671, %s672
      %p681 = scmp.eq.s32.totalorder %s88, 0
      %p682 = por %p680, %p681
      %p683 = scmp.ne.s32.totalorder %s671, %s672
      %p684 = scmp.eq.s32.totalorder %s89, 1
      %p685 = por %p683, %p684
      %p687 = scmp.ne.s32.totalorder %s672, %s686
      %p688 = scmp.eq.s32.totalorder %s89, 0
      %p689 = por %p687, %p688
      %s691 = sadd.s32 %s690, 1
      %p694 = scmp.eq.s32.totalorder %s83, 1
      %p695 = scmp.ne.s32.totalorder %s690, %s692
      %p696 = scmp.eq.s32.totalorder %s83, 0
      %p697 = por %p695, %p696
      %p698 = scmp.ne.s32.totalorder %s690, %s692
      %p699 = scmp.eq.s32.totalorder %s88, 1
      %p700 = por %p698, %p699
      %p701 = scmp.ne.s32.totalorder %s692, %s693
      %p702 = scmp.eq.s32.totalorder %s88, 0
      %p703 = por %p701, %p702
      %p704 = scmp.ne.s32.totalorder %s692, %s693
      %p705 = scmp.eq.s32.totalorder %s89, 1
      %p706 = por %p704, %p705
      %p708 = scmp.ne.s32.totalorder %s693, %s707
      %p709 = scmp.eq.s32.totalorder %s89, 0
      %p710 = por %p708, %p709
      %s712 = sadd.s32 %s711, 1
      %p715 = scmp.eq.s32.totalorder %s83, 1
      %p716 = scmp.ne.s32.totalorder %s711, %s713
      %p717 = scmp.eq.s32.totalorder %s83, 0
      %p718 = por %p716, %p717
      %p719 = scmp.ne.s32.totalorder %s711, %s713
      %p720 = scmp.eq.s32.totalorder %s88, 1
      %p721 = por %p719, %p720
      %p722 = scmp.ne.s32.totalorder %s713, %s714
      %p723 = scmp.eq.s32.totalorder %s88, 0
      %p724 = por %p722, %p723
      %p725 = scmp.ne.s32.totalorder %s713, %s714
      %p726 = scmp.eq.s32.totalorder %s89, 1
      %p727 = por %p725, %p726
      %p729 = scmp.ne.s32.totalorder %s714, %s728
      %p730 = scmp.eq.s32.totalorder %s89, 0
      %p731 = por %p729, %p730
      %s733 = sadd.s32 %s732, 1
      %p736 = scmp.eq.s32.totalorder %s83, 1
      %p737 = scmp.ne.s32.totalorder %s732, %s734
      %p738 = scmp.eq.s32.totalorder %s83, 0
      %p739 = por %p737, %p738
      %p740 = scmp.ne.s32.totalorder %s732, %s734
      %p741 = scmp.eq.s32.totalorder %s88, 1
      %p742 = por %p740, %p741
      %p743 = scmp.ne.s32.totalorder %s734, %s735
      %p744 = scmp.eq.s32.totalorder %s88, 0
      %p745 = por %p743, %p744
      %p746 = scmp.ne.s32.totalorder %s734, %s735
      %p747 = scmp.eq.s32.totalorder %s89, 1
      %p748 = por %p746, %p747
      %p750 = scmp.ne.s32.totalorder %s735, %s749
      %p751 = scmp.eq.s32.totalorder %s89, 0
      %p752 = por %p750, %p751
      %s753 = ssub.s32 %s91, %s98
      %p754 = scmp.eq.s32.totalorder %s753, 0
      %s756 = sadd.s32 %s755, 1
      %s757 = scalar_select %p754, %s755, %s756
      %p760 = pneg %p754
      %p761 = scmp.eq.s32.totalorder %s83, 1
      %p762 = por %p760, %p761
      %p763 = scmp.ne.s32.totalorder %s755, %s758
      %p764 = scmp.eq.s32.totalorder %s83, 0
      %p765 = por %p763, %p764
      %p766 = scmp.ne.s32.totalorder %s755, %s758
      %p767 = scmp.eq.s32.totalorder %s88, 1
      %p768 = por %p766, %p767
      %p769 = scmp.ne.s32.totalorder %s758, %s759
      %p770 = scmp.eq.s32.totalorder %s88, 0
      %p771 = por %p769, %p770
      %p772 = scmp.ne.s32.totalorder %s758, %s759
      %p773 = scmp.eq.s32.totalorder %s89, 1
      %p774 = por %p772, %p773
      %p776 = scmp.ne.s32.totalorder %s759, %s775
      %p777 = scmp.eq.s32.totalorder %s89, 0
      %p778 = por %p776, %p777
      %s779 = ssub.s32 %s91, %s98
      %p780 = scmp.eq.s32.totalorder %s779, 0
      %s782 = sadd.s32 %s781, 1
      %s783 = scalar_select %p780, %s781, %s782
      %p786 = pneg %p780
      %p787 = scmp.eq.s32.totalorder %s83, 1
      %p788 = por %p786, %p787
      %p789 = scmp.ne.s32.totalorder %s781, %s784
      %p790 = scmp.eq.s32.totalorder %s83, 0
      %p791 = por %p789, %p790
      %p792 = scmp.ne.s32.totalorder %s781, %s784
      %p793 = scmp.eq.s32.totalorder %s88, 1
      %p794 = por %p792, %p793
      %p795 = scmp.ne.s32.totalorder %s784, %s785
      %p796 = scmp.eq.s32.totalorder %s88, 0
      %p797 = por %p795, %p796
      %p798 = scmp.ne.s32.totalorder %s784, %s785
      %p799 = scmp.eq.s32.totalorder %s89, 1
      %p800 = por %p798, %p799
      %p802 = scmp.ne.s32.totalorder %s785, %s801
      %p803 = scmp.eq.s32.totalorder %s89, 0
      %p804 = por %p802, %p803
      %s805 = ssub.s32 %s90, %s102
      %s806 = ssub.s32 %s91, %s98
      %s807 = sor.u32 %s805, %s806
      %p808 = scmp.eq.s32.totalorder %s807, 0
      %s810 = sadd.s32 %s809, 1
      %s811 = scalar_select %p808, %s809, %s810
      %p814 = pneg %p808
      %p815 = scmp.eq.s32.totalorder %s83, 1
      %p816 = por %p814, %p815
      %p817 = scmp.ne.s32.totalorder %s809, %s812
      %p818 = scmp.eq.s32.totalorder %s83, 0
      %p819 = por %p817, %p818
      %p820 = scmp.ne.s32.totalorder %s809, %s812
      %p821 = scmp.eq.s32.totalorder %s88, 1
      %p822 = por %p820, %p821
      %p823 = scmp.ne.s32.totalorder %s812, %s813
      %p824 = scmp.eq.s32.totalorder %s88, 0
      %p825 = por %p823, %p824
      %p826 = scmp.ne.s32.totalorder %s812, %s813
      %p827 = scmp.eq.s32.totalorder %s89, 1
      %p828 = por %p826, %p827
      %p830 = scmp.ne.s32.totalorder %s813, %s829
      %p831 = scmp.eq.s32.totalorder %s89, 0
      %p832 = por %p830, %p831
      %p833 = scmp.le.s32.totalorder 1, %s83
      %p834 = scmp.lt.s32.totalorder %s83, 3
      %p835 = pnand %p833, %p834
      %p836 = pneg %p835
      // Predicated region
      $region9: #{tpu_custom_call.1} parent=5 // pred_check
        _
      $region10: #{tpu_custom_call.1} parent=5 // pred_check_branch
        %838 = sbr.rel (%p835) target = $region12
      $region11: #{tpu_custom_call.1} parent=5 // pred_region
        %s839 = ssub.s32 %s83, 1
        // Predicated region
        $region13: #{tpu_custom_call.1} parent=11 // pred_check
          %p840 = pneg %p220
        $region14: #{tpu_custom_call.1} parent=11 // pred_check_branch
          %842 = sbr.rel (%p840) target = $region16
        $region15: #{tpu_custom_call.1} parent=11 // pred_region
          %844 = vsyncadd [#allocation4], 0
          %s845 = sshll.u32 %s9, 4
          %s846 = int_to_ptr.hbm [resolvable:$true] %s845
          %s847 = sshll.u32 [#allocation3], 4
          %s848 = int_to_ptr.vmem [resolvable:$true] %s847
          %853 = dma.hbm_to_vmem [thread:$0]  %s846, 256, %s848, [#allocation4], 64, 64, 4
        $region16: #{tpu_custom_call.1} parent=11 // pred_fallthru
          _
        // Predicated region
        $region17: #{tpu_custom_call.1} parent=11 // pred_check
          %p854 = pneg %p241
        $region18: #{tpu_custom_call.1} parent=11 // pred_check_branch
          %856 = sbr.rel (%p854) target = $region20
        $region19: #{tpu_custom_call.1} parent=11 // pred_region
          _
        $region20: #{tpu_custom_call.1} parent=11 // pred_fallthru
          _
        // Predicated region
        $region21: #{tpu_custom_call.1} parent=11 // pred_check
          %p857 = pneg %p262
        $region22: #{tpu_custom_call.1} parent=11 // pred_check_branch
          %859 = sbr.rel (%p857) target = $region24
        $region23: #{tpu_custom_call.1} parent=11 // pred_region
          %861 = vsyncadd [#allocation7], 0
          %s862 = sshll.u32 %s13, 4
          %s863 = int_to_ptr.hbm [resolvable:$true] %s862
          %s864 = sshll.u32 [#allocation6], 4
          %s865 = int_to_ptr.vmem [resolvable:$true] %s864
          %870 = dma.hbm_to_vmem [thread:$0]  %s863, 256, %s865, [#allocation7], 64, 64, 4
        $region24: #{tpu_custom_call.1} parent=11 // pred_fallthru
          _
        // Predicated region
        $region25: #{tpu_custom_call.1} parent=11 // pred_check
          %p871 = pneg %p283
        $region26: #{tpu_custom_call.1} parent=11 // pred_check_branch
          %873 = sbr.rel (%p871) target = $region28
        $region27: #{tpu_custom_call.1} parent=11 // pred_region
          _
        $region28: #{tpu_custom_call.1} parent=11 // pred_fallthru
          _
        // Predicated region
        $region29: #{tpu_custom_call.1} parent=11 // pred_check
          %p874 = pneg %p304
        $region30: #{tpu_custom_call.1} parent=11 // pred_check_branch
          %876 = sbr.rel (%p874) target = $region32
        $region31: #{tpu_custom_call.1} parent=11 // pred_region
          %878 = vsyncadd [#allocation7], 0
          %s879 = sshll.u32 %s17, 4
          %s880 = int_to_ptr.hbm [resolvable:$true] %s879
          %s881 = sshll.u32 [#allocation8], 4
          %s882 = int_to_ptr.vmem [resolvable:$true] %s881
          %887 = dma.hbm_to_vmem [thread:$0]  %s880, 256, %s882, [#allocation7], 64, 64, 4
        $region32: #{tpu_custom_call.1} parent=11 // pred_fallthru
          _
        // Predicated region
        $region33: #{tpu_custom_call.1} parent=11 // pred_check
          %p888 = pneg %p325
        $region34: #{tpu_custom_call.1} parent=11 // pred_check_branch
          %890 = sbr.rel (%p888) target = $region36
        $region35: #{tpu_custom_call.1} parent=11 // pred_region
          _
        $region36: #{tpu_custom_call.1} parent=11 // pred_fallthru
          _
        // Predicated region
        $region37: #{tpu_custom_call.1} parent=11 // pred_check
          %p891 = pneg %p346
        $region38: #{tpu_custom_call.1} parent=11 // pred_check_branch
          %893 = sbr.rel (%p891) target = $region40
        $region39: #{tpu_custom_call.1} parent=11 // pred_region
          %895 = vsyncadd [#allocation10], 0
          %s896 = sshll.u32 %s21, 4
          %s897 = int_to_ptr.hbm [resolvable:$true] %s896
          %s898 = sshll.u32 [#allocation9], 4
          %s899 = int_to_ptr.vmem [resolvable:$true] %s898
          %904 = dma.hbm_to_vmem [thread:$0]  %s897, 256, %s899, [#allocation10], 64, 64, 4
        $region40: #{tpu_custom_call.1} parent=11 // pred_fallthru
          _
        // Predicated region
        $region41: #{tpu_custom_call.1} parent=11 // pred_check
          %p905 = pneg %p367
        $region42: #{tpu_custom_call.1} parent=11 // pred_check_branch
          %907 = sbr.rel (%p905) target = $region44
        $region43: #{tpu_custom_call.1} parent=11 // pred_region
          _
        $region44: #{tpu_custom_call.1} parent=11 // pred_fallthru
          _
        // Predicated region
        $region45: #{tpu_custom_call.1} parent=11 // pred_check
          %p908 = pneg %p388
        $region46: #{tpu_custom_call.1} parent=11 // pred_check_branch
          %910 = sbr.rel (%p908) target = $region48
        $region47: #{tpu_custom_call.1} parent=11 // pred_region
          _
        $region48: #{tpu_custom_call.1} parent=11 // pred_fallthru
          _
        // Predicated region
        $region49: #{tpu_custom_call.1} parent=11 // pred_check
          %p911 = pneg %p409
        $region50: #{tpu_custom_call.1} parent=11 // pred_check_branch
          %913 = sbr.rel (%p911) target = $region52
        $region51: #{tpu_custom_call.1} parent=11 // pred_region
          _
        $region52: #{tpu_custom_call.1} parent=11 // pred_fallthru
          _
        // Predicated region
        $region53: #{tpu_custom_call.1} parent=11 // pred_check
          %p914 = pneg %p430
        $region54: #{tpu_custom_call.1} parent=11 // pred_check_branch
          %916 = sbr.rel (%p914) target = $region56
        $region55: #{tpu_custom_call.1} parent=11 // pred_region
          %918 = vsyncadd [#allocation10], 0
          %s919 = sshll.u32 %s29, 4
          %s920 = int_to_ptr.hbm [resolvable:$true] %s919
          %s921 = sshll.u32 [#allocation11], 4
          %s922 = int_to_ptr.vmem [resolvable:$true] %s921
          %927 = dma.hbm_to_vmem [thread:$0]  %s920, 256, %s922, [#allocation10], 64, 64, 4
        $region56: #{tpu_custom_call.1} parent=11 // pred_fallthru
          _
        // Predicated region
        $region57: #{tpu_custom_call.1} parent=11 // pred_check
          %p928 = pneg %p451
        $region58: #{tpu_custom_call.1} parent=11 // pred_check_branch
          %930 = sbr.rel (%p928) target = $region60
        $region59: #{tpu_custom_call.1} parent=11 // pred_region
          %932 = vsyncadd [#allocation13], 0
          %s934 = sshll.u32 %s31, 4
          %s935 = int_to_ptr.hbm [resolvable:$true] %s934
          %s936 = sshll.u32 [#allocation12], 4
          %s937 = int_to_ptr.vmem [resolvable:$true] %s936
          %939 = dma.hbm_to_vmem [thread:$0]  %s935, 16, %s937, [#allocation13]
        $region60: #{tpu_custom_call.1} parent=11 // pred_fallthru
          _
        // Predicated region
        $region61: #{tpu_custom_call.1} parent=11 // pred_check
          %p940 = pneg %p472
        $region62: #{tpu_custom_call.1} parent=11 // pred_check_branch
          %942 = sbr.rel (%p940) target = $region64
        $region63: #{tpu_custom_call.1} parent=11 // pred_region
          %944 = vsyncadd [#allocation13], 0
          %s945 = sshll.u32 %s33, 4
          %s946 = int_to_ptr.hbm [resolvable:$true] %s945
          %s947 = sshll.u32 [#allocation14], 4
          %s948 = int_to_ptr.vmem [resolvable:$true] %s947
          %953 = dma.hbm_to_vmem [thread:$0]  %s946, 256, %s948, [#allocation13], 64, 64, 4
        $region64: #{tpu_custom_call.1} parent=11 // pred_fallthru
          _
        // Predicated region
        $region65: #{tpu_custom_call.1} parent=11 // pred_check
          %p954 = pneg %p493
        $region66: #{tpu_custom_call.1} parent=11 // pred_check_branch
          %956 = sbr.rel (%p954) target = $region68
        $region67: #{tpu_custom_call.1} parent=11 // pred_region
          %958 = vsyncadd [#allocation16], 0
          %s960 = sshll.u32 %s35, 4
          %s961 = int_to_ptr.hbm [resolvable:$true] %s960
          %s962 = sshll.u32 [#allocation15], 4
          %s963 = int_to_ptr.vmem [resolvable:$true] %s962
          %965 = dma.hbm_to_vmem [thread:$0]  %s961, 16, %s963, [#allocation16]
        $region68: #{tpu_custom_call.1} parent=11 // pred_fallthru
          _
        // Predicated region
        $region69: #{tpu_custom_call.1} parent=11 // pred_check
          %p966 = pneg %p514
        $region70: #{tpu_custom_call.1} parent=11 // pred_check_branch
          %968 = sbr.rel (%p966) target = $region72
        $region71: #{tpu_custom_call.1} parent=11 // pred_region
          %970 = vsyncadd [#allocation16], 0
          %s971 = sshll.u32 %s37, 4
          %s972 = int_to_ptr.hbm [resolvable:$true] %s971
          %s973 = sshll.u32 [#allocation17], 4
          %s974 = int_to_ptr.vmem [resolvable:$true] %s973
          %979 = dma.hbm_to_vmem [thread:$0]  %s972, 256, %s974, [#allocation16], 64, 64, 4
        $region72: #{tpu_custom_call.1} parent=11 // pred_fallthru
          _
        // Predicated region
        $region73: #{tpu_custom_call.1} parent=11 // pred_check
          %p980 = pneg %p535
        $region74: #{tpu_custom_call.1} parent=11 // pred_check_branch
          %982 = sbr.rel (%p980) target = $region76
        $region75: #{tpu_custom_call.1} parent=11 // pred_region
          %984 = vsyncadd [#allocation19], 0
          %s986 = sshll.u32 %s39, 4
          %s987 = int_to_ptr.hbm [resolvable:$true] %s986
          %s988 = sshll.u32 [#allocation18], 4
          %s989 = int_to_ptr.vmem [resolvable:$true] %s988
          %991 = dma.hbm_to_vmem [thread:$0]  %s987, 16, %s989, [#allocation19]
        $region76: #{tpu_custom_call.1} parent=11 // pred_fallthru
          _
        // Predicated region
        $region77: #{tpu_custom_call.1} parent=11 // pred_check
          %p992 = pneg %p556
        $region78: #{tpu_custom_call.1} parent=11 // pred_check_branch
          %994 = sbr.rel (%p992) target = $region80
        $region79: #{tpu_custom_call.1} parent=11 // pred_region
          %996 = vsyncadd [#allocation19], 0
          %s997 = sshll.u32 %s41, 4
          %s998 = int_to_ptr.hbm [resolvable:$true] %s997
          %s999 = sshll.u32 [#allocation20], 4
          %s1000 = int_to_ptr.vmem [resolvable:$true] %s999
          %1005 = dma.hbm_to_vmem [thread:$0]  %s998, 256, %s1000, [#allocation19], 64, 64, 4
        $region80: #{tpu_custom_call.1} parent=11 // pred_fallthru
          _
        // Predicated region
        $region81: #{tpu_custom_call.1} parent=11 // pred_check
          %p1006 = pneg %p577
        $region82: #{tpu_custom_call.1} parent=11 // pred_check_branch
          %1008 = sbr.rel (%p1006) target = $region84
        $region83: #{tpu_custom_call.1} parent=11 // pred_region
          %1010 = vsyncadd [#allocation22], 0
          %s1012 = sshll.u32 %s43, 4
          %s1013 = int_to_ptr.hbm [resolvable:$true] %s1012
          %s1014 = sshll.u32 [#allocation21], 4
          %s1015 = int_to_ptr.vmem [resolvable:$true] %s1014
          %1017 = dma.hbm_to_vmem [thread:$0]  %s1013, 16, %s1015, [#allocation22]
        $region84: #{tpu_custom_call.1} parent=11 // pred_fallthru
          _
        // Predicated region
        $region85: #{tpu_custom_call.1} parent=11 // pred_check
          %p1018 = pneg %p598
        $region86: #{tpu_custom_call.1} parent=11 // pred_check_branch
          %1020 = sbr.rel (%p1018) target = $region88
        $region87: #{tpu_custom_call.1} parent=11 // pred_region
          %1022 = vsyncadd [#allocation22], 0
          %s1024 = sshll.u32 %s45, 4
          %s1025 = int_to_ptr.hbm [resolvable:$true] %s1024
          %s1026 = sshll.u32 [#allocation23], 4
          %s1027 = int_to_ptr.vmem [resolvable:$true] %s1026
          %1029 = dma.hbm_to_vmem [thread:$0]  %s1025, 16, %s1027, [#allocation22]
        $region88: #{tpu_custom_call.1} parent=11 // pred_fallthru
          _
        // Predicated region
        $region89: #{tpu_custom_call.1} parent=11 // pred_check
          %p1030 = pneg %p619
        $region90: #{tpu_custom_call.1} parent=11 // pred_check_branch
          %1032 = sbr.rel (%p1030) target = $region92
        $region91: #{tpu_custom_call.1} parent=11 // pred_region
          %1034 = vsyncadd [#allocation25], 0
          %s1036 = sshll.u32 %s47, 4
          %s1037 = int_to_ptr.hbm [resolvable:$true] %s1036
          %s1038 = sshll.u32 [#allocation24], 4
          %s1039 = int_to_ptr.vmem [resolvable:$true] %s1038
          %1041 = dma.hbm_to_vmem [thread:$0]  %s1037, 16, %s1039, [#allocation25]
        $region92: #{tpu_custom_call.1} parent=11 // pred_fallthru
          _
        // Predicated region
        $region93: #{tpu_custom_call.1} parent=11 // pred_check
          %p1042 = pneg %p640
        $region94: #{tpu_custom_call.1} parent=11 // pred_check_branch
          %1044 = sbr.rel (%p1042) target = $region96
        $region95: #{tpu_custom_call.1} parent=11 // pred_region
          %1046 = vsyncadd [#allocation25], 0
          %s1047 = sshll.u32 %s49, 4
          %s1048 = int_to_ptr.hbm [resolvable:$true] %s1047
          %s1049 = sshll.u32 [#allocation26], 4
          %s1050 = int_to_ptr.vmem [resolvable:$true] %s1049
          %1055 = dma.hbm_to_vmem [thread:$0]  %s1048, 256, %s1050, [#allocation25], 64, 64, 4
        $region96: #{tpu_custom_call.1} parent=11 // pred_fallthru
          _
        // Predicated region
        $region97: #{tpu_custom_call.1} parent=11 // pred_check
          %p1056 = pneg %p661
        $region98: #{tpu_custom_call.1} parent=11 // pred_check_branch
          %1058 = sbr.rel (%p1056) target = $region100
        $region99: #{tpu_custom_call.1} parent=11 // pred_region
          %1060 = vsyncadd [#allocation28], 0
          %s1062 = sshll.u32 %s51, 4
          %s1063 = int_to_ptr.hbm [resolvable:$true] %s1062
          %s1064 = sshll.u32 [#allocation27], 4
          %s1065 = int_to_ptr.vmem [resolvable:$true] %s1064
          %1067 = dma.hbm_to_vmem [thread:$0]  %s1063, 16, %s1065, [#allocation28]
        $region100: #{tpu_custom_call.1} parent=11 // pred_fallthru
          _
        // Predicated region
        $region101: #{tpu_custom_call.1} parent=11 // pred_check
          %p1068 = pneg %p682
        $region102: #{tpu_custom_call.1} parent=11 // pred_check_branch
          %1070 = sbr.rel (%p1068) target = $region104
        $region103: #{tpu_custom_call.1} parent=11 // pred_region
          _
        $region104: #{tpu_custom_call.1} parent=11 // pred_fallthru
          _
        // Predicated region
        $region105: #{tpu_custom_call.1} parent=11 // pred_check
          %p1071 = pneg %p703
        $region106: #{tpu_custom_call.1} parent=11 // pred_check_branch
          %1073 = sbr.rel (%p1071) target = $region108
        $region107: #{tpu_custom_call.1} parent=11 // pred_region
          _
        $region108: #{tpu_custom_call.1} parent=11 // pred_fallthru
          _
        // Predicated region
        $region109: #{tpu_custom_call.1} parent=11 // pred_check
          %p1074 = pneg %p724
        $region110: #{tpu_custom_call.1} parent=11 // pred_check_branch
          %1076 = sbr.rel (%p1074) target = $region112
        $region111: #{tpu_custom_call.1} parent=11 // pred_region
          _
        $region112: #{tpu_custom_call.1} parent=11 // pred_fallthru
          _
        // Predicated region
        $region113: #{tpu_custom_call.1} parent=11 // pred_check
          %p1077 = pneg %p745
        $region114: #{tpu_custom_call.1} parent=11 // pred_check_branch
          %1079 = sbr.rel (%p1077) target = $region116
        $region115: #{tpu_custom_call.1} parent=11 // pred_region
          _
        $region116: #{tpu_custom_call.1} parent=11 // pred_fallthru
          _
        // Predicated region
        $region117: #{tpu_custom_call.1} parent=11 // pred_check
          %p1080 = pneg %p771
        $region118: #{tpu_custom_call.1} parent=11 // pred_check_branch
          %1082 = sbr.rel (%p1080) target = $region120
        $region119: #{tpu_custom_call.1} parent=11 // pred_region
          %1084 = vsyncadd [#allocation28], 0
          %s1085 = smul.addr %s93, 4
          %s1086 = scalar_lea.hbm %s61, %s1085
          %s1087 = sshll.u32 %s1086, 4
          %s1088 = int_to_ptr.hbm [resolvable:$true] %s1087
          %s1089 = sshll.u32 [#allocation29], 4
          %s1090 = int_to_ptr.vmem [resolvable:$true] %s1089
          %1095 = dma.hbm_to_vmem [thread:$0]  %s1088, 256, %s1090, [#allocation28], 64, 64, 4
        $region120: #{tpu_custom_call.1} parent=11 // pred_fallthru
          _
        // Predicated region
        $region121: #{tpu_custom_call.1} parent=11 // pred_check
          %p1096 = pneg %p797
        $region122: #{tpu_custom_call.1} parent=11 // pred_check_branch
          %1098 = sbr.rel (%p1096) target = $region124
        $region123: #{tpu_custom_call.1} parent=11 // pred_region
          %p1099 = scmp.lt.s32.totalorder %s93, 0
          %s1100 = scalar_select %p1099, %s93, 0
          %s1101 = scalar_lea.vmem %s63, %s1100
        $region124: #{tpu_custom_call.1} parent=11 // pred_fallthru
          _
      $region12: #{tpu_custom_call.1} parent=5 // pred_fallthru
        _
      %p1102 = scmp.lt.s32.totalorder %s83, 2
      // Predicated region
      $region125: #{tpu_custom_call.1} parent=5 // pred_check
        %p1103 = pneg %p1102
      $region126: #{tpu_custom_call.1} parent=5 // pred_check_branch
        %1105 = sbr.rel (%p1103) target = $region128
      $region127: #{tpu_custom_call.1} parent=5 // pred_region
        // Predicated region
        $region129: #{tpu_custom_call.1} parent=127 // pred_check
          %p1106 = pneg %p115
        $region130: #{tpu_custom_call.1} parent=127 // pred_check_branch
          %1108 = sbr.rel (%p1106) target = $region132
        $region131: #{tpu_custom_call.1} parent=127 // pred_region
          %p1109 = scmp.lt.s32.totalorder %s90, 1
          %s1110 = scalar_select %p1109, %s90, 1
          %s1111 = smul.addr %s1110, 8
          %s1112 = scalar_lea.vmem %s1, %s1111
        $region132: #{tpu_custom_call.1} parent=127 // pred_fallthru
          _
        // Predicated region
        $region133: #{tpu_custom_call.1} parent=127 // pred_check
          %p1113 = pneg %p141
        $region134: #{tpu_custom_call.1} parent=127 // pred_check_branch
          %1115 = sbr.rel (%p1113) target = $region136
        $region135: #{tpu_custom_call.1} parent=127 // pred_region
          %p1116 = scmp.lt.s32.totalorder %s90, 1
          %s1117 = scalar_select %p1116, %s90, 1
          %s1118 = smul.addr %s1117, 8
          %s1119 = scalar_lea.vmem %s3, %s1118
        $region136: #{tpu_custom_call.1} parent=127 // pred_fallthru
          _
        // Predicated region
        $region137: #{tpu_custom_call.1} parent=127 // pred_check
          %p1120 = pneg %p167
        $region138: #{tpu_custom_call.1} parent=127 // pred_check_branch
          %1122 = sbr.rel (%p1120) target = $region140
        $region139: #{tpu_custom_call.1} parent=127 // pred_region
          %p1123 = scmp.lt.s32.totalorder %s90, 1
          %s1124 = scalar_select %p1123, %s90, 1
          %s1125 = smul.addr %s1124, 8
          %s1126 = scalar_lea.vmem %s5, %s1125
        $region140: #{tpu_custom_call.1} parent=127 // pred_fallthru
          _
        // Predicated region
        $region141: #{tpu_custom_call.1} parent=127 // pred_check
          %p1127 = pneg %p193
        $region142: #{tpu_custom_call.1} parent=127 // pred_check_branch
          %1129 = sbr.rel (%p1127) target = $region144
        $region143: #{tpu_custom_call.1} parent=127 // pred_region
          %p1130 = scmp.lt.s32.totalorder %s90, 1
          %s1131 = scalar_select %p1130, %s90, 1
          %s1132 = scalar_lea.vmem %s7, %s1131
        $region144: #{tpu_custom_call.1} parent=127 // pred_fallthru
          _
      $region128: #{tpu_custom_call.1} parent=5 // pred_fallthru
        _
      %p1133 = scmp.le.s32.totalorder 1, %s83
      %p1134 = scmp.lt.s32.totalorder %s83, 3
      %p1135 = pnand %p1133, %p1134
      %p1136 = pneg %p1135
      // Predicated region
      $region145: #{tpu_custom_call.1} parent=5 // pred_check
        _
      $region146: #{tpu_custom_call.1} parent=5 // pred_check_branch
        %1138 = sbr.rel (%p1135) target = $region148
      $region147: #{tpu_custom_call.1} parent=5 // pred_region
        %s1139 = ssub.s32 %s83, 1
        // Predicated region
        $region149: #{tpu_custom_call.1} parent=147 // pred_check
          %p1140 = pneg %p220
        $region150: #{tpu_custom_call.1} parent=147 // pred_check_branch
          %1142 = sbr.rel (%p1140) target = $region152
        $region151: #{tpu_custom_call.1} parent=147 // pred_region
          %1144 = dma.done [#allocation4], 256
        $region152: #{tpu_custom_call.1} parent=147 // pred_fallthru
          _
        // Predicated region
        $region153: #{tpu_custom_call.1} parent=147 // pred_check
          %p1145 = pneg %p262
        $region154: #{tpu_custom_call.1} parent=147 // pred_check_branch
          %1147 = sbr.rel (%p1145) target = $region156
        $region155: #{tpu_custom_call.1} parent=147 // pred_region
          %1149 = dma.done [#allocation7], 256
        $region156: #{tpu_custom_call.1} parent=147 // pred_fallthru
          _
        // Predicated region
        $region157: #{tpu_custom_call.1} parent=147 // pred_check
          %p1150 = pneg %p304
        $region158: #{tpu_custom_call.1} parent=147 // pred_check_branch
          %1152 = sbr.rel (%p1150) target = $region160
        $region159: #{tpu_custom_call.1} parent=147 // pred_region
          %1154 = dma.done [#allocation7], 256
        $region160: #{tpu_custom_call.1} parent=147 // pred_fallthru
          _
        // Predicated region
        $region161: #{tpu_custom_call.1} parent=147 // pred_check
          %p1155 = pneg %p346
        $region162: #{tpu_custom_call.1} parent=147 // pred_check_branch
          %1157 = sbr.rel (%p1155) target = $region164
        $region163: #{tpu_custom_call.1} parent=147 // pred_region
          %1159 = dma.done [#allocation10], 256
        $region164: #{tpu_custom_call.1} parent=147 // pred_fallthru
          _
        // Predicated region
        $region165: #{tpu_custom_call.1} parent=147 // pred_check
          %p1160 = pneg %p430
        $region166: #{tpu_custom_call.1} parent=147 // pred_check_branch
          %1162 = sbr.rel (%p1160) target = $region168
        $region167: #{tpu_custom_call.1} parent=147 // pred_region
          %1164 = dma.done [#allocation10], 256
        $region168: #{tpu_custom_call.1} parent=147 // pred_fallthru
          _
        // Predicated region
        $region169: #{tpu_custom_call.1} parent=147 // pred_check
          %p1165 = pneg %p451
        $region170: #{tpu_custom_call.1} parent=147 // pred_check_branch
          %1167 = sbr.rel (%p1165) target = $region172
        $region171: #{tpu_custom_call.1} parent=147 // pred_region
          %1169 = dma.done [#allocation13], 16
        $region172: #{tpu_custom_call.1} parent=147 // pred_fallthru
          _
        // Predicated region
        $region173: #{tpu_custom_call.1} parent=147 // pred_check
          %p1170 = pneg %p472
        $region174: #{tpu_custom_call.1} parent=147 // pred_check_branch
          %1172 = sbr.rel (%p1170) target = $region176
        $region175: #{tpu_custom_call.1} parent=147 // pred_region
          %1174 = dma.done [#allocation13], 256
        $region176: #{tpu_custom_call.1} parent=147 // pred_fallthru
          _
        // Predicated region
        $region177: #{tpu_custom_call.1} parent=147 // pred_check
          %p1175 = pneg %p493
        $region178: #{tpu_custom_call.1} parent=147 // pred_check_branch
          %1177 = sbr.rel (%p1175) target = $region180
        $region179: #{tpu_custom_call.1} parent=147 // pred_region
          %1179 = dma.done [#allocation16], 16
        $region180: #{tpu_custom_call.1} parent=147 // pred_fallthru
          _
        // Predicated region
        $region181: #{tpu_custom_call.1} parent=147 // pred_check
          %p1180 = pneg %p514
        $region182: #{tpu_custom_call.1} parent=147 // pred_check_branch
          %1182 = sbr.rel (%p1180) target = $region184
        $region183: #{tpu_custom_call.1} parent=147 // pred_region
          %1184 = dma.done [#allocation16], 256
        $region184: #{tpu_custom_call.1} parent=147 // pred_fallthru
          _
        // Predicated region
        $region185: #{tpu_custom_call.1} parent=147 // pred_check
          %p1185 = pneg %p535
        $region186: #{tpu_custom_call.1} parent=147 // pred_check_branch
          %1187 = sbr.rel (%p1185) target = $region188
        $region187: #{tpu_custom_call.1} parent=147 // pred_region
          %1189 = dma.done [#allocation19], 16
        $region188: #{tpu_custom_call.1} parent=147 // pred_fallthru
          _
        // Predicated region
        $region189: #{tpu_custom_call.1} parent=147 // pred_check
          %p1190 = pneg %p556
        $region190: #{tpu_custom_call.1} parent=147 // pred_check_branch
          %1192 = sbr.rel (%p1190) target = $region192
        $region191: #{tpu_custom_call.1} parent=147 // pred_region
          %1194 = dma.done [#allocation19], 256
        $region192: #{tpu_custom_call.1} parent=147 // pred_fallthru
          _
        // Predicated region
        $region193: #{tpu_custom_call.1} parent=147 // pred_check
          %p1195 = pneg %p577
        $region194: #{tpu_custom_call.1} parent=147 // pred_check_branch
          %1197 = sbr.rel (%p1195) target = $region196
        $region195: #{tpu_custom_call.1} parent=147 // pred_region
          %1199 = dma.done [#allocation22], 16
        $region196: #{tpu_custom_call.1} parent=147 // pred_fallthru
          _
        // Predicated region
        $region197: #{tpu_custom_call.1} parent=147 // pred_check
          %p1200 = pneg %p598
        $region198: #{tpu_custom_call.1} parent=147 // pred_check_branch
          %1202 = sbr.rel (%p1200) target = $region200
        $region199: #{tpu_custom_call.1} parent=147 // pred_region
          %1204 = dma.done [#allocation22], 16
        $region200: #{tpu_custom_call.1} parent=147 // pred_fallthru
          _
        // Predicated region
        $region201: #{tpu_custom_call.1} parent=147 // pred_check
          %p1205 = pneg %p619
        $region202: #{tpu_custom_call.1} parent=147 // pred_check_branch
          %1207 = sbr.rel (%p1205) target = $region204
        $region203: #{tpu_custom_call.1} parent=147 // pred_region
          %1209 = dma.done [#allocation25], 16
        $region204: #{tpu_custom_call.1} parent=147 // pred_fallthru
          _
        // Predicated region
        $region205: #{tpu_custom_call.1} parent=147 // pred_check
          %p1210 = pneg %p640
        $region206: #{tpu_custom_call.1} parent=147 // pred_check_branch
          %1212 = sbr.rel (%p1210) target = $region208
        $region207: #{tpu_custom_call.1} parent=147 // pred_region
          %1214 = dma.done [#allocation25], 256
        $region208: #{tpu_custom_call.1} parent=147 // pred_fallthru
          _
        // Predicated region
        $region209: #{tpu_custom_call.1} parent=147 // pred_check
          %p1215 = pneg %p661
        $region210: #{tpu_custom_call.1} parent=147 // pred_check_branch
          %1217 = sbr.rel (%p1215) target = $region212
        $region211: #{tpu_custom_call.1} parent=147 // pred_region
          %1219 = dma.done [#allocation28], 16
        $region212: #{tpu_custom_call.1} parent=147 // pred_fallthru
          _
        // Predicated region
        $region213: #{tpu_custom_call.1} parent=147 // pred_check
          %p1220 = pneg %p771
        $region214: #{tpu_custom_call.1} parent=147 // pred_check_branch
          %1222 = sbr.rel (%p1220) target = $region216
        $region215: #{tpu_custom_call.1} parent=147 // pred_region
          %1224 = dma.done [#allocation28], 256
        $region216: #{tpu_custom_call.1} parent=147 // pred_fallthru
          _
        %p1225 = scmp.lt.s32.totalorder %s92, 1
        %s1226 = scalar_select %p1225, %s92, 1
        %s1227 = smul.addr %s1226, 8
        %s1228 = scalar_lea.vmem %s1, %s1227
        %p1229 = pneg %p121
        %p1230 = pneg %p118
        %p1231 = scmp.lt.s32.totalorder %s92, 1
        %s1232 = scalar_select %p1231, %s92, 1
        %s1233 = smul.addr %s1232, 8
        %s1234 = scalar_lea.vmem %s3, %s1233
        %p1235 = pneg %p147
        %p1236 = pneg %p144
        %p1237 = scmp.lt.s32.totalorder %s92, 1
        %s1238 = scalar_select %p1237, %s92, 1
        %s1239 = smul.addr %s1238, 8
        %s1240 = scalar_lea.vmem %s5, %s1239
        %p1241 = pneg %p173
        %p1242 = pneg %p170
        %p1243 = scmp.lt.s32.totalorder %s92, 1
        %s1244 = scalar_select %p1243, %s92, 1
        %s1245 = scalar_lea.vmem %s7, %s1244
        %p1246 = pneg %p199
        %p1247 = pneg %p196
        %p1248 = pneg %p220
        %p1249 = pneg %p217
        %p1250 = pneg %p241
        %p1251 = pneg %p238
        %p1252 = pneg %p262
        %p1253 = pneg %p259
        %p1254 = pneg %p283
        %p1255 = pneg %p280
        %p1256 = pneg %p304
        %p1257 = pneg %p301
        %p1258 = pneg %p325
        %p1259 = pneg %p322
        %p1260 = pneg %p346
        %p1261 = pneg %p343
        %p1262 = pneg %p367
        %p1263 = pneg %p364
        %p1264 = pneg %p388
        %p1265 = pneg %p385
        %p1266 = pneg %p409
        %p1267 = pneg %p406
        %p1268 = pneg %p430
        %p1269 = pneg %p427
        %p1270 = pneg %p451
        %p1271 = pneg %p448
        %p1272 = pneg %p472
        %p1273 = pneg %p469
        %p1274 = pneg %p493
        %p1275 = pneg %p490
        %p1276 = pneg %p514
        %p1277 = pneg %p511
        %p1278 = pneg %p535
        %p1279 = pneg %p532
        %p1280 = pneg %p556
        %p1281 = pneg %p553
        %p1282 = pneg %p577
        %p1283 = pneg %p574
        %p1284 = pneg %p598
        %p1285 = pneg %p595
        %p1286 = pneg %p619
        %p1287 = pneg %p616
        %p1288 = pneg %p640
        %p1289 = pneg %p637
        %p1290 = pneg %p661
        %p1291 = pneg %p658
        %p1292 = pneg %p682
        %p1293 = pneg %p679
        %p1294 = pneg %p703
        %p1295 = pneg %p700
        %p1296 = pneg %p724
        %p1297 = pneg %p721
        %p1298 = pneg %p745
        %p1299 = pneg %p742
        %p1300 = pneg %p771
        %p1301 = pneg %p768
        %p1302 = scmp.lt.s32.totalorder %s93, 0
        %s1303 = scalar_select %p1302, %s93, 0
        %s1304 = scalar_lea.vmem %s63, %s1303
        %p1305 = pneg %p797
        %p1306 = pneg %p794
        %p1307 = pneg %p825
        %p1308 = pneg %p822
        %s1309 = sand.u32 %s812, 1
        %s1310 = scalar_lea.sflag [#allocation5], %s1309
        %s1311 = sand.u32 %s812, 1
        %s1312 = smul.addr %s1311, 8
        %s1313 = scalar_lea.vmem [#allocation30], %s1312
        %p1314 = scmp.lt.s32.totalorder %s92, 1
        %s1315 = scalar_select %p1314, %s92, 1
        %s1316 = smul.addr %s1315, 8
        %s1317 = scalar_lea.vmem %s1, %s1316
        %p1318 = scmp.lt.s32.totalorder %s92, 1
        %s1319 = scalar_select %p1318, %s92, 1
        %s1320 = smul.addr %s1319, 8
        %s1321 = scalar_lea.vmem %s3, %s1320
        %p1322 = scmp.lt.s32.totalorder %s92, 1
        %s1323 = scalar_select %p1322, %s92, 1
        %s1324 = smul.addr %s1323, 8
        %s1325 = scalar_lea.vmem %s5, %s1324
        %p1326 = scmp.lt.s32.totalorder %s92, 1
        %s1327 = scalar_select %p1326, %s92, 1
        %s1328 = scalar_lea.vmem %s7, %s1327
        %p1329 = scmp.lt.s32.totalorder %s93, 0
        %s1330 = scalar_select %p1329, %s93, 0
        %s1331 = scalar_lea.vmem %s63, %s1330
        %p1333 = scmp.eq.s32.totalorder %s93, 0
        // Predicated region
        $region217: #{tpu_custom_call.1} parent=147 // pred_check
          %p1334 = pneg %p1333
        $region218: #{tpu_custom_call.1} parent=147 // pred_check_branch
          %1336 = sbr.rel (%p1334) target = $region220
        $region219: #{tpu_custom_call.1} parent=147 // pred_region
          %v1337 = vld [vmem:[%s1317] sm:$0xff]
          %v1338 = vld [vmem:[%s1321] sm:$0xff]
          %v1339 = vld [vmem:[%s1325] sm:$0xff]
          %v1340 = vld [vmem:[%s1328] sm:$0x1]
          %v1341 = vld [vmem:[#allocation3] sm:$0xf]
          %v1342 = vld [vmem:[#allocation3 + $0x4] sm:$0xf]
          %v1343 = vld [vmem:[#allocation3 + $0x8] sm:$0xf]
          %v1344 = vld [vmem:[#allocation3 + $0xc] sm:$0xf]
          %v1345 = vld [vmem:[%s11] sm:$0x1]
          %v1346 = vld [vmem:[#allocation6] sm:$0xf]
          %v1347 = vld [vmem:[#allocation6 + $0x4] sm:$0xf]
          %v1348 = vld [vmem:[#allocation6 + $0x8] sm:$0xf]
          %v1349 = vld [vmem:[#allocation6 + $0xc] sm:$0xf]
          %v1350 = vld [vmem:[%s15] sm:$0x1]
          %v1351 = vld [vmem:[#allocation8] sm:$0xf]
          %v1352 = vld [vmem:[#allocation8 + $0x4] sm:$0xf]
          %v1353 = vld [vmem:[#allocation8 + $0x8] sm:$0xf]
          %v1354 = vld [vmem:[#allocation8 + $0xc] sm:$0xf]
          %v1355 = vld [vmem:[%s19] sm:$0x1]
          %v1356 = vld [vmem:[#allocation9] sm:$0xf]
          %v1357 = vld [vmem:[#allocation9 + $0x4] sm:$0xf]
          %v1358 = vld [vmem:[#allocation9 + $0x8] sm:$0xf]
          %v1359 = vld [vmem:[#allocation9 + $0xc] sm:$0xf]
          %v1360 = vld [vmem:[%s23] sm:$0x1]
          %v1361 = vpack.c.bf16 %v1337, %v1337
          %v1363 = vperm.slane %v1345, 0
          %v1369 = vunpack.c.l.b16 %v1341
          %v1370 = vunpack.c.l.b16 %v1342
          %v1371 = vunpack.c.l.b16 %v1343
          %v1372 = vunpack.c.l.b16 %v1344
          %v1373 = vpack.c.b16 %v1370, %v1369
          %v1374 = vpack.c.b16 %v1372, %v1371
          %vm1377 = vcmask 261120
          %v1379 = vsel %vm1377, %v1361, 0
          %1381 = vmatpush.bf16.msra.mxu0 0
          %1382 = vmatpush.bf16.msra.mxu0 0
          %1383 = vmatpush.bf16.msra.mxu0 0
          %1384 = vmatpush.bf16.msra.mxu0 0
          %1385 = vmatpush.bf16.msra.mxu0 0
          %1386 = vmatpush.bf16.msra.mxu0 0
          %1387 = vmatpush.bf16.msra.mxu0 %v1374
          %1388 = vmatpush.bf16.msra.mxu0 %v1373
          %1389 = vmatmul.bf16.gmra.mxu0 %v1379
          %v1390 = vpop.f32.mrf.mxu0
          %v1391 = vadd.f32 %v1363, %v1390
          %v1392 = vpop.f32.mrf.mxu0
          %1393 = vdwg.mxu0
          %v1394 = vpack.c.bf16 %v1391, %v1391
          %v1396 = vperm.slane %v1350, 0
          %v1402 = vunpack.c.l.b16 %v1346
          %v1403 = vunpack.c.l.b16 %v1347
          %v1404 = vunpack.c.l.b16 %v1348
          %v1405 = vunpack.c.l.b16 %v1349
          %v1406 = vpack.c.b16 %v1403, %v1402
          %v1407 = vpack.c.b16 %v1405, %v1404
          %1410 = vmatpush.bf16.msra.mxu0 0
          %1411 = vmatpush.bf16.msra.mxu0 0
          %1412 = vmatpush.bf16.msra.mxu0 0
          %1413 = vmatpush.bf16.msra.mxu0 0
          %1414 = vmatpush.bf16.msra.mxu0 0
          %1415 = vmatpush.bf16.msra.mxu0 0
          %1416 = vmatpush.bf16.msra.mxu0 %v1407
          %1417 = vmatpush.bf16.msra.mxu0 %v1406
          %1418 = vmatmul.bf16.gmra.mxu0 %v1379
          %v1419 = vpop.f32.mrf.mxu0
          %v1420 = vadd.f32 %v1396, %v1419
          %v1421 = vpop.f32.mrf.mxu0
          %1422 = vdwg.mxu0
          %v1423 = vpack.c.bf16 %v1420, %v1420
          %v1425 = vperm.slane %v1355, 0
          %v1431 = vunpack.c.l.b16 %v1351
          %v1432 = vunpack.c.l.b16 %v1352
          %v1433 = vunpack.c.l.b16 %v1353
          %v1434 = vunpack.c.l.b16 %v1354
          %v1435 = vpack.c.b16 %v1432, %v1431
          %v1436 = vpack.c.b16 %v1434, %v1433
          %1439 = vmatpush.bf16.msra.mxu0 0
          %1440 = vmatpush.bf16.msra.mxu0 0
          %1441 = vmatpush.bf16.msra.mxu0 0
          %1442 = vmatpush.bf16.msra.mxu0 0
          %1443 = vmatpush.bf16.msra.mxu0 0
          %1444 = vmatpush.bf16.msra.mxu0 0
          %1445 = vmatpush.bf16.msra.mxu0 %v1436
          %1446 = vmatpush.bf16.msra.mxu0 %v1435
          %1447 = vmatmul.bf16.gmra.mxu0 %v1379
          %v1448 = vpop.f32.mrf.mxu0
          %v1449 = vadd.f32 %v1425, %v1448
          %v1450 = vpop.f32.mrf.mxu0
          %1451 = vdwg.mxu0
          %v1452 = vpack.c.bf16 %v1449, %v1449
          %vm1453 = vcmask 64512
          %v1455 = vsel %vm1453, %v1394, 0
          %v1458 = vsel %vm1453, %v1423, 0
          %1460 = vmatpush.bf16.xpose.msra.mxu0 0
          %1461 = vmatpush.bf16.xpose.msra.mxu0 0
          %1462 = vmatpush.bf16.xpose.msra.mxu0 0
          %1463 = vmatpush.bf16.xpose.msra.mxu0 0
          %1464 = vmatpush.bf16.xpose.msra.mxu0 0
          %1465 = vmatpush.bf16.xpose.msra.mxu0 0
          %1466 = vmatpush.bf16.xpose.msra.mxu0 0
          %1467 = vmatpush.bf16.xpose.msra.mxu0 %v1458
          %1468 = vmatmul.bf16.gmra.mxu0 %v1455
          %v1469 = vpop.f32.mrf.mxu0
          %v1470 = vadd.f32 0.0, %v1469
          %v1471 = vpop.f32.mrf.mxu0
          %1472 = vdwg.mxu0
          %v1473 = vmul.f32 %v1470, 0.35355338
          %v1474 = vadd.f32 %v1473, %v1339
          %v1475 = vsel %vm1453, %v1474, -inf
          %1476 = vmax.xlane.f32.xlu0 %v1475
          %v1477 = vpop.xlane.xlu0 %1476
          %v1478 = vsub.f32 %v1474, %v1477
          %v1479 = vmul.f32 %v1478, 1.442695
          %v1480 = vpow.pop %v1479
          %v1481 = vsel %vm1453, %v1480, 0.0
          %1482 = vadd.xlane.f32.xlu0 %v1481
          %v1483 = vpop.xlane.xlu0 %1482
          %v1484 = vrcp.pop %v1483
          %v1485 = vmul.f32 %v1480, %v1484
          %v1486 = vpack.c.bf16 %v1485, %v1485
          %v1488 = vsel %vm1453, %v1486, 0
          %vm1490 = vcmask 1043456
          %v1492 = vsel %vm1490, %v1452, 0
          %1494 = vmatpush.bf16.msra.mxu0 0
          %1495 = vmatpush.bf16.msra.mxu0 0
          %1496 = vmatpush.bf16.msra.mxu0 0
          %1497 = vmatpush.bf16.msra.mxu0 0
          %1498 = vmatpush.bf16.msra.mxu0 0
          %1499 = vmatpush.bf16.msra.mxu0 0
          %1500 = vmatpush.bf16.msra.mxu0 0
          %1501 = vmatpush.bf16.msra.mxu0 %v1492
          %1502 = vmatmul.bf16.gmra.mxu0 %v1488
          %v1503 = vpop.f32.mrf.mxu0
          %v1504 = vadd.f32 0.0, %v1503
          %v1505 = vpop.f32.mrf.mxu0
          %1506 = vdwg.mxu0
          %v1508 = vunpack.c.l.b16 %v1394
          %v1509 = vpack.c.b16 %v1508, %v1508
          %1510 = vrot.lane.b32.xlu0 %v1509, 120
          %v1511 = vpop.permute.xlu0 %1510
          %v1513 = vunpack.c.l.b16 %v1423
          %v1514 = vpack.c.b16 %v1513, %v1513
          %1515 = vrot.lane.b32.xlu0 %v1514, 120
          %v1516 = vpop.permute.xlu0 %1515
          %v1518 = vsel %vm1453, %v1511, 0
          %v1521 = vsel %vm1453, %v1516, 0
          %1523 = vmatpush.bf16.xpose.msra.mxu0 0
          %1524 = vmatpush.bf16.xpose.msra.mxu0 0
          %1525 = vmatpush.bf16.xpose.msra.mxu0 0
          %1526 = vmatpush.bf16.xpose.msra.mxu0 0
          %1527 = vmatpush.bf16.xpose.msra.mxu0 0
          %1528 = vmatpush.bf16.xpose.msra.mxu0 0
          %1529 = vmatpush.bf16.xpose.msra.mxu0 0
          %1530 = vmatpush.bf16.xpose.msra.mxu0 %v1521
          %1531 = vmatmul.bf16.gmra.mxu0 %v1518
          %v1532 = vpop.f32.mrf.mxu0
          %v1533 = vadd.f32 0.0, %v1532
          %v1534 = vpop.f32.mrf.mxu0
          %1535 = vdwg.mxu0
          %v1536 = vmul.f32 %v1533, 0.35355338
          %v1537 = vadd.f32 %v1536, %v1339
          %v1538 = vsel %vm1453, %v1537, -inf
          %1539 = vmax.xlane.f32.xlu0 %v1538
          %v1540 = vpop.xlane.xlu0 %1539
          %v1541 = vsub.f32 %v1537, %v1540
          %v1542 = vmul.f32 %v1541, 1.442695
          %v1543 = vpow.pop %v1542
          %v1544 = vsel %vm1453, %v1543, 0.0
          %1545 = vadd.xlane.f32.xlu0 %v1544
          %v1546 = vpop.xlane.xlu0 %1545
          %v1547 = vrcp.pop %v1546
          %v1548 = vmul.f32 %v1543, %v1547
          %v1549 = vpack.c.bf16 %v1548, %v1548
          %v1551 = vunpack.c.l.b16 %v1452
          %v1552 = vpack.c.b16 %v1551, %v1551
          %1553 = vrot.lane.b32.xlu0 %v1552, 120
          %v1554 = vpop.permute.xlu0 %1553
          %v1556 = vsel %vm1453, %v1549, 0
          %v1559 = vsel %vm1490, %v1554, 0
          %1561 = vmatpush.bf16.msra.mxu0 0
          %1562 = vmatpush.bf16.msra.mxu0 0
          %1563 = vmatpush.bf16.msra.mxu0 0
          %1564 = vmatpush.bf16.msra.mxu0 0
          %1565 = vmatpush.bf16.msra.mxu0 0
          %1566 = vmatpush.bf16.msra.mxu0 0
          %1567 = vmatpush.bf16.msra.mxu0 0
          %1568 = vmatpush.bf16.msra.mxu0 %v1559
          %1569 = vmatmul.bf16.gmra.mxu0 %v1556
          %v1570 = vpop.f32.mrf.mxu0
          %v1571 = vadd.f32 0.0, %v1570
          %v1572 = vpop.f32.mrf.mxu0
          %1573 = vdwg.mxu0
          %1574 = vrot.lane.b32.xlu0 %v1509, 112
          %v1575 = vpop.permute.xlu0 %1574
          %1576 = vrot.lane.b32.xlu0 %v1514, 112
          %v1577 = vpop.permute.xlu0 %1576
          %v1579 = vsel %vm1453, %v1575, 0
          %v1582 = vsel %vm1453, %v1577, 0
          %1584 = vmatpush.bf16.xpose.msra.mxu0 0
          %1585 = vmatpush.bf16.xpose.msra.mxu0 0
          %1586 = vmatpush.bf16.xpose.msra.mxu0 0
          %1587 = vmatpush.bf16.xpose.msra.mxu0 0
          %1588 = vmatpush.bf16.xpose.msra.mxu0 0
          %1589 = vmatpush.bf16.xpose.msra.mxu0 0
          %1590 = vmatpush.bf16.xpose.msra.mxu0 0
          %1591 = vmatpush.bf16.xpose.msra.mxu0 %v1582
          %1592 = vmatmul.bf16.gmra.mxu0 %v1579
          %v1593 = vpop.f32.mrf.mxu0
          %v1594 = vadd.f32 0.0, %v1593
          %v1595 = vpop.f32.mrf.mxu0
          %1596 = vdwg.mxu0
          %v1597 = vmul.f32 %v1594, 0.35355338
          %v1598 = vadd.f32 %v1597, %v1339
          %v1599 = vsel %vm1453, %v1598, -inf
          %1600 = vmax.xlane.f32.xlu0 %v1599
          %v1601 = vpop.xlane.xlu0 %1600
          %v1602 = vsub.f32 %v1598, %v1601
          %v1603 = vmul.f32 %v1602, 1.442695
          %v1604 = vpow.pop %v1603
          %v1605 = vsel %vm1453, %v1604, 0.0
          %1606 = vadd.xlane.f32.xlu0 %v1605
          %v1607 = vpop.xlane.xlu0 %1606
          %v1608 = vrcp.pop %v1607
          %v1609 = vmul.f32 %v1604, %v1608
          %v1610 = vpack.c.bf16 %v1609, %v1609
          %1611 = vrot.lane.b32.xlu0 %v1552, 112
          %v1612 = vpop.permute.xlu0 %1611
          %v1614 = vsel %vm1453, %v1610, 0
          %v1617 = vsel %vm1490, %v1612, 0
          %1619 = vmatpush.bf16.msra.mxu0 0
          %1620 = vmatpush.bf16.msra.mxu0 0
          %1621 = vmatpush.bf16.msra.mxu0 0
          %1622 = vmatpush.bf16.msra.mxu0 0
          %1623 = vmatpush.bf16.msra.mxu0 0
          %1624 = vmatpush.bf16.msra.mxu0 0
          %1625 = vmatpush.bf16.msra.mxu0 0
          %1626 = vmatpush.bf16.msra.mxu0 %v1617
          %1627 = vmatmul.bf16.gmra.mxu0 %v1614
          %v1628 = vpop.f32.mrf.mxu0
          %v1629 = vadd.f32 0.0, %v1628
          %v1630 = vpop.f32.mrf.mxu0
          %1631 = vdwg.mxu0
          %1632 = vrot.lane.b32.xlu0 %v1509, 104
          %v1633 = vpop.permute.xlu0 %1632
          %1634 = vrot.lane.b32.xlu0 %v1514, 104
          %v1635 = vpop.permute.xlu0 %1634
          %v1637 = vsel %vm1453, %v1633, 0
          %v1640 = vsel %vm1453, %v1635, 0
          %1642 = vmatpush.bf16.xpose.msra.mxu0 0
          %1643 = vmatpush.bf16.xpose.msra.mxu0 0
          %1644 = vmatpush.bf16.xpose.msra.mxu0 0
          %1645 = vmatpush.bf16.xpose.msra.mxu0 0
          %1646 = vmatpush.bf16.xpose.msra.mxu0 0
          %1647 = vmatpush.bf16.xpose.msra.mxu0 0
          %1648 = vmatpush.bf16.xpose.msra.mxu0 0
          %1649 = vmatpush.bf16.xpose.msra.mxu0 %v1640
          %1650 = vmatmul.bf16.gmra.mxu0 %v1637
          %v1651 = vpop.f32.mrf.mxu0
          %v1652 = vadd.f32 0.0, %v1651
          %v1653 = vpop.f32.mrf.mxu0
          %1654 = vdwg.mxu0
          %v1655 = vmul.f32 %v1652, 0.35355338
          %v1656 = vadd.f32 %v1655, %v1339
          %v1657 = vsel %vm1453, %v1656, -inf
          %1658 = vmax.xlane.f32.xlu0 %v1657
          %v1659 = vpop.xlane.xlu0 %1658
          %v1660 = vsub.f32 %v1656, %v1659
          %v1661 = vmul.f32 %v1660, 1.442695
          %v1662 = vpow.pop %v1661
          %v1663 = vsel %vm1453, %v1662, 0.0
          %1664 = vadd.xlane.f32.xlu0 %v1663
          %v1665 = vpop.xlane.xlu0 %1664
          %v1666 = vrcp.pop %v1665
          %v1667 = vmul.f32 %v1662, %v1666
          %v1668 = vpack.c.bf16 %v1667, %v1667
          %1669 = vrot.lane.b32.xlu0 %v1552, 104
          %v1670 = vpop.permute.xlu0 %1669
          %v1672 = vsel %vm1453, %v1668, 0
          %v1675 = vsel %vm1490, %v1670, 0
          %1677 = vmatpush.bf16.msra.mxu0 0
          %1678 = vmatpush.bf16.msra.mxu0 0
          %1679 = vmatpush.bf16.msra.mxu0 0
          %1680 = vmatpush.bf16.msra.mxu0 0
          %1681 = vmatpush.bf16.msra.mxu0 0
          %1682 = vmatpush.bf16.msra.mxu0 0
          %1683 = vmatpush.bf16.msra.mxu0 0
          %1684 = vmatpush.bf16.msra.mxu0 %v1675
          %1685 = vmatmul.bf16.gmra.mxu0 %v1672
          %v1686 = vpop.f32.mrf.mxu0
          %v1687 = vadd.f32 0.0, %v1686
          %v1688 = vpop.f32.mrf.mxu0
          %1689 = vdwg.mxu0
          %1691 = vrot.lane.b32.xlu0 %v1571, 8
          %v1692 = vpop.permute.xlu0 %1691
          %1695 = vrot.lane.b32.xlu0 %v1629, 16
          %v1696 = vpop.permute.xlu0 %1695
          %1699 = vrot.lane.b32.xlu0 %v1687, 24
          %v1700 = vpop.permute.xlu0 %1699
          %v1702 = vsel %vm1453, %v1504, %v1692
          %vm1703 = vcmask 130048
          %v1704 = vsel %vm1703, %v1702, %v1696
          %vm1705 = vcmask 195584
          %v1706 = vsel %vm1705, %v1704, %v1700
          %v1707 = vpack.c.bf16 %v1706, %v1706
          %v1709 = vperm.slane %v1360, 0
          %v1715 = vunpack.c.l.b16 %v1356
          %v1716 = vunpack.c.l.b16 %v1357
          %v1717 = vunpack.c.l.b16 %v1358
          %v1718 = vunpack.c.l.b16 %v1359
          %v1719 = vpack.c.b16 %v1716, %v1715
          %v1720 = vpack.c.b16 %v1718, %v1717
          %v1724 = vsel %vm1377, %v1707, 0
          %1726 = vmatpush.bf16.msra.mxu0 0
          %1727 = vmatpush.bf16.msra.mxu0 0
          %1728 = vmatpush.bf16.msra.mxu0 0
          %1729 = vmatpush.bf16.msra.mxu0 0
          %1730 = vmatpush.bf16.msra.mxu0 0
          %1731 = vmatpush.bf16.msra.mxu0 0
          %1732 = vmatpush.bf16.msra.mxu0 %v1720
          %1733 = vmatpush.bf16.msra.mxu0 %v1719
          %1734 = vmatmul.bf16.gmra.mxu0 %v1724
          %v1735 = vpop.f32.mrf.mxu0
          %v1736 = vadd.f32 %v1709, %v1735
          %v1737 = vpop.f32.mrf.mxu0
          %1738 = vdwg.mxu0
          %v1739 = vadd.f32 %v1736, %v1337
          %v1740 = vld [vmem:[%s25] sm:$0x1]
          %v1741 = vld [vmem:[%s27] sm:$0x1]
          %v1742 = vsel %vm1377, %v1739, 0.0
          %1743 = vadd.xlane.f32.xlu0 %v1742
          %v1744 = vpop.xlane.xlu0 %1743
          %v1745 = vrcp.pop 32.0
          %v1746 = vmul.f32 32.0, %v1745
          %v1747 = vsub.f32 1.0, %v1746
          %v1748 = vmul.f32 %v1745, %v1747
          %v1749 = vadd.f32 %v1745, %v1748
          %vm1750 = vweird.f32 %v1745
          %v1751 = vsel %vm1750, %v1745, %v1749
          %v1752 = vmul.f32 %v1744, %v1751
          %v1753 = vsub.f32 %v1739, %v1752
          %v1754 = vmul.f32 %v1753, %v1753
          %v1755 = vsel %vm1377, %v1754, 0.0
          %1756 = vadd.xlane.f32.xlu0 %v1755
          %v1757 = vpop.xlane.xlu0 %1756
          %v1758 = vmul.f32 %v1757, %v1751
          %v1759 = vadd.f32 %v1758, 1e-12
          %v1760 = vrsqrt.pop %v1759
          %v1761 = vmul.f32 %v1760, %v1759
          %v1762 = vmul.f32 %v1761, %v1760
          %v1763 = vmul.f32 0.5, %v1762
          %v1764 = vsub.f32 1.5, %v1763
          %v1765 = vmul.f32 %v1760, %v1764
          %vm1766 = vweird.f32 %v1759
          %vm1767 = vweird.f32 %v1760
          %vm1768 = vmor %vm1766, %vm1767
          %v1769 = vsel %vm1768, %v1760, %v1765
          %v1770 = vmul.f32 %v1753, %v1769
          %v1772 = vperm.slane %v1740, 0
          %v1774 = vmul.f32 %v1772, %v1770
          %v1776 = vperm.slane %v1741, 0
          %v1778 = vadd.f32 %v1774, %v1776
          %v1779 = vld [vmem:[#allocation11] sm:$0xf]
          %v1780 = vld [vmem:[#allocation11 + $0x4] sm:$0xf]
          %v1781 = vld [vmem:[#allocation11 + $0x8] sm:$0xf]
          %v1782 = vld [vmem:[#allocation11 + $0xc] sm:$0xf]
          %v1783 = vld [vmem:[#allocation12] sm:$0x1]
          %v1784 = vld [vmem:[#allocation14] sm:$0xf]
          %v1785 = vld [vmem:[#allocation14 + $0x4] sm:$0xf]
          %v1786 = vld [vmem:[#allocation14 + $0x8] sm:$0xf]
          %v1787 = vld [vmem:[#allocation14 + $0xc] sm:$0xf]
          %v1788 = vld [vmem:[#allocation15] sm:$0x1]
          %v1789 = vld [vmem:[#allocation17] sm:$0xf]
          %v1790 = vld [vmem:[#allocation17 + $0x4] sm:$0xf]
          %v1791 = vld [vmem:[#allocation17 + $0x8] sm:$0xf]
          %v1792 = vld [vmem:[#allocation17 + $0xc] sm:$0xf]
          %v1793 = vld [vmem:[#allocation18] sm:$0x1]
          %v1794 = vld [vmem:[#allocation20] sm:$0xf]
          %v1795 = vld [vmem:[#allocation20 + $0x4] sm:$0xf]
          %v1796 = vld [vmem:[#allocation20 + $0x8] sm:$0xf]
          %v1797 = vld [vmem:[#allocation20 + $0xc] sm:$0xf]
          %v1798 = vld [vmem:[#allocation21] sm:$0x1]
          %v1799 = vpack.c.bf16 %v1778, %v1778
          %v1800 = vpack.c.bf16 %v1338, %v1338
          %v1802 = vperm.slane %v1783, 0
          %v1808 = vunpack.c.l.b16 %v1779
          %v1809 = vunpack.c.l.b16 %v1780
          %v1810 = vunpack.c.l.b16 %v1781
          %v1811 = vunpack.c.l.b16 %v1782
          %v1812 = vpack.c.b16 %v1809, %v1808
          %v1813 = vpack.c.b16 %v1811, %v1810
          %v1817 = vsel %vm1377, %v1799, 0
          %1819 = vmatpush.bf16.msra.mxu0 0
          %1820 = vmatpush.bf16.msra.mxu0 0
          %1821 = vmatpush.bf16.msra.mxu0 0
          %1822 = vmatpush.bf16.msra.mxu0 0
          %1823 = vmatpush.bf16.msra.mxu0 0
          %1824 = vmatpush.bf16.msra.mxu0 0
          %1825 = vmatpush.bf16.msra.mxu0 %v1813
          %1826 = vmatpush.bf16.msra.mxu0 %v1812
          %1827 = vmatmul.bf16.gmra.mxu0 %v1817
          %v1828 = vpop.f32.mrf.mxu0
          %v1829 = vadd.f32 %v1802, %v1828
          %v1830 = vpop.f32.mrf.mxu0
          %1831 = vdwg.mxu0
          %v1832 = vpack.c.bf16 %v1829, %v1829
          %v1834 = vperm.slane %v1788, 0
          %v1840 = vunpack.c.l.b16 %v1784
          %v1841 = vunpack.c.l.b16 %v1785
          %v1842 = vunpack.c.l.b16 %v1786
          %v1843 = vunpack.c.l.b16 %v1787
          %v1844 = vpack.c.b16 %v1841, %v1840
          %v1845 = vpack.c.b16 %v1843, %v1842
          %v1849 = vsel %vm1377, %v1800, 0
          %1851 = vmatpush.bf16.msra.mxu0 0
          %1852 = vmatpush.bf16.msra.mxu0 0
          %1853 = vmatpush.bf16.msra.mxu0 0
          %1854 = vmatpush.bf16.msra.mxu0 0
          %1855 = vmatpush.bf16.msra.mxu0 0
          %1856 = vmatpush.bf16.msra.mxu0 0
          %1857 = vmatpush.bf16.msra.mxu0 %v1845
          %1858 = vmatpush.bf16.msra.mxu0 %v1844
          %1859 = vmatmul.bf16.gmra.mxu0 %v1849
          %v1860 = vpop.f32.mrf.mxu0
          %v1861 = vadd.f32 %v1834, %v1860
          %v1862 = vpop.f32.mrf.mxu0
          %1863 = vdwg.mxu0
          %v1864 = vpack.c.bf16 %v1861, %v1861
          %v1866 = vperm.slane %v1793, 0
          %v1872 = vunpack.c.l.b16 %v1789
          %v1873 = vunpack.c.l.b16 %v1790
          %v1874 = vunpack.c.l.b16 %v1791
          %v1875 = vunpack.c.l.b16 %v1792
          %v1876 = vpack.c.b16 %v1873, %v1872
          %v1877 = vpack.c.b16 %v1875, %v1874
          %1880 = vmatpush.bf16.msra.mxu0 0
          %1881 = vmatpush.bf16.msra.mxu0 0
          %1882 = vmatpush.bf16.msra.mxu0 0
          %1883 = vmatpush.bf16.msra.mxu0 0
          %1884 = vmatpush.bf16.msra.mxu0 0
          %1885 = vmatpush.bf16.msra.mxu0 0
          %1886 = vmatpush.bf16.msra.mxu0 %v1877
          %1887 = vmatpush.bf16.msra.mxu0 %v1876
          %1888 = vmatmul.bf16.gmra.mxu0 %v1849
          %v1889 = vpop.f32.mrf.mxu0
          %v1890 = vadd.f32 %v1866, %v1889
          %v1891 = vpop.f32.mrf.mxu0
          %1892 = vdwg.mxu0
          %v1893 = vpack.c.bf16 %v1890, %v1890
          %v1895 = vsel %vm1453, %v1832, 0
          %v1898 = vsel %vm1453, %v1864, 0
          %1900 = vmatpush.bf16.xpose.msra.mxu0 0
          %1901 = vmatpush.bf16.xpose.msra.mxu0 0
          %1902 = vmatpush.bf16.xpose.msra.mxu0 0
          %1903 = vmatpush.bf16.xpose.msra.mxu0 0
          %1904 = vmatpush.bf16.xpose.msra.mxu0 0
          %1905 = vmatpush.bf16.xpose.msra.mxu0 0
          %1906 = vmatpush.bf16.xpose.msra.mxu0 0
          %1907 = vmatpush.bf16.xpose.msra.mxu0 %v1898
          %1908 = vmatmul.bf16.gmra.mxu0 %v1895
          %v1909 = vpop.f32.mrf.mxu0
          %v1910 = vadd.f32 0.0, %v1909
          %v1911 = vpop.f32.mrf.mxu0
          %1912 = vdwg.mxu0
          %v1913 = vmul.f32 %v1910, 0.35355338
          %v1915 = vperm.slane %v1340, 0
          %v1917 = vadd.f32 %v1913, %v1915
          %v1918 = vsel %vm1453, %v1917, -inf
          %1919 = vmax.xlane.f32.xlu0 %v1918
          %v1920 = vpop.xlane.xlu0 %1919
          %v1921 = vsub.f32 %v1917, %v1920
          %v1922 = vmul.f32 %v1921, 1.442695
          %v1923 = vpow.pop %v1922
          %v1924 = vsel %vm1453, %v1923, 0.0
          %1925 = vadd.xlane.f32.xlu0 %v1924
          %v1926 = vpop.xlane.xlu0 %1925
          %v1927 = vrcp.pop %v1926
          %v1928 = vmul.f32 %v1923, %v1927
          %v1929 = vpack.c.bf16 %v1928, %v1928
          %v1931 = vsel %vm1453, %v1929, 0
          %v1934 = vsel %vm1490, %v1893, 0
          %1936 = vmatpush.bf16.msra.mxu0 0
          %1937 = vmatpush.bf16.msra.mxu0 0
          %1938 = vmatpush.bf16.msra.mxu0 0
          %1939 = vmatpush.bf16.msra.mxu0 0
          %1940 = vmatpush.bf16.msra.mxu0 0
          %1941 = vmatpush.bf16.msra.mxu0 0
          %1942 = vmatpush.bf16.msra.mxu0 0
          %1943 = vmatpush.bf16.msra.mxu0 %v1934
          %1944 = vmatmul.bf16.gmra.mxu0 %v1931
          %v1945 = vpop.f32.mrf.mxu0
          %v1946 = vadd.f32 0.0, %v1945
          %v1947 = vpop.f32.mrf.mxu0
          %1948 = vdwg.mxu0
          %v1950 = vunpack.c.l.b16 %v1832
          %v1951 = vpack.c.b16 %v1950, %v1950
          %1952 = vrot.lane.b32.xlu0 %v1951, 120
          %v1953 = vpop.permute.xlu0 %1952
          %v1955 = vunpack.c.l.b16 %v1864
          %v1956 = vpack.c.b16 %v1955, %v1955
          %1957 = vrot.lane.b32.xlu0 %v1956, 120
          %v1958 = vpop.permute.xlu0 %1957
          %v1960 = vsel %vm1453, %v1953, 0
          %v1963 = vsel %vm1453, %v1958, 0
          %1965 = vmatpush.bf16.xpose.msra.mxu0 0
          %1966 = vmatpush.bf16.xpose.msra.mxu0 0
          %1967 = vmatpush.bf16.xpose.msra.mxu0 0
          %1968 = vmatpush.bf16.xpose.msra.mxu0 0
          %1969 = vmatpush.bf16.xpose.msra.mxu0 0
          %1970 = vmatpush.bf16.xpose.msra.mxu0 0
          %1971 = vmatpush.bf16.xpose.msra.mxu0 0
          %1972 = vmatpush.bf16.xpose.msra.mxu0 %v1963
          %1973 = vmatmul.bf16.gmra.mxu0 %v1960
          %v1974 = vpop.f32.mrf.mxu0
          %v1975 = vadd.f32 0.0, %v1974
          %v1976 = vpop.f32.mrf.mxu0
          %1977 = vdwg.mxu0
          %v1978 = vmul.f32 %v1975, 0.35355338
          %v1979 = vadd.f32 %v1978, %v1915
          %v1980 = vsel %vm1453, %v1979, -inf
          %1981 = vmax.xlane.f32.xlu0 %v1980
          %v1982 = vpop.xlane.xlu0 %1981
          %v1983 = vsub.f32 %v1979, %v1982
          %v1984 = vmul.f32 %v1983, 1.442695
          %v1985 = vpow.pop %v1984
          %v1986 = vsel %vm1453, %v1985, 0.0
          %1987 = vadd.xlane.f32.xlu0 %v1986
          %v1988 = vpop.xlane.xlu0 %1987
          %v1989 = vrcp.pop %v1988
          %v1990 = vmul.f32 %v1985, %v1989
          %v1991 = vpack.c.bf16 %v1990, %v1990
          %v1993 = vunpack.c.l.b16 %v1893
          %v1994 = vpack.c.b16 %v1993, %v1993
          %1995 = vrot.lane.b32.xlu0 %v1994, 120
          %v1996 = vpop.permute.xlu0 %1995
          %v1998 = vsel %vm1453, %v1991, 0
          %v2001 = vsel %vm1490, %v1996, 0
          %2003 = vmatpush.bf16.msra.mxu0 0
          %2004 = vmatpush.bf16.msra.mxu0 0
          %2005 = vmatpush.bf16.msra.mxu0 0
          %2006 = vmatpush.bf16.msra.mxu0 0
          %2007 = vmatpush.bf16.msra.mxu0 0
          %2008 = vmatpush.bf16.msra.mxu0 0
          %2009 = vmatpush.bf16.msra.mxu0 0
          %2010 = vmatpush.bf16.msra.mxu0 %v2001
          %2011 = vmatmul.bf16.gmra.mxu0 %v1998
          %v2012 = vpop.f32.mrf.mxu0
          %v2013 = vadd.f32 0.0, %v2012
          %v2014 = vpop.f32.mrf.mxu0
          %2015 = vdwg.mxu0
          %2016 = vrot.lane.b32.xlu0 %v1951, 112
          %v2017 = vpop.permute.xlu0 %2016
          %2018 = vrot.lane.b32.xlu0 %v1956, 112
          %v2019 = vpop.permute.xlu0 %2018
          %v2021 = vsel %vm1453, %v2017, 0
          %v2024 = vsel %vm1453, %v2019, 0
          %2026 = vmatpush.bf16.xpose.msra.mxu0 0
          %2027 = vmatpush.bf16.xpose.msra.mxu0 0
          %2028 = vmatpush.bf16.xpose.msra.mxu0 0
          %2029 = vmatpush.bf16.xpose.msra.mxu0 0
          %2030 = vmatpush.bf16.xpose.msra.mxu0 0
          %2031 = vmatpush.bf16.xpose.msra.mxu0 0
          %2032 = vmatpush.bf16.xpose.msra.mxu0 0
          %2033 = vmatpush.bf16.xpose.msra.mxu0 %v2024
          %2034 = vmatmul.bf16.gmra.mxu0 %v2021
          %v2035 = vpop.f32.mrf.mxu0
          %v2036 = vadd.f32 0.0, %v2035
          %v2037 = vpop.f32.mrf.mxu0
          %2038 = vdwg.mxu0
          %v2039 = vmul.f32 %v2036, 0.35355338
          %v2040 = vadd.f32 %v2039, %v1915
          %v2041 = vsel %vm1453, %v2040, -inf
          %2042 = vmax.xlane.f32.xlu0 %v2041
          %v2043 = vpop.xlane.xlu0 %2042
          %v2044 = vsub.f32 %v2040, %v2043
          %v2045 = vmul.f32 %v2044, 1.442695
          %v2046 = vpow.pop %v2045
          %v2047 = vsel %vm1453, %v2046, 0.0
          %2048 = vadd.xlane.f32.xlu0 %v2047
          %v2049 = vpop.xlane.xlu0 %2048
          %v2050 = vrcp.pop %v2049
          %v2051 = vmul.f32 %v2046, %v2050
          %v2052 = vpack.c.bf16 %v2051, %v2051
          %2053 = vrot.lane.b32.xlu0 %v1994, 112
          %v2054 = vpop.permute.xlu0 %2053
          %v2056 = vsel %vm1453, %v2052, 0
          %v2059 = vsel %vm1490, %v2054, 0
          %2061 = vmatpush.bf16.msra.mxu0 0
          %2062 = vmatpush.bf16.msra.mxu0 0
          %2063 = vmatpush.bf16.msra.mxu0 0
          %2064 = vmatpush.bf16.msra.mxu0 0
          %2065 = vmatpush.bf16.msra.mxu0 0
          %2066 = vmatpush.bf16.msra.mxu0 0
          %2067 = vmatpush.bf16.msra.mxu0 0
          %2068 = vmatpush.bf16.msra.mxu0 %v2059
          %2069 = vmatmul.bf16.gmra.mxu0 %v2056
          %v2070 = vpop.f32.mrf.mxu0
          %v2071 = vadd.f32 0.0, %v2070
          %v2072 = vpop.f32.mrf.mxu0
          %2073 = vdwg.mxu0
          %2074 = vrot.lane.b32.xlu0 %v1951, 104
          %v2075 = vpop.permute.xlu0 %2074
          %2076 = vrot.lane.b32.xlu0 %v1956, 104
          %v2077 = vpop.permute.xlu0 %2076
          %v2079 = vsel %vm1453, %v2075, 0
          %v2082 = vsel %vm1453, %v2077, 0
          %2084 = vmatpush.bf16.xpose.msra.mxu0 0
          %2085 = vmatpush.bf16.xpose.msra.mxu0 0
          %2086 = vmatpush.bf16.xpose.msra.mxu0 0
          %2087 = vmatpush.bf16.xpose.msra.mxu0 0
          %2088 = vmatpush.bf16.xpose.msra.mxu0 0
          %2089 = vmatpush.bf16.xpose.msra.mxu0 0
          %2090 = vmatpush.bf16.xpose.msra.mxu0 0
          %2091 = vmatpush.bf16.xpose.msra.mxu0 %v2082
          %2092 = vmatmul.bf16.gmra.mxu0 %v2079
          %v2093 = vpop.f32.mrf.mxu0
          %v2094 = vadd.f32 0.0, %v2093
          %v2095 = vpop.f32.mrf.mxu0
          %2096 = vdwg.mxu0
          %v2097 = vmul.f32 %v2094, 0.35355338
          %v2098 = vadd.f32 %v2097, %v1915
          %v2099 = vsel %vm1453, %v2098, -inf
          %2100 = vmax.xlane.f32.xlu0 %v2099
          %v2101 = vpop.xlane.xlu0 %2100
          %v2102 = vsub.f32 %v2098, %v2101
          %v2103 = vmul.f32 %v2102, 1.442695
          %v2104 = vpow.pop %v2103
          %v2105 = vsel %vm1453, %v2104, 0.0
          %2106 = vadd.xlane.f32.xlu0 %v2105
          %v2107 = vpop.xlane.xlu0 %2106
          %v2108 = vrcp.pop %v2107
          %v2109 = vmul.f32 %v2104, %v2108
          %v2110 = vpack.c.bf16 %v2109, %v2109
          %2111 = vrot.lane.b32.xlu0 %v1994, 104
          %v2112 = vpop.permute.xlu0 %2111
          %v2114 = vsel %vm1453, %v2110, 0
          %v2117 = vsel %vm1490, %v2112, 0
          %2119 = vmatpush.bf16.msra.mxu0 0
          %2120 = vmatpush.bf16.msra.mxu0 0
          %2121 = vmatpush.bf16.msra.mxu0 0
          %2122 = vmatpush.bf16.msra.mxu0 0
          %2123 = vmatpush.bf16.msra.mxu0 0
          %2124 = vmatpush.bf16.msra.mxu0 0
          %2125 = vmatpush.bf16.msra.mxu0 0
          %2126 = vmatpush.bf16.msra.mxu0 %v2117
          %2127 = vmatmul.bf16.gmra.mxu0 %v2114
          %v2128 = vpop.f32.mrf.mxu0
          %v2129 = vadd.f32 0.0, %v2128
          %v2130 = vpop.f32.mrf.mxu0
          %2131 = vdwg.mxu0
          %2133 = vrot.lane.b32.xlu0 %v2013, 8
          %v2134 = vpop.permute.xlu0 %2133
          %2137 = vrot.lane.b32.xlu0 %v2071, 16
          %v2138 = vpop.permute.xlu0 %2137
          %2141 = vrot.lane.b32.xlu0 %v2129, 24
          %v2142 = vpop.permute.xlu0 %2141
          %v2144 = vsel %vm1453, %v1946, %v2134
          %v2145 = vsel %vm1703, %v2144, %v2138
          %v2146 = vsel %vm1705, %v2145, %v2142
          %v2147 = vpack.c.bf16 %v2146, %v2146
          %v2149 = vperm.slane %v1798, 0
          %v2155 = vunpack.c.l.b16 %v1794
          %v2156 = vunpack.c.l.b16 %v1795
          %v2157 = vunpack.c.l.b16 %v1796
          %v2158 = vunpack.c.l.b16 %v1797
          %v2159 = vpack.c.b16 %v2156, %v2155
          %v2160 = vpack.c.b16 %v2158, %v2157
          %v2164 = vsel %vm1377, %v2147, 0
          %2166 = vmatpush.bf16.msra.mxu0 0
          %2167 = vmatpush.bf16.msra.mxu0 0
          %2168 = vmatpush.bf16.msra.mxu0 0
          %2169 = vmatpush.bf16.msra.mxu0 0
          %2170 = vmatpush.bf16.msra.mxu0 0
          %2171 = vmatpush.bf16.msra.mxu0 0
          %2172 = vmatpush.bf16.msra.mxu0 %v2160
          %2173 = vmatpush.bf16.msra.mxu0 %v2159
          %2174 = vmatmul.bf16.gmra.mxu0 %v2164
          %v2175 = vpop.f32.mrf.mxu0
          %v2176 = vadd.f32 %v2149, %v2175
          %v2177 = vpop.f32.mrf.mxu0
          %2178 = vdwg.mxu0
          %v2179 = vadd.f32 %v2176, %v1778
          %v2180 = vld [vmem:[#allocation23] sm:$0x1]
          %v2181 = vld [vmem:[#allocation24] sm:$0x1]
          %v2182 = vsel %vm1377, %v2179, 0.0
          %2183 = vadd.xlane.f32.xlu0 %v2182
          %v2184 = vpop.xlane.xlu0 %2183
          %v2185 = vmul.f32 %v2184, %v1751
          %v2186 = vsub.f32 %v2179, %v2185
          %v2187 = vmul.f32 %v2186, %v2186
          %v2188 = vsel %vm1377, %v2187, 0.0
          %2189 = vadd.xlane.f32.xlu0 %v2188
          %v2190 = vpop.xlane.xlu0 %2189
          %v2191 = vmul.f32 %v2190, %v1751
          %v2192 = vadd.f32 %v2191, 1e-12
          %v2193 = vrsqrt.pop %v2192
          %v2194 = vmul.f32 %v2193, %v2192
          %v2195 = vmul.f32 %v2194, %v2193
          %v2196 = vmul.f32 0.5, %v2195
          %v2197 = vsub.f32 1.5, %v2196
          %v2198 = vmul.f32 %v2193, %v2197
          %vm2199 = vweird.f32 %v2192
          %vm2200 = vweird.f32 %v2193
          %vm2201 = vmor %vm2199, %vm2200
          %v2202 = vsel %vm2201, %v2193, %v2198
          %v2203 = vmul.f32 %v2186, %v2202
          %v2205 = vperm.slane %v2180, 0
          %v2207 = vmul.f32 %v2205, %v2203
          %v2209 = vperm.slane %v2181, 0
          %v2211 = vadd.f32 %v2207, %v2209
          %v2212 = vpack.c.bf16 %v2211, %v2211
          %v2213 = vld [vmem:[#allocation26] sm:$0xf]
          %v2214 = vld [vmem:[#allocation26 + $0x4] sm:$0xf]
          %v2215 = vld [vmem:[#allocation26 + $0x8] sm:$0xf]
          %v2216 = vld [vmem:[#allocation26 + $0xc] sm:$0xf]
          %v2217 = vld [vmem:[#allocation27] sm:$0x1]
          %v2219 = vperm.slane %v2217, 0
          %v2225 = vunpack.c.l.b16 %v2213
          %v2226 = vunpack.c.l.b16 %v2214
          %v2227 = vunpack.c.l.b16 %v2215
          %v2228 = vunpack.c.l.b16 %v2216
          %v2229 = vpack.c.b16 %v2226, %v2225
          %v2230 = vpack.c.b16 %v2228, %v2227
          %v2234 = vsel %vm1377, %v2212, 0
          %2236 = vmatpush.bf16.msra.mxu0 0
          %2237 = vmatpush.bf16.msra.mxu0 0
          %2238 = vmatpush.bf16.msra.mxu0 0
          %2239 = vmatpush.bf16.msra.mxu0 0
          %2240 = vmatpush.bf16.msra.mxu0 0
          %2241 = vmatpush.bf16.msra.mxu0 0
          %2242 = vmatpush.bf16.msra.mxu0 %v2230
          %2243 = vmatpush.bf16.msra.mxu0 %v2229
          %2244 = vmatmul.bf16.gmra.mxu0 %v2234
          %v2245 = vpop.f32.mrf.mxu0
          %v2246 = vadd.f32 %v2219, %v2245
          %v2247 = vpop.f32.mrf.mxu0
          %2248 = vdwg.mxu0
          %v2249 = vmax.f32 %v2246, 0.0
          %v2250 = vpack.c.bf16 %v2249, %v2249
          %v2251 = vld [vmem:[%s53] sm:$0xf]
          %v2252 = vld [vmem:[%s53 + $0x4] sm:$0xf]
          %v2253 = vld [vmem:[%s53 + $0x8] sm:$0xf]
          %v2254 = vld [vmem:[%s53 + $0xc] sm:$0xf]
          %v2255 = vld [vmem:[%s53 + $0x10] sm:$0xf]
          %v2256 = vld [vmem:[%s53 + $0x14] sm:$0xf]
          %v2257 = vld [vmem:[%s53 + $0x18] sm:$0xf]
          %v2258 = vld [vmem:[%s53 + $0x1c] sm:$0xf]
          %v2259 = vld [vmem:[%s55] sm:$0x1]
          %v2261 = vperm.slane %v2259, 0
          %v2271 = vunpack.c.l.b16 %v2251
          %v2272 = vunpack.c.l.b16 %v2252
          %v2273 = vunpack.c.l.b16 %v2253
          %v2274 = vunpack.c.l.b16 %v2254
          %v2275 = vunpack.c.l.b16 %v2255
          %v2276 = vunpack.c.l.b16 %v2256
          %v2277 = vunpack.c.l.b16 %v2257
          %v2278 = vunpack.c.l.b16 %v2258
          %v2279 = vpack.c.b16 %v2272, %v2271
          %v2280 = vpack.c.b16 %v2274, %v2273
          %v2281 = vpack.c.b16 %v2276, %v2275
          %v2282 = vpack.c.b16 %v2278, %v2277
          %vm2287 = vcmask 523264
          %v2289 = vsel %vm2287, %v2250, 0
          %2291 = vmatpush.bf16.msra.mxu0 0
          %2292 = vmatpush.bf16.msra.mxu0 0
          %2293 = vmatpush.bf16.msra.mxu0 0
          %2294 = vmatpush.bf16.msra.mxu0 0
          %2295 = vmatpush.bf16.msra.mxu0 %v2282
          %2296 = vmatpush.bf16.msra.mxu0 %v2281
          %2297 = vmatpush.bf16.msra.mxu0 %v2280
          %2298 = vmatpush.bf16.msra.mxu0 %v2279
          %2299 = vmatmul.bf16.gmra.mxu0 %v2289
          %v2300 = vpop.f32.mrf.mxu0
          %v2301 = vadd.f32 %v2261, %v2300
          %v2302 = vpop.f32.mrf.mxu0
          %2303 = vdwg.mxu0
          %v2304 = vadd.f32 %v2301, %v2211
          %v2305 = vld [vmem:[%s57] sm:$0x1]
          %v2306 = vld [vmem:[%s59] sm:$0x1]
          %v2307 = vsel %vm1377, %v2304, 0.0
          %2308 = vadd.xlane.f32.xlu0 %v2307
          %v2309 = vpop.xlane.xlu0 %2308
          %v2310 = vmul.f32 %v2309, %v1751
          %v2311 = vsub.f32 %v2304, %v2310
          %v2312 = vmul.f32 %v2311, %v2311
          %v2313 = vsel %vm1377, %v2312, 0.0
          %2314 = vadd.xlane.f32.xlu0 %v2313
          %v2315 = vpop.xlane.xlu0 %2314
          %v2316 = vmul.f32 %v2315, %v1751
          %v2317 = vadd.f32 %v2316, 1e-12
          %v2318 = vrsqrt.pop %v2317
          %v2319 = vmul.f32 %v2318, %v2317
          %v2320 = vmul.f32 %v2319, %v2318
          %v2321 = vmul.f32 0.5, %v2320
          %v2322 = vsub.f32 1.5, %v2321
          %v2323 = vmul.f32 %v2318, %v2322
          %vm2324 = vweird.f32 %v2317
          %vm2325 = vweird.f32 %v2318
          %vm2326 = vmor %vm2324, %vm2325
          %v2327 = vsel %vm2326, %v2318, %v2323
          %v2328 = vmul.f32 %v2311, %v2327
          %v2330 = vperm.slane %v2305, 0
          %v2332 = vmul.f32 %v2330, %v2328
          %v2334 = vperm.slane %v2306, 0
          %v2336 = vadd.f32 %v2332, %v2334
          %2337 = vst.msk [vmem:[#allocation2] sm:$0xff] %vm1377, %v2336
        $region220: #{tpu_custom_call.1} parent=147 // pred_fallthru
          _
        %v2338 = vld [vmem:[#allocation2] sm:$0xff]
        %v2339 = vpack.c.bf16 %v2338, %v2338
        %v2340 = vld [vmem:[#allocation29] sm:$0xf]
        %v2341 = vld [vmem:[#allocation29 + $0x4] sm:$0xf]
        %v2342 = vld [vmem:[#allocation29 + $0x8] sm:$0xf]
        %v2343 = vld [vmem:[#allocation29 + $0xc] sm:$0xf]
        %v2344 = vld [vmem:[%s1331] sm:$0x1]
        %v2346 = vperm.slane %v2344, 0
        %v2352 = vunpack.c.l.b16 %v2340
        %v2353 = vunpack.c.l.b16 %v2341
        %v2354 = vunpack.c.l.b16 %v2342
        %v2355 = vunpack.c.l.b16 %v2343
        %v2356 = vpack.c.b16 %v2353, %v2352
        %v2357 = vpack.c.b16 %v2355, %v2354
        %vm2360 = vcmask 261120
        %v2362 = vsel %vm2360, %v2339, 0
        %2364 = vmatpush.bf16.msra.mxu0 0
        %2365 = vmatpush.bf16.msra.mxu0 0
        %2366 = vmatpush.bf16.msra.mxu0 0
        %2367 = vmatpush.bf16.msra.mxu0 0
        %2368 = vmatpush.bf16.msra.mxu0 0
        %2369 = vmatpush.bf16.msra.mxu0 0
        %2370 = vmatpush.bf16.msra.mxu0 %v2357
        %2371 = vmatpush.bf16.msra.mxu0 %v2356
        %2372 = vmatmul.bf16.gmra.mxu0 %v2362
        %v2373 = vpop.f32.mrf.mxu0
        %v2374 = vadd.f32 %v2346, %v2373
        %v2375 = vpop.f32.mrf.mxu0
        %2376 = vdwg.mxu0
        %2377 = vst [vmem:[%s1313] sm:$0xff] %v2374
        %s2378 = sand.u32 %s812, 1
        %s2379 = scalar_lea.sflag [#allocation5], %s2378
        %s2380 = sand.u32 %s812, 1
        %s2381 = smul.addr %s2380, 8
        %s2382 = scalar_lea.vmem [#allocation30], %s2381
        // Predicated region
        $region221: #{tpu_custom_call.1} parent=147 // pred_check
          %p2383 = pneg %p822
        $region222: #{tpu_custom_call.1} parent=147 // pred_check_branch
          %2385 = sbr.rel (%p2383) target = $region224
        $region223: #{tpu_custom_call.1} parent=147 // pred_region
          %2387 = vsyncadd %s2379, 0
          %s2388 = sadd.s32 %s93, %s92
          %s2389 = smul.addr %s2388, 8
          %s2390 = scalar_lea.hbm %s65, %s2389
          %s2392 = sshll.u32 %s2382, 4
          %s2393 = int_to_ptr.vmem [resolvable:$true] %s2392
          %s2394 = sshll.u32 %s2390, 4
          %s2395 = int_to_ptr.hbm [resolvable:$true] %s2394
          %2397 = dma.vmem_to_hbm [thread:$0]  %s2393, 128, %s2395, %s2379
        $region224: #{tpu_custom_call.1} parent=147 // pred_fallthru
          _
      $region148: #{tpu_custom_call.1} parent=5 // pred_fallthru
        _
      %p2398 = scmp.le.s32.totalorder 2, %s83
      // Predicated region
      $region225: #{tpu_custom_call.1} parent=5 // pred_check
        %p2399 = pneg %p2398
      $region226: #{tpu_custom_call.1} parent=5 // pred_check_branch
        %2401 = sbr.rel (%p2399) target = $region228
      $region227: #{tpu_custom_call.1} parent=5 // pred_region
        %s2402 = ssub.s32 %s83, 2
        // Predicated region
        $region229: #{tpu_custom_call.1} parent=227 // pred_check
          %p2403 = pneg %p828
        $region230: #{tpu_custom_call.1} parent=227 // pred_check_branch
          %2405 = sbr.rel (%p2403) target = $region232
        $region231: #{tpu_custom_call.1} parent=227 // pred_region
          %s2406 = sand.u32 %s813, 1
          %s2407 = scalar_lea.sflag [#allocation5], %s2406
          %s2408 = sand.u32 %s813, 1
          %s2409 = smul.addr %s2408, 8
          %s2410 = scalar_lea.vmem [#allocation30], %s2409
          %2412 = dma.done %s2407, 128
        $region232: #{tpu_custom_call.1} parent=227 // pred_fallthru
          _
      $region228: #{tpu_custom_call.1} parent=5 // pred_fallthru
        _
    $region6: #{tpu_custom_call.1} parent=1 // loop_footer
      %s87 = sadd.s32 1, %s83
    $region7: #{tpu_custom_call.1} parent=1 // loop_footer_branch
      %82 = sbr.rel target = $region3
    $region8: #{tpu_custom_call.1} parent=1 // loop_exit
      _
    %2413 = vsyncpa [#allocation4], 1
    %s2414 = scalar_lea.sflag [#allocation4], 1
    %2415 = vsyncpa %s2414, 1
    %2416 = vsyncpa [#allocation7], 1
    %2417 = vsyncpa [#allocation10], 1
    %2418 = vsyncpa [#allocation13], 1
    %2419 = vsyncpa [#allocation16], 1
    %2420 = vsyncpa [#allocation19], 1
    %2421 = vsyncpa [#allocation22], 1
    %2422 = vsyncpa [#allocation25], 1
    %2423 = vsyncpa [#allocation28], 1
    %2424 = vsyncpa [#allocation5], 1
    %s2425 = scalar_lea.sflag [#allocation5], 1
    %2426 = vsyncpa %s2425, 1

</llo_original>
